<compile_context>
chip_gen: v7x
topology: tpu7x:2x2x1
jax: 0.10.0
libtpu: 0.0.40
codegen_flags: <defaults>
</compile_context>

<pallas_src>
import jax
import jax.numpy as jnp
import numpy as np
from jax import lax
from jax.experimental import pallas as pl
from jax.experimental.pallas import tpu as pltpu


def lipswish(x):
    return 0.909 * x * jax.nn.sigmoid(x)


# ----------------------------------------------------------------------------
# Kernel: one batch block per grid step; whole time loop internalized.
# ----------------------------------------------------------------------------
def make_kernel(num_layers, tanh, n_steps, expand_in_kernel):
    n_init = 2 * (num_layers + 1)          # initial MLP: (W, b) per layer
    n_func = 1 + 2 * (num_layers - 1) + 2  # func MLP: Wx, hidden (W,b)*, Wlast, blast

    def kernel(*refs):
        (dts_ref,    # SMEM (n_steps,)         per-step dt
         y0_ref,     # (Bb, C)                 Y at the first knot (batch block)
         a_ref,      # (n_steps+1, Bb, C)      dY/dt at each solver time
         bt_ref,     # (n_steps+1, 1, mlp)     b1 + tau_n * W1[t-row]
         texp_ref,   # (C, H*C)                0/1 lane-expansion matrix
         sel_ref,    # (H*C, H)                0/1 block-sum selector
         ) = refs[:6]
        idx = 6
        init_refs = refs[idx:idx + n_init]; idx += n_init
        func_refs = refs[idx:idx + n_func]; idx += n_func
        w0_ref, b0_ref = refs[idx], refs[idx + 1]; idx += 2
        out_ref = refs[idx]; idx += 1
        a_exp_ref = refs[idx] if expand_in_kernel else None

        texp = texp_ref[...]
        sel = sel_ref[...]
        Bb, C = y0_ref.shape
        HC = texp.shape[1]

        # ---- hoisted lane expansion of the control derivative (one matmul,
        #      off the serial per-step dependency chain) ----
        if expand_in_kernel:
            a_flat = a_ref[...].reshape((n_steps + 1) * Bb, C)
            a_exp_ref[...] = jnp.dot(
                a_flat, texp, preferred_element_type=jnp.float32
            ).reshape(n_steps + 1, Bb, HC)

        # ---- h0 = initial_MLP(Y0)  (tanh=False), evaluated once ----
        h = y0_ref[...]
        for i in range(num_layers + 1):
            W = init_refs[2 * i][...]
            b = init_refs[2 * i + 1][...]
            h = jnp.dot(h, W, preferred_element_type=jnp.float32) + b
            if i < num_layers:
                h = lipswish(h)
        h0 = h                                                   # (Bb, H)

        Wx_ref = func_refs[0]
        hidden_refs = func_refs[1:1 + 2 * (num_layers - 1)]
        Wl_ref, bl_ref = func_refs[-2], func_refs[-1]

        def drift(x, n_time):
            # func_MLP([t, x]) with t folded into the precomputed bias row.
            g = (jnp.dot(x, Wx_ref[...], preferred_element_type=jnp.float32)
                 + bt_ref[n_time])
            g = lipswish(g)
            for i in range(num_layers - 1):
                W = hidden_refs[2 * i][...]
                b = hidden_refs[2 * i + 1][...]
                g = lipswish(jnp.dot(g, W, preferred_element_type=jnp.float32) + b)
            g = jnp.dot(g, Wl_ref[...], preferred_element_type=jnp.float32) + bl_ref[...]
            if tanh:
                g = jnp.tanh(g)                                  # (Bb, H*C)
            if expand_in_kernel:
                a_t = a_exp_ref[n_time]                          # precomputed
            else:
                a_t = jnp.dot(a_ref[n_time], texp,
                              preferred_element_type=jnp.float32)
            # einsum('bhc,bc->bh', g.view(B,H,C), dY/dt) -> group-sum matmul
            return jnp.dot(g * a_t, sel,
                           preferred_element_type=jnp.float32)   # (Bb, H)

        # reversible Heun (drift-only): carry (y, y_hat, f_hat)
        fhat0 = drift(h0, 0)

        def body(n, carry):
            y, z, fhat = carry
            dt = dts_ref[n]                                      # SMEM f32 scalar
            z_new = 2.0 * y - z + dt * fhat                      # diffusion == 0
            fhat_new = drift(z_new, n + 1)
            y_new = y + (0.5 * dt) * (fhat + fhat_new)
            return (y_new, z_new, fhat_new)

        y_fin, _, _ = lax.fori_loop(0, n_steps, body, (h0, h0, fhat0),
                                    unroll=min(n_steps, 8))

        # only values[:, -1, 0] is returned -> readout column 0, single store
        out_ref[...] = (jnp.sum(y_fin * w0_ref[...], axis=1, keepdims=True)
                        + b0_ref[...])

    return kernel


# ----------------------------------------------------------------------------
# Parameter init (PyTorch-Linear-style uniform)
# ----------------------------------------------------------------------------
def linear_init(key, in_size, out_size):
    k1, k2 = jax.random.split(key)
    bound = 1.0 / np.sqrt(in_size)
    W = jax.random.uniform(k1, (in_size, out_size), jnp.float32, -bound, bound)
    b = jax.random.uniform(k2, (1, out_size), jnp.float32, -bound, bound)
    return W, b


def init_mlp(key, in_size, out_size, mlp_size, num_layers):
    sizes = ([(in_size, mlp_size)]
             + [(mlp_size, mlp_size)] * (num_layers - 1)
             + [(mlp_size, out_size)])
    layers = []
    for (i, o) in sizes:
        key, kk = jax.random.split(key)
        layers.append(linear_init(kk, i, o))
    return key, layers


def init_params(key, data_size, hidden_size, mlp_size, num_layers):
    C = 1 + data_size
    key, initial = init_mlp(key, C, hidden_size, mlp_size, num_layers)
    key, func = init_mlp(key, 1 + hidden_size, hidden_size * C, mlp_size, num_layers)
    key, kr = jax.random.split(key)
    readout = linear_init(kr, hidden_size, data_size)
    return {"initial": initial, "func": func, "readout": readout}


# ----------------------------------------------------------------------------
# Wrapper
# ----------------------------------------------------------------------------
def neural_cde_forward(params, ys_coeffs, *, hidden_size, mlp_size, num_layers,
                       dt_scale=1.0, tanh=True):
    B, T, C = ys_coeffs.shape                       # C = 1 + data_size
    H = hidden_size

    # torchcde.LinearInterpolation default knots / interval
    t_knots = np.linspace(0.0, float(T - 1), T)
    t0, t1 = float(t_knots[0]), float(t_knots[-1])
    dt = (t1 - t0) * float(dt_scale)
    if dt <= 0.0:
        raise ValueError("dt must be positive")

    # torchsde fixed-step schedule over ts = [t0, t1]
    taus = [t0]
    cur = t0
    while cur < t1:
        cur = min(cur + dt, t1)
        taus.append(cur)
    taus = np.asarray(taus, np.float64)
    n_steps = len(taus) - 1
    assert n_steps >= 1
    dts = jnp.asarray(np.diff(taus).astype(np.float32))          # (N,)

    # control derivative dY/dt at each solver time (torchcde bucketize rule)
    # TODO(synk): verify left-interval convention at interior knots against
    #             torchcde.LinearInterpolation.derivative.
    idx = np.clip(np.searchsorted(t_knots, taus, side="left") - 1, 0, T - 2)
    ysc = ys_coeffs.astype(jnp.float32)
    spacing = jnp.asarray(np.diff(t_knots).astype(np.float32))[None, :, None]
    derivs = (ysc[:, 1:, :] - ysc[:, :-1, :]) / spacing          # (B, T-1, C)
    a_tab = jnp.transpose(derivs[:, idx, :], (1, 0, 2))          # (N+1, B, C)

    # batch tiling: sublane pad, blocks of up to 256 rows (full MXU on v6e/v7x);
    # the batch-block grid axis is "parallel" -> v7x megacore shards it.
    Bp = -(-B // 8) * 8
    Bb = min(Bp, 256)
    Bp = -(-Bp // Bb) * Bb
    nb = Bp // Bb
    pad = Bp - B
    y0 = ysc[:, 0, :]
    if pad:
        # padded rows: dY/dt == 0 => drift == 0 => state stays at finite h0.
        y0 = jnp.concatenate([y0, jnp.zeros((pad, C), jnp.float32)], axis=0)
        a_tab = jnp.concatenate(
            [a_tab, jnp.zeros((n_steps + 1, pad, C), jnp.float32)], axis=1)

    # hoist t into the func-MLP first-layer bias: bt[n] = b1 + tau_n * W1[t-row]
    Wf1, bf1 = params["func"][0]
    Wt = Wf1[0:1, :]                                             # (1, mlp)
    Wx = Wf1[1:, :]                                              # (H, mlp)
    taus_f32 = jnp.asarray(taus.astype(np.float32))
    bt_tab = (bf1 + taus_f32[:, None] * Wt)[:, None, :]          # (N+1, 1, mlp)

    # 0/1 matrices implementing einsum('bhc,bc->bh') on the MXU
    texp_np = np.zeros((C, H * C), np.float32)
    texp_np[np.arange(H * C) % C, np.arange(H * C)] = 1.0
    sel_np = np.zeros((H * C, H), np.float32)
    sel_np[np.arange(H * C), np.arange(H * C) // C] = 1.0

    init_flat = [w for pair in params["initial"] for w in pair]
    func_flat = ([Wx]
                 + [w for pair in params["func"][1:-1] for w in pair]
                 + [params["func"][-1][0], params["func"][-1][1]])
    W_read, b_read = params["readout"]
    w0 = W_read[:, 0:1].T                                        # (1, H)
    b0 = b_read[:, 0:1]                                          # (1, 1)

    inputs = [dts, y0, a_tab, bt_tab, jnp.asarray(texp_np), jnp.asarray(sel_np),
              *init_flat, *func_flat, w0, b0]

    # ---- explicit VMEM budget (v7x: 64 MiB physical, 32 MiB scoped default) ----
    a_exp_bytes = (n_steps + 1) * Bb * H * C * 4
    expand_in_kernel = a_exp_bytes <= (20 << 20)   # else: per-step expansion
    resident_bytes = sum(int(np.prod(np.asarray(a).shape)) * 4 for a in inputs[3:])
    pipelined_bytes = 2 * ((n_steps + 1) * Bb * C + Bb * C + Bb) * 4
    est_bytes = (resident_bytes + pipelined_bytes
                 + (a_exp_bytes if expand_in_kernel else 0))
    vmem_limit = int(min(64 << 20, max(32 << 20, 2 * est_bytes)))

    vmem = pltpu.MemorySpace.VMEM
    smem = pltpu.MemorySpace.SMEM
    # whole-array VMEM residency, no pipeline double-buffering
    resident_spec = pl.BlockSpec(memory_space=vmem)

    in_specs = (
        [pl.BlockSpec(memory_space=smem),                            # dts
         pl.BlockSpec((Bb, C), lambda i: (i, 0)),                    # y0
         pl.BlockSpec((n_steps + 1, Bb, C), lambda i: (0, i, 0))]    # a_tab
        + [resident_spec] * (len(inputs) - 3))                       # bt/texp/sel/weights

    scratch_shapes = ([pltpu.VMEM((n_steps + 1, Bb, H * C), jnp.float32)]
                      if expand_in_kernel else [])

    kernel = make_kernel(num_layers, tanh, n_steps, expand_in_kernel)
    out = pl.pallas_call(
        kernel,
        out_shape=jax.ShapeDtypeStruct((Bp, 1), jnp.float32),
        grid_spec=pltpu.PrefetchScalarGridSpec(
            num_scalar_prefetch=0,
            grid=(nb,),
            in_specs=in_specs,
            out_specs=pl.BlockSpec((Bb, 1), lambda i: (i, 0)),
            scratch_shapes=scratch_shapes),
        compiler_params=pltpu.CompilerParams(
            dimension_semantics=("parallel",),
            vmem_limit_bytes=vmem_limit),
    )(*inputs)
    return out[:B, 0]


# ----------------------------------------------------------------------------
# Pure-JAX reference (high-precision matmuls) for the correctness check
# ----------------------------------------------------------------------------
def reference_forward(params, ys_coeffs, *, hidden_size, mlp_size, num_layers,
                      dt_scale=1.0, tanh=True):
    hp = jax.lax.Precision.HIGHEST
    B, T, C = ys_coeffs.shape
    H = hidden_size

    t_knots = np.linspace(0.0, float(T - 1), T)
    t0, t1 = float(t_knots[0]), float(t_knots[-1])
    dt = (t1 - t0) * float(dt_scale)
    taus = [t0]
    cur = t0
    while cur < t1:
        cur = min(cur + dt, t1)
        taus.append(cur)
    n_steps = len(taus) - 1

    ysc = ys_coeffs.astype(jnp.float32)
    spacing = jnp.asarray(np.diff(t_knots).astype(np.float32))[None, :, None]
    derivs = (ysc[:, 1:, :] - ysc[:, :-1, :]) / spacing

    def Ydot(t):
        i = int(np.clip(np.searchsorted(t_knots, t, side="left") - 1, 0, T - 2))
        return derivs[:, i, :]

    def mlp(layers, x, use_tanh):
        h = x
        nl = len(layers)
        for i, (W, b) in enumerate(layers):
            h = jnp.dot(h, W, precision=hp) + b
            if i < nl - 1:
                h = lipswish(h)
        if use_tanh:
            h = jnp.tanh(h)
        return h

    h0 = mlp(params["initial"], ysc[:, 0, :], False)

    def drift(t, h):
        tt = jnp.full((B, 1), np.float32(t))
        vf = mlp(params["func"], jnp.concatenate([tt, h], axis=1), tanh)
        vf = vf.reshape(B, H, C)
        return jnp.einsum("bhc,bc->bh", vf, Ydot(t), precision=hp)

    y = h0
    z = h0
    fh = drift(taus[0], h0)
    for n in range(n_steps):
        ddt = np.float32(taus[n + 1] - taus[n])
        z_new = 2.0 * y - z + ddt * fh
        fh_new = drift(taus[n + 1], z_new)
        y = y + 0.5 * ddt * (fh + fh_new)
        z = z_new
        fh = fh_new

    W_read, b_read = params["readout"]
    values_last = jnp.dot(y, W_read, precision=hp) + b_read      # (B, data_size)
    return values_last[:, 0]


# ----------------------------------------------------------------------------
if __name__ == "__main__":
    data_size = 3
    hidden_size = 16
    mlp_size = 32
    num_layers = 2
    batch_size = 2
    T = 8
    dt_scale = 1.0 / (T - 1)   # solver dt == 1.0 (one step per knot), sde-GAN style

    key = jax.random.PRNGKey(0)
    key, kp, kd = jax.random.split(key, 3)
    params = init_params(kp, data_size, hidden_size, mlp_size, num_layers)

    # ys_coeffs: generator-style cat([ts, ys], -1); for fully observed data the
    # linear-interpolation coefficients equal the data itself.
    ts_chan = jnp.broadcast_to(jnp.linspace(0.0, 1.0, T, dtype=jnp.float32)[None, :, None],
                               (batch_size, T, 1))
    ys = 0.3 * jax.random.normal(kd, (batch_size, T, data_size), jnp.float32)
    ys_coeffs = jnp.concatenate([ts_chan, ys], axis=-1)          # (B, T, 1+data)

    out = neural_cde_forward(params, ys_coeffs,
                             hidden_size=hidden_size, mlp_size=mlp_size,
                             num_layers=num_layers, dt_scale=dt_scale, tanh=True)
    out = jax.block_until_ready(out)

    ref = reference_forward(params, ys_coeffs,
                            hidden_size=hidden_size, mlp_size=mlp_size,
                            num_layers=num_layers, dt_scale=dt_scale, tanh=True)
    ref = jax.block_until_ready(ref)

    # Slack covers MXU f32 matmul precision differences kernel vs XLA reference.
    np.testing.assert_allclose(np.asarray(out), np.asarray(ref),
                               rtol=5e-3, atol=5e-3)
    assert out.shape == (batch_size,)
    print("KERNEL_OK")
</pallas_src>

<mosaic_0001>
module attributes {stable_mosaic.version = 11 : i64} {
  func.func @kernel(%arg0: i32, %arg1: memref<7xf32, #tpu.memory_space<smem>>, %arg2: memref<8x4xf32, #tpu.memory_space<vmem>>, %arg3: memref<8x8x4xf32, #tpu.memory_space<vmem>>, %arg4: memref<8x1x32xf32, #tpu.memory_space<vmem>>, %arg5: memref<4x64xf32, #tpu.memory_space<vmem>>, %arg6: memref<64x16xf32, #tpu.memory_space<vmem>>, %arg7: memref<4x32xf32, #tpu.memory_space<vmem>>, %arg8: memref<1x32xf32, #tpu.memory_space<vmem>>, %arg9: memref<32x32xf32, #tpu.memory_space<vmem>>, %arg10: memref<1x32xf32, #tpu.memory_space<vmem>>, %arg11: memref<32x16xf32, #tpu.memory_space<vmem>>, %arg12: memref<1x16xf32, #tpu.memory_space<vmem>>, %arg13: memref<16x32xf32, #tpu.memory_space<vmem>>, %arg14: memref<32x32xf32, #tpu.memory_space<vmem>>, %arg15: memref<1x32xf32, #tpu.memory_space<vmem>>, %arg16: memref<32x64xf32, #tpu.memory_space<vmem>>, %arg17: memref<1x64xf32, #tpu.memory_space<vmem>>, %arg18: memref<1x16xf32, #tpu.memory_space<vmem>>, %arg19: memref<1x1xf32, #tpu.memory_space<vmem>>, %arg20: memref<8x1xf32, #tpu.memory_space<vmem>>, %arg21: memref<8x8x64xf32, #tpu.memory_space<vmem>>) attributes {dimension_semantics = [#tpu.dimension_semantics<parallel>], iteration_bounds = array<i64: 1>, scalar_prefetch = 0 : i64, scratch_operands = 1 : i64, tpu.core_type = #tpu.core_type<tc>, window_params = [{transform_indices = @transform_0, window_bounds = array<i64: 7>}, {transform_indices = @transform_1, window_bounds = array<i64: 8, 4>}, {transform_indices = @transform_2, window_bounds = array<i64: 8, 8, 4>}, {pipeline_mode = #tpu.pipeline_mode<synchronous>, transform_indices = @transform_3, window_bounds = array<i64: 8, 1, 32>}, {pipeline_mode = #tpu.pipeline_mode<synchronous>, transform_indices = @transform_4, window_bounds = array<i64: 4, 64>}, {pipeline_mode = #tpu.pipeline_mode<synchronous>, transform_indices = @transform_5, window_bounds = array<i64: 64, 16>}, {pipeline_mode = #tpu.pipeline_mode<synchronous>, transform_indices = @transform_6, window_bounds = array<i64: 4, 32>}, {pipeline_mode = #tpu.pipeline_mode<synchronous>, transform_indices = @transform_7, window_bounds = array<i64: 1, 32>}, {pipeline_mode = #tpu.pipeline_mode<synchronous>, transform_indices = @transform_8, window_bounds = array<i64: 32, 32>}, {pipeline_mode = #tpu.pipeline_mode<synchronous>, transform_indices = @transform_9, window_bounds = array<i64: 1, 32>}, {pipeline_mode = #tpu.pipeline_mode<synchronous>, transform_indices = @transform_10, window_bounds = array<i64: 32, 16>}, {pipeline_mode = #tpu.pipeline_mode<synchronous>, transform_indices = @transform_11, window_bounds = array<i64: 1, 16>}, {pipeline_mode = #tpu.pipeline_mode<synchronous>, transform_indices = @transform_12, window_bounds = array<i64: 16, 32>}, {pipeline_mode = #tpu.pipeline_mode<synchronous>, transform_indices = @transform_13, window_bounds = array<i64: 32, 32>}, {pipeline_mode = #tpu.pipeline_mode<synchronous>, transform_indices = @transform_14, window_bounds = array<i64: 1, 32>}, {pipeline_mode = #tpu.pipeline_mode<synchronous>, transform_indices = @transform_15, window_bounds = array<i64: 32, 64>}, {pipeline_mode = #tpu.pipeline_mode<synchronous>, transform_indices = @transform_16, window_bounds = array<i64: 1, 64>}, {pipeline_mode = #tpu.pipeline_mode<synchronous>, transform_indices = @transform_17, window_bounds = array<i64: 1, 16>}, {pipeline_mode = #tpu.pipeline_mode<synchronous>, transform_indices = @transform_18, window_bounds = array<i64: 1, 1>}, {transform_indices = @transform_19, window_bounds = array<i64: 8, 1>}]} {
    %c0 = arith.constant 0 : index
    %c0_0 = arith.constant 0 : index
    %0 = vector.load %arg5[%c0, %c0_0] : memref<4x64xf32, #tpu.memory_space<vmem>>, vector<4x64xf32>
    %c0_1 = arith.constant 0 : index
    %c0_2 = arith.constant 0 : index
    %1 = vector.load %arg6[%c0_1, %c0_2] : memref<64x16xf32, #tpu.memory_space<vmem>>, vector<64x16xf32>
    %c0_3 = arith.constant 0 : index
    %c0_4 = arith.constant 0 : index
    %c0_5 = arith.constant 0 : index
    %2 = vector.load %arg3[%c0_3, %c0_4, %c0_5] : memref<8x8x4xf32, #tpu.memory_space<vmem>>, vector<8x8x4xf32>
    %3 = vector.shape_cast %2 : vector<8x8x4xf32> to vector<64x4xf32>
    %cst = arith.constant dense<0.000000e+00> : vector<64x64xf32>
    %4 = tpu.matmul %3, %0, %cst {dimension_numbers = #tpu.dot_dimension_numbers<[1], [0], [0], [1], [0, 0, 1, 1], [], []>} : vector<64x4xf32>, vector<4x64xf32>, vector<64x64xf32> -> vector<64x64xf32>
    %5 = vector.shape_cast %4 : vector<64x64xf32> to vector<8x8x64xf32>
    %c0_6 = arith.constant 0 : index
    %c0_7 = arith.constant 0 : index
    %c0_8 = arith.constant 0 : index
    %6 = vector.load %arg21[%c0_6, %c0_7, %c0_8] : memref<8x8x64xf32, #tpu.memory_space<vmem>>, vector<8x8x64xf32>
    tpu.vector_store %arg21[%c0_6, %c0_7, %c0_8], %5 {strides = array<i32>} : memref<8x8x64xf32, #tpu.memory_space<vmem>>, vector<8x8x64xf32>,
    %c0_9 = arith.constant 0 : index
    %c0_10 = arith.constant 0 : index
    %7 = vector.load %arg2[%c0_9, %c0_10] : memref<8x4xf32, #tpu.memory_space<vmem>>, vector<8x4xf32>
    %c0_11 = arith.constant 0 : index
    %c0_12 = arith.constant 0 : index
    %8 = vector.load %arg7[%c0_11, %c0_12] : memref<4x32xf32, #tpu.memory_space<vmem>>, vector<4x32xf32>
    %c0_13 = arith.constant 0 : index
    %c0_14 = arith.constant 0 : index
    %9 = vector.load %arg8[%c0_13, %c0_14] : memref<1x32xf32, #tpu.memory_space<vmem>>, vector<1x32xf32>
    %cst_15 = arith.constant dense<0.000000e+00> : vector<8x32xf32>
    %10 = tpu.matmul %7, %8, %cst_15 {dimension_numbers = #tpu.dot_dimension_numbers<[1], [0], [0], [1], [0, 0, 1, 1], [], []>} : vector<8x4xf32>, vector<4x32xf32>, vector<8x32xf32> -> vector<8x32xf32>
    %11 = vector.broadcast %9 : vector<1x32xf32> to vector<8x32xf32>
    %12 = arith.addf %10, %11 : vector<8x32xf32>
    %cst_16 = arith.constant 0.908999979 : f32
    %13 = vector.broadcast %cst_16 : f32 to vector<8x32xf32>
    %14 = arith.mulf %13, %12 : vector<8x32xf32>
    %15 = arith.negf %12 : vector<8x32xf32>
    %16 = math.exp %15 : vector<8x32xf32>
    %cst_17 = arith.constant 1.000000e+00 : f32
    %17 = vector.broadcast %cst_17 : f32 to vector<8x32xf32>
    %18 = arith.addf %17, %16 : vector<8x32xf32>
    %19 = arith.divf %17, %18 : vector<8x32xf32>
    %20 = arith.mulf %14, %19 : vector<8x32xf32>
    %c0_18 = arith.constant 0 : index
    %c0_19 = arith.constant 0 : index
    %21 = vector.load %arg9[%c0_18, %c0_19] : memref<32x32xf32, #tpu.memory_space<vmem>>, vector<32x32xf32>
    %c0_20 = arith.constant 0 : index
    %c0_21 = arith.constant 0 : index
    %22 = vector.load %arg10[%c0_20, %c0_21] : memref<1x32xf32, #tpu.memory_space<vmem>>, vector<1x32xf32>
    %cst_22 = arith.constant dense<0.000000e+00> : vector<8x32xf32>
    %23 = tpu.matmul %20, %21, %cst_22 {dimension_numbers = #tpu.dot_dimension_numbers<[1], [0], [0], [1], [0, 0, 1, 1], [], []>} : vector<8x32xf32>, vector<32x32xf32>, vector<8x32xf32> -> vector<8x32xf32>
    %24 = vector.broadcast %22 : vector<1x32xf32> to vector<8x32xf32>
    %25 = arith.addf %23, %24 : vector<8x32xf32>
    %cst_23 = arith.constant 0.908999979 : f32
    %26 = vector.broadcast %cst_23 : f32 to vector<8x32xf32>
    %27 = arith.mulf %26, %25 : vector<8x32xf32>
    %28 = arith.negf %25 : vector<8x32xf32>
    %29 = math.exp %28 : vector<8x32xf32>
    %cst_24 = arith.constant 1.000000e+00 : f32
    %30 = vector.broadcast %cst_24 : f32 to vector<8x32xf32>
    %31 = arith.addf %30, %29 : vector<8x32xf32>
    %32 = arith.divf %30, %31 : vector<8x32xf32>
    %33 = arith.mulf %27, %32 : vector<8x32xf32>
    %c0_25 = arith.constant 0 : index
    %c0_26 = arith.constant 0 : index
    %34 = vector.load %arg11[%c0_25, %c0_26] : memref<32x16xf32, #tpu.memory_space<vmem>>, vector<32x16xf32>
    %c0_27 = arith.constant 0 : index
    %c0_28 = arith.constant 0 : index
    %35 = vector.load %arg12[%c0_27, %c0_28] : memref<1x16xf32, #tpu.memory_space<vmem>>, vector<1x16xf32>
    %cst_29 = arith.constant dense<0.000000e+00> : vector<8x16xf32>
    %36 = tpu.matmul %33, %34, %cst_29 {dimension_numbers = #tpu.dot_dimension_numbers<[1], [0], [0], [1], [0, 0, 1, 1], [], []>} : vector<8x32xf32>, vector<32x16xf32>, vector<8x16xf32> -> vector<8x16xf32>
    %37 = vector.broadcast %35 : vector<1x16xf32> to vector<8x16xf32>
    %38 = arith.addf %36, %37 : vector<8x16xf32>
    %c0_30 = arith.constant 0 : index
    %c0_31 = arith.constant 0 : index
    %39 = vector.load %arg13[%c0_30, %c0_31] : memref<16x32xf32, #tpu.memory_space<vmem>>, vector<16x32xf32>
    %cst_32 = arith.constant dense<0.000000e+00> : vector<8x32xf32>
    %40 = tpu.matmul %38, %39, %cst_32 {dimension_numbers = #tpu.dot_dimension_numbers<[1], [0], [0], [1], [0, 0, 1, 1], [], []>} : vector<8x16xf32>, vector<16x32xf32>, vector<8x32xf32> -> vector<8x32xf32>
    %c0_33 = arith.constant 0 : index
    %c0_34 = arith.constant 0 : index
    %c0_35 = arith.constant 0 : index
    %41 = vector.load %arg4[%c0_33, %c0_34, %c0_35] : memref<8x1x32xf32, #tpu.memory_space<vmem>>, vector<1x1x32xf32>
    %42 = vector.shape_cast %41 : vector<1x1x32xf32> to vector<1x32xf32>
    %43 = vector.broadcast %42 : vector<1x32xf32> to vector<8x32xf32>
    %44 = arith.addf %40, %43 : vector<8x32xf32>
    %cst_36 = arith.constant 0.908999979 : f32
    %45 = vector.broadcast %cst_36 : f32 to vector<8x32xf32>
    %46 = arith.mulf %45, %44 : vector<8x32xf32>
    %47 = arith.negf %44 : vector<8x32xf32>
    %48 = math.exp %47 : vector<8x32xf32>
    %cst_37 = arith.constant 1.000000e+00 : f32
    %49 = vector.broadcast %cst_37 : f32 to vector<8x32xf32>
    %50 = arith.addf %49, %48 : vector<8x32xf32>
    %51 = arith.divf %49, %50 : vector<8x32xf32>
    %52 = arith.mulf %46, %51 : vector<8x32xf32>
    %c0_38 = arith.constant 0 : index
    %c0_39 = arith.constant 0 : index
    %53 = vector.load %arg14[%c0_38, %c0_39] : memref<32x32xf32, #tpu.memory_space<vmem>>, vector<32x32xf32>
    %c0_40 = arith.constant 0 : index
    %c0_41 = arith.constant 0 : index
    %54 = vector.load %arg15[%c0_40, %c0_41] : memref<1x32xf32, #tpu.memory_space<vmem>>, vector<1x32xf32>
    %cst_42 = arith.constant dense<0.000000e+00> : vector<8x32xf32>
    %55 = tpu.matmul %52, %53, %cst_42 {dimension_numbers = #tpu.dot_dimension_numbers<[1], [0], [0], [1], [0, 0, 1, 1], [], []>} : vector<8x32xf32>, vector<32x32xf32>, vector<8x32xf32> -> vector<8x32xf32>
    %56 = vector.broadcast %54 : vector<1x32xf32> to vector<8x32xf32>
    %57 = arith.addf %55, %56 : vector<8x32xf32>
    %cst_43 = arith.constant 0.908999979 : f32
    %58 = vector.broadcast %cst_43 : f32 to vector<8x32xf32>
    %59 = arith.mulf %58, %57 : vector<8x32xf32>
    %60 = arith.negf %57 : vector<8x32xf32>
    %61 = math.exp %60 : vector<8x32xf32>
    %cst_44 = arith.constant 1.000000e+00 : f32
    %62 = vector.broadcast %cst_44 : f32 to vector<8x32xf32>
    %63 = arith.addf %62, %61 : vector<8x32xf32>
    %64 = arith.divf %62, %63 : vector<8x32xf32>
    %65 = arith.mulf %59, %64 : vector<8x32xf32>
    %c0_45 = arith.constant 0 : index
    %c0_46 = arith.constant 0 : index
    %66 = vector.load %arg16[%c0_45, %c0_46] : memref<32x64xf32, #tpu.memory_space<vmem>>, vector<32x64xf32>
    %cst_47 = arith.constant dense<0.000000e+00> : vector<8x64xf32>
    %67 = tpu.matmul %65, %66, %cst_47 {dimension_numbers = #tpu.dot_dimension_numbers<[1], [0], [0], [1], [0, 0, 1, 1], [], []>} : vector<8x32xf32>, vector<32x64xf32>, vector<8x64xf32> -> vector<8x64xf32>
    %c0_48 = arith.constant 0 : index
    %c0_49 = arith.constant 0 : index
    %68 = vector.load %arg17[%c0_48, %c0_49] : memref<1x64xf32, #tpu.memory_space<vmem>>, vector<1x64xf32>
    %69 = vector.broadcast %68 : vector<1x64xf32> to vector<8x64xf32>
    %70 = arith.addf %67, %69 : vector<8x64xf32>
    %71 = math.tanh %70 : vector<8x64xf32>
    %c0_50 = arith.constant 0 : index
    %c0_51 = arith.constant 0 : index
    %c0_52 = arith.constant 0 : index
    %72 = vector.load %arg21[%c0_50, %c0_51, %c0_52] : memref<8x8x64xf32, #tpu.memory_space<vmem>>, vector<1x8x64xf32>
    %73 = vector.shape_cast %72 : vector<1x8x64xf32> to vector<8x64xf32>
    %74 = arith.mulf %71, %73 : vector<8x64xf32>
    %cst_53 = arith.constant dense<0.000000e+00> : vector<8x16xf32>
    %75 = tpu.matmul %74, %1, %cst_53 {dimension_numbers = #tpu.dot_dimension_numbers<[1], [0], [0], [1], [0, 0, 1, 1], [], []>} : vector<8x64xf32>, vector<64x16xf32>, vector<8x16xf32> -> vector<8x16xf32>
    %c0_i32 = arith.constant 0 : i32
    %76 = arith.index_cast %c0_i32 : i32 to index
    %77 = memref.load %arg1[%76] : memref<7xf32, #tpu.memory_space<smem>>
    %cst_54 = arith.constant 2.000000e+00 : f32
    %78 = vector.broadcast %cst_54 : f32 to vector<8x16xf32>
    %79 = arith.mulf %78, %38 : vector<8x16xf32>
    %80 = arith.subf %79, %38 : vector<8x16xf32>
    %81 = vector.broadcast %77 : f32 to vector<8x16xf32>
    %82 = arith.mulf %81, %75 : vector<8x16xf32>
    %83 = arith.addf %80, %82 : vector<8x16xf32>
    %c1_i32 = arith.constant 1 : i32
    %84 = arith.addi %c0_i32, %c1_i32 : i32
    %c0_55 = arith.constant 0 : index
    %c0_56 = arith.constant 0 : index
    %85 = vector.load %arg13[%c0_55, %c0_56] : memref<16x32xf32, #tpu.memory_space<vmem>>, vector<16x32xf32>
    %cst_57 = arith.constant dense<0.000000e+00> : vector<8x32xf32>
    %86 = tpu.matmul %83, %85, %cst_57 {dimension_numbers = #tpu.dot_dimension_numbers<[1], [0], [0], [1], [0, 0, 1, 1], [], []>} : vector<8x16xf32>, vector<16x32xf32>, vector<8x32xf32> -> vector<8x32xf32>
    %87 = arith.index_cast %84 : i32 to index
    %c0_58 = arith.constant 0 : index
    %c0_59 = arith.constant 0 : index
    %88 = vector.load %arg4[%87, %c0_58, %c0_59] : memref<8x1x32xf32, #tpu.memory_space<vmem>>, vector<1x1x32xf32>
    %89 = vector.shape_cast %88 : vector<1x1x32xf32> to vector<1x32xf32>
    %90 = vector.broadcast %89 : vector<1x32xf32> to vector<8x32xf32>
    %91 = arith.addf %86, %90 : vector<8x32xf32>
    %cst_60 = arith.constant 0.908999979 : f32
    %92 = vector.broadcast %cst_60 : f32 to vector<8x32xf32>
    %93 = arith.mulf %92, %91 : vector<8x32xf32>
    %94 = arith.negf %91 : vector<8x32xf32>
    %95 = math.exp %94 : vector<8x32xf32>
    %cst_61 = arith.constant 1.000000e+00 : f32
    %96 = vector.broadcast %cst_61 : f32 to vector<8x32xf32>
    %97 = arith.addf %96, %95 : vector<8x32xf32>
    %98 = arith.divf %96, %97 : vector<8x32xf32>
    %99 = arith.mulf %93, %98 : vector<8x32xf32>
    %c0_62 = arith.constant 0 : index
    %c0_63 = arith.constant 0 : index
    %100 = vector.load %arg14[%c0_62, %c0_63] : memref<32x32xf32, #tpu.memory_space<vmem>>, vector<32x32xf32>
    %c0_64 = arith.constant 0 : index
    %c0_65 = arith.constant 0 : index
    %101 = vector.load %arg15[%c0_64, %c0_65] : memref<1x32xf32, #tpu.memory_space<vmem>>, vector<1x32xf32>
    %cst_66 = arith.constant dense<0.000000e+00> : vector<8x32xf32>
    %102 = tpu.matmul %99, %100, %cst_66 {dimension_numbers = #tpu.dot_dimension_numbers<[1], [0], [0], [1], [0, 0, 1, 1], [], []>} : vector<8x32xf32>, vector<32x32xf32>, vector<8x32xf32> -> vector<8x32xf32>
    %103 = vector.broadcast %101 : vector<1x32xf32> to vector<8x32xf32>
    %104 = arith.addf %102, %103 : vector<8x32xf32>
    %cst_67 = arith.constant 0.908999979 : f32
    %105 = vector.broadcast %cst_67 : f32 to vector<8x32xf32>
    %106 = arith.mulf %105, %104 : vector<8x32xf32>
    %107 = arith.negf %104 : vector<8x32xf32>
    %108 = math.exp %107 : vector<8x32xf32>
    %cst_68 = arith.constant 1.000000e+00 : f32
    %109 = vector.broadcast %cst_68 : f32 to vector<8x32xf32>
    %110 = arith.addf %109, %108 : vector<8x32xf32>
    %111 = arith.divf %109, %110 : vector<8x32xf32>
    %112 = arith.mulf %106, %111 : vector<8x32xf32>
    %c0_69 = arith.constant 0 : index
    %c0_70 = arith.constant 0 : index
    %113 = vector.load %arg16[%c0_69, %c0_70] : memref<32x64xf32, #tpu.memory_space<vmem>>, vector<32x64xf32>
    %cst_71 = arith.constant dense<0.000000e+00> : vector<8x64xf32>
    %114 = tpu.matmul %112, %113, %cst_71 {dimension_numbers = #tpu.dot_dimension_numbers<[1], [0], [0], [1], [0, 0, 1, 1], [], []>} : vector<8x32xf32>, vector<32x64xf32>, vector<8x64xf32> -> vector<8x64xf32>
    %c0_72 = arith.constant 0 : index
    %c0_73 = arith.constant 0 : index
    %115 = vector.load %arg17[%c0_72, %c0_73] : memref<1x64xf32, #tpu.memory_space<vmem>>, vector<1x64xf32>
    %116 = vector.broadcast %115 : vector<1x64xf32> to vector<8x64xf32>
    %117 = arith.addf %114, %116 : vector<8x64xf32>
    %118 = math.tanh %117 : vector<8x64xf32>
    %119 = arith.index_cast %84 : i32 to index
    %c0_74 = arith.constant 0 : index
    %c0_75 = arith.constant 0 : index
    %120 = vector.load %arg21[%119, %c0_74, %c0_75] : memref<8x8x64xf32, #tpu.memory_space<vmem>>, vector<1x8x64xf32>
    %121 = vector.shape_cast %120 : vector<1x8x64xf32> to vector<8x64xf32>
    %122 = arith.mulf %118, %121 : vector<8x64xf32>
    %cst_76 = arith.constant dense<0.000000e+00> : vector<8x16xf32>
    %123 = tpu.matmul %122, %1, %cst_76 {dimension_numbers = #tpu.dot_dimension_numbers<[1], [0], [0], [1], [0, 0, 1, 1], [], []>} : vector<8x64xf32>, vector<64x16xf32>, vector<8x16xf32> -> vector<8x16xf32>
    %cst_77 = arith.constant 5.000000e-01 : f32
    %124 = arith.mulf %cst_77, %77 : f32
    %125 = arith.addf %75, %123 : vector<8x16xf32>
    %126 = vector.broadcast %124 : f32 to vector<8x16xf32>
    %127 = arith.mulf %126, %125 : vector<8x16xf32>
    %128 = arith.addf %38, %127 : vector<8x16xf32>
    %c1_i32_78 = arith.constant 1 : i32
    %129 = arith.index_cast %c1_i32_78 : i32 to index
    %130 = memref.load %arg1[%129] : memref<7xf32, #tpu.memory_space<smem>>
    %cst_79 = arith.constant 2.000000e+00 : f32
    %131 = vector.broadcast %cst_79 : f32 to vector<8x16xf32>
    %132 = arith.mulf %131, %128 : vector<8x16xf32>
    %133 = arith.subf %132, %83 : vector<8x16xf32>
    %134 = vector.broadcast %130 : f32 to vector<8x16xf32>
    %135 = arith.mulf %134, %123 : vector<8x16xf32>
    %136 = arith.addf %133, %135 : vector<8x16xf32>
    %c1_i32_80 = arith.constant 1 : i32
    %137 = arith.addi %c1_i32_78, %c1_i32_80 : i32
    %c0_81 = arith.constant 0 : index
    %c0_82 = arith.constant 0 : index
    %138 = vector.load %arg13[%c0_81, %c0_82] : memref<16x32xf32, #tpu.memory_space<vmem>>, vector<16x32xf32>
    %cst_83 = arith.constant dense<0.000000e+00> : vector<8x32xf32>
    %139 = tpu.matmul %136, %138, %cst_83 {dimension_numbers = #tpu.dot_dimension_numbers<[1], [0], [0], [1], [0, 0, 1, 1], [], []>} : vector<8x16xf32>, vector<16x32xf32>, vector<8x32xf32> -> vector<8x32xf32>
    %140 = arith.index_cast %137 : i32 to index
    %c0_84 = arith.constant 0 : index
    %c0_85 = arith.constant 0 : index
    %141 = vector.load %arg4[%140, %c0_84, %c0_85] : memref<8x1x32xf32, #tpu.memory_space<vmem>>, vector<1x1x32xf32>
    %142 = vector.shape_cast %141 : vector<1x1x32xf32> to vector<1x32xf32>
    %143 = vector.broadcast %142 : vector<1x32xf32> to vector<8x32xf32>
    %144 = arith.addf %139, %143 : vector<8x32xf32>
    %cst_86 = arith.constant 0.908999979 : f32
    %145 = vector.broadcast %cst_86 : f32 to vector<8x32xf32>
    %146 = arith.mulf %145, %144 : vector<8x32xf32>
    %147 = arith.negf %144 : vector<8x32xf32>
    %148 = math.exp %147 : vector<8x32xf32>
    %cst_87 = arith.constant 1.000000e+00 : f32
    %149 = vector.broadcast %cst_87 : f32 to vector<8x32xf32>
    %150 = arith.addf %149, %148 : vector<8x32xf32>
    %151 = arith.divf %149, %150 : vector<8x32xf32>
    %152 = arith.mulf %146, %151 : vector<8x32xf32>
    %c0_88 = arith.constant 0 : index
    %c0_89 = arith.constant 0 : index
    %153 = vector.load %arg14[%c0_88, %c0_89] : memref<32x32xf32, #tpu.memory_space<vmem>>, vector<32x32xf32>
    %c0_90 = arith.constant 0 : index
    %c0_91 = arith.constant 0 : index
    %154 = vector.load %arg15[%c0_90, %c0_91] : memref<1x32xf32, #tpu.memory_space<vmem>>, vector<1x32xf32>
    %cst_92 = arith.constant dense<0.000000e+00> : vector<8x32xf32>
    %155 = tpu.matmul %152, %153, %cst_92 {dimension_numbers = #tpu.dot_dimension_numbers<[1], [0], [0], [1], [0, 0, 1, 1], [], []>} : vector<8x32xf32>, vector<32x32xf32>, vector<8x32xf32> -> vector<8x32xf32>
    %156 = vector.broadcast %154 : vector<1x32xf32> to vector<8x32xf32>
    %157 = arith.addf %155, %156 : vector<8x32xf32>
    %cst_93 = arith.constant 0.908999979 : f32
    %158 = vector.broadcast %cst_93 : f32 to vector<8x32xf32>
    %159 = arith.mulf %158, %157 : vector<8x32xf32>
    %160 = arith.negf %157 : vector<8x32xf32>
    %161 = math.exp %160 : vector<8x32xf32>
    %cst_94 = arith.constant 1.000000e+00 : f32
    %162 = vector.broadcast %cst_94 : f32 to vector<8x32xf32>
    %163 = arith.addf %162, %161 : vector<8x32xf32>
    %164 = arith.divf %162, %163 : vector<8x32xf32>
    %165 = arith.mulf %159, %164 : vector<8x32xf32>
    %c0_95 = arith.constant 0 : index
    %c0_96 = arith.constant 0 : index
    %166 = vector.load %arg16[%c0_95, %c0_96] : memref<32x64xf32, #tpu.memory_space<vmem>>, vector<32x64xf32>
    %cst_97 = arith.constant dense<0.000000e+00> : vector<8x64xf32>
    %167 = tpu.matmul %165, %166, %cst_97 {dimension_numbers = #tpu.dot_dimension_numbers<[1], [0], [0], [1], [0, 0, 1, 1], [], []>} : vector<8x32xf32>, vector<32x64xf32>, vector<8x64xf32> -> vector<8x64xf32>
    %c0_98 = arith.constant 0 : index
    %c0_99 = arith.constant 0 : index
    %168 = vector.load %arg17[%c0_98, %c0_99] : memref<1x64xf32, #tpu.memory_space<vmem>>, vector<1x64xf32>
    %169 = vector.broadcast %168 : vector<1x64xf32> to vector<8x64xf32>
    %170 = arith.addf %167, %169 : vector<8x64xf32>
    %171 = math.tanh %170 : vector<8x64xf32>
    %172 = arith.index_cast %137 : i32 to index
    %c0_100 = arith.constant 0 : index
    %c0_101 = arith.constant 0 : index
    %173 = vector.load %arg21[%172, %c0_100, %c0_101] : memref<8x8x64xf32, #tpu.memory_space<vmem>>, vector<1x8x64xf32>
    %174 = vector.shape_cast %173 : vector<1x8x64xf32> to vector<8x64xf32>
    %175 = arith.mulf %171, %174 : vector<8x64xf32>
    %cst_102 = arith.constant dense<0.000000e+00> : vector<8x16xf32>
    %176 = tpu.matmul %175, %1, %cst_102 {dimension_numbers = #tpu.dot_dimension_numbers<[1], [0], [0], [1], [0, 0, 1, 1], [], []>} : vector<8x64xf32>, vector<64x16xf32>, vector<8x16xf32> -> vector<8x16xf32>
    %cst_103 = arith.constant 5.000000e-01 : f32
    %177 = arith.mulf %cst_103, %130 : f32
    %178 = arith.addf %123, %176 : vector<8x16xf32>
    %179 = vector.broadcast %177 : f32 to vector<8x16xf32>
    %180 = arith.mulf %179, %178 : vector<8x16xf32>
    %181 = arith.addf %128, %180 : vector<8x16xf32>
    %c2_i32 = arith.constant 2 : i32
    %182 = arith.index_cast %c2_i32 : i32 to index
    %183 = memref.load %arg1[%182] : memref<7xf32, #tpu.memory_space<smem>>
    %cst_104 = arith.constant 2.000000e+00 : f32
    %184 = vector.broadcast %cst_104 : f32 to vector<8x16xf32>
    %185 = arith.mulf %184, %181 : vector<8x16xf32>
    %186 = arith.subf %185, %136 : vector<8x16xf32>
    %187 = vector.broadcast %183 : f32 to vector<8x16xf32>
    %188 = arith.mulf %187, %176 : vector<8x16xf32>
    %189 = arith.addf %186, %188 : vector<8x16xf32>
    %c1_i32_105 = arith.constant 1 : i32
    %190 = arith.addi %c2_i32, %c1_i32_105 : i32
    %c0_106 = arith.constant 0 : index
    %c0_107 = arith.constant 0 : index
    %191 = vector.load %arg13[%c0_106, %c0_107] : memref<16x32xf32, #tpu.memory_space<vmem>>, vector<16x32xf32>
    %cst_108 = arith.constant dense<0.000000e+00> : vector<8x32xf32>
    %192 = tpu.matmul %189, %191, %cst_108 {dimension_numbers = #tpu.dot_dimension_numbers<[1], [0], [0], [1], [0, 0, 1, 1], [], []>} : vector<8x16xf32>, vector<16x32xf32>, vector<8x32xf32> -> vector<8x32xf32>
    %193 = arith.index_cast %190 : i32 to index
    %c0_109 = arith.constant 0 : index
    %c0_110 = arith.constant 0 : index
    %194 = vector.load %arg4[%193, %c0_109, %c0_110] : memref<8x1x32xf32, #tpu.memory_space<vmem>>, vector<1x1x32xf32>
    %195 = vector.shape_cast %194 : vector<1x1x32xf32> to vector<1x32xf32>
    %196 = vector.broadcast %195 : vector<1x32xf32> to vector<8x32xf32>
    %197 = arith.addf %192, %196 : vector<8x32xf32>
    %cst_111 = arith.constant 0.908999979 : f32
    %198 = vector.broadcast %cst_111 : f32 to vector<8x32xf32>
    %199 = arith.mulf %198, %197 : vector<8x32xf32>
    %200 = arith.negf %197 : vector<8x32xf32>
    %201 = math.exp %200 : vector<8x32xf32>
    %cst_112 = arith.constant 1.000000e+00 : f32
    %202 = vector.broadcast %cst_112 : f32 to vector<8x32xf32>
    %203 = arith.addf %202, %201 : vector<8x32xf32>
    %204 = arith.divf %202, %203 : vector<8x32xf32>
    %205 = arith.mulf %199, %204 : vector<8x32xf32>
    %c0_113 = arith.constant 0 : index
    %c0_114 = arith.constant 0 : index
    %206 = vector.load %arg14[%c0_113, %c0_114] : memref<32x32xf32, #tpu.memory_space<vmem>>, vector<32x32xf32>
    %c0_115 = arith.constant 0 : index
    %c0_116 = arith.constant 0 : index
    %207 = vector.load %arg15[%c0_115, %c0_116] : memref<1x32xf32, #tpu.memory_space<vmem>>, vector<1x32xf32>
    %cst_117 = arith.constant dense<0.000000e+00> : vector<8x32xf32>
    %208 = tpu.matmul %205, %206, %cst_117 {dimension_numbers = #tpu.dot_dimension_numbers<[1], [0], [0], [1], [0, 0, 1, 1], [], []>} : vector<8x32xf32>, vector<32x32xf32>, vector<8x32xf32> -> vector<8x32xf32>
    %209 = vector.broadcast %207 : vector<1x32xf32> to vector<8x32xf32>
    %210 = arith.addf %208, %209 : vector<8x32xf32>
    %cst_118 = arith.constant 0.908999979 : f32
    %211 = vector.broadcast %cst_118 : f32 to vector<8x32xf32>
    %212 = arith.mulf %211, %210 : vector<8x32xf32>
    %213 = arith.negf %210 : vector<8x32xf32>
    %214 = math.exp %213 : vector<8x32xf32>
    %cst_119 = arith.constant 1.000000e+00 : f32
    %215 = vector.broadcast %cst_119 : f32 to vector<8x32xf32>
    %216 = arith.addf %215, %214 : vector<8x32xf32>
    %217 = arith.divf %215, %216 : vector<8x32xf32>
    %218 = arith.mulf %212, %217 : vector<8x32xf32>
    %c0_120 = arith.constant 0 : index
    %c0_121 = arith.constant 0 : index
    %219 = vector.load %arg16[%c0_120, %c0_121] : memref<32x64xf32, #tpu.memory_space<vmem>>, vector<32x64xf32>
    %cst_122 = arith.constant dense<0.000000e+00> : vector<8x64xf32>
    %220 = tpu.matmul %218, %219, %cst_122 {dimension_numbers = #tpu.dot_dimension_numbers<[1], [0], [0], [1], [0, 0, 1, 1], [], []>} : vector<8x32xf32>, vector<32x64xf32>, vector<8x64xf32> -> vector<8x64xf32>
    %c0_123 = arith.constant 0 : index
    %c0_124 = arith.constant 0 : index
    %221 = vector.load %arg17[%c0_123, %c0_124] : memref<1x64xf32, #tpu.memory_space<vmem>>, vector<1x64xf32>
    %222 = vector.broadcast %221 : vector<1x64xf32> to vector<8x64xf32>
    %223 = arith.addf %220, %222 : vector<8x64xf32>
    %224 = math.tanh %223 : vector<8x64xf32>
    %225 = arith.index_cast %190 : i32 to index
    %c0_125 = arith.constant 0 : index
    %c0_126 = arith.constant 0 : index
    %226 = vector.load %arg21[%225, %c0_125, %c0_126] : memref<8x8x64xf32, #tpu.memory_space<vmem>>, vector<1x8x64xf32>
    %227 = vector.shape_cast %226 : vector<1x8x64xf32> to vector<8x64xf32>
    %228 = arith.mulf %224, %227 : vector<8x64xf32>
    %cst_127 = arith.constant dense<0.000000e+00> : vector<8x16xf32>
    %229 = tpu.matmul %228, %1, %cst_127 {dimension_numbers = #tpu.dot_dimension_numbers<[1], [0], [0], [1], [0, 0, 1, 1], [], []>} : vector<8x64xf32>, vector<64x16xf32>, vector<8x16xf32> -> vector<8x16xf32>
    %cst_128 = arith.constant 5.000000e-01 : f32
    %230 = arith.mulf %cst_128, %183 : f32
    %231 = arith.addf %176, %229 : vector<8x16xf32>
    %232 = vector.broadcast %230 : f32 to vector<8x16xf32>
    %233 = arith.mulf %232, %231 : vector<8x16xf32>
    %234 = arith.addf %181, %233 : vector<8x16xf32>
    %c3_i32 = arith.constant 3 : i32
    %235 = arith.index_cast %c3_i32 : i32 to index
    %236 = memref.load %arg1[%235] : memref<7xf32, #tpu.memory_space<smem>>
    %cst_129 = arith.constant 2.000000e+00 : f32
    %237 = vector.broadcast %cst_129 : f32 to vector<8x16xf32>
    %238 = arith.mulf %237, %234 : vector<8x16xf32>
    %239 = arith.subf %238, %189 : vector<8x16xf32>
    %240 = vector.broadcast %236 : f32 to vector<8x16xf32>
    %241 = arith.mulf %240, %229 : vector<8x16xf32>
    %242 = arith.addf %239, %241 : vector<8x16xf32>
    %c1_i32_130 = arith.constant 1 : i32
    %243 = arith.addi %c3_i32, %c1_i32_130 : i32
    %c0_131 = arith.constant 0 : index
    %c0_132 = arith.constant 0 : index
    %244 = vector.load %arg13[%c0_131, %c0_132] : memref<16x32xf32, #tpu.memory_space<vmem>>, vector<16x32xf32>
    %cst_133 = arith.constant dense<0.000000e+00> : vector<8x32xf32>
    %245 = tpu.matmul %242, %244, %cst_133 {dimension_numbers = #tpu.dot_dimension_numbers<[1], [0], [0], [1], [0, 0, 1, 1], [], []>} : vector<8x16xf32>, vector<16x32xf32>, vector<8x32xf32> -> vector<8x32xf32>
    %246 = arith.index_cast %243 : i32 to index
    %c0_134 = arith.constant 0 : index
    %c0_135 = arith.constant 0 : index
    %247 = vector.load %arg4[%246, %c0_134, %c0_135] : memref<8x1x32xf32, #tpu.memory_space<vmem>>, vector<1x1x32xf32>
    %248 = vector.shape_cast %247 : vector<1x1x32xf32> to vector<1x32xf32>
    %249 = vector.broadcast %248 : vector<1x32xf32> to vector<8x32xf32>
    %250 = arith.addf %245, %249 : vector<8x32xf32>
    %cst_136 = arith.constant 0.908999979 : f32
    %251 = vector.broadcast %cst_136 : f32 to vector<8x32xf32>
    %252 = arith.mulf %251, %250 : vector<8x32xf32>
    %253 = arith.negf %250 : vector<8x32xf32>
    %254 = math.exp %253 : vector<8x32xf32>
    %cst_137 = arith.constant 1.000000e+00 : f32
    %255 = vector.broadcast %cst_137 : f32 to vector<8x32xf32>
    %256 = arith.addf %255, %254 : vector<8x32xf32>
    %257 = arith.divf %255, %256 : vector<8x32xf32>
    %258 = arith.mulf %252, %257 : vector<8x32xf32>
    %c0_138 = arith.constant 0 : index
    %c0_139 = arith.constant 0 : index
    %259 = vector.load %arg14[%c0_138, %c0_139] : memref<32x32xf32, #tpu.memory_space<vmem>>, vector<32x32xf32>
    %c0_140 = arith.constant 0 : index
    %c0_141 = arith.constant 0 : index
    %260 = vector.load %arg15[%c0_140, %c0_141] : memref<1x32xf32, #tpu.memory_space<vmem>>, vector<1x32xf32>
    %cst_142 = arith.constant dense<0.000000e+00> : vector<8x32xf32>
    %261 = tpu.matmul %258, %259, %cst_142 {dimension_numbers = #tpu.dot_dimension_numbers<[1], [0], [0], [1], [0, 0, 1, 1], [], []>} : vector<8x32xf32>, vector<32x32xf32>, vector<8x32xf32> -> vector<8x32xf32>
    %262 = vector.broadcast %260 : vector<1x32xf32> to vector<8x32xf32>
    %263 = arith.addf %261, %262 : vector<8x32xf32>
    %cst_143 = arith.constant 0.908999979 : f32
    %264 = vector.broadcast %cst_143 : f32 to vector<8x32xf32>
    %265 = arith.mulf %264, %263 : vector<8x32xf32>
    %266 = arith.negf %263 : vector<8x32xf32>
    %267 = math.exp %266 : vector<8x32xf32>
    %cst_144 = arith.constant 1.000000e+00 : f32
    %268 = vector.broadcast %cst_144 : f32 to vector<8x32xf32>
    %269 = arith.addf %268, %267 : vector<8x32xf32>
    %270 = arith.divf %268, %269 : vector<8x32xf32>
    %271 = arith.mulf %265, %270 : vector<8x32xf32>
    %c0_145 = arith.constant 0 : index
    %c0_146 = arith.constant 0 : index
    %272 = vector.load %arg16[%c0_145, %c0_146] : memref<32x64xf32, #tpu.memory_space<vmem>>, vector<32x64xf32>
    %cst_147 = arith.constant dense<0.000000e+00> : vector<8x64xf32>
    %273 = tpu.matmul %271, %272, %cst_147 {dimension_numbers = #tpu.dot_dimension_numbers<[1], [0], [0], [1], [0, 0, 1, 1], [], []>} : vector<8x32xf32>, vector<32x64xf32>, vector<8x64xf32> -> vector<8x64xf32>
    %c0_148 = arith.constant 0 : index
    %c0_149 = arith.constant 0 : index
    %274 = vector.load %arg17[%c0_148, %c0_149] : memref<1x64xf32, #tpu.memory_space<vmem>>, vector<1x64xf32>
    %275 = vector.broadcast %274 : vector<1x64xf32> to vector<8x64xf32>
    %276 = arith.addf %273, %275 : vector<8x64xf32>
    %277 = math.tanh %276 : vector<8x64xf32>
    %278 = arith.index_cast %243 : i32 to index
    %c0_150 = arith.constant 0 : index
    %c0_151 = arith.constant 0 : index
    %279 = vector.load %arg21[%278, %c0_150, %c0_151] : memref<8x8x64xf32, #tpu.memory_space<vmem>>, vector<1x8x64xf32>
    %280 = vector.shape_cast %279 : vector<1x8x64xf32> to vector<8x64xf32>
    %281 = arith.mulf %277, %280 : vector<8x64xf32>
    %cst_152 = arith.constant dense<0.000000e+00> : vector<8x16xf32>
    %282 = tpu.matmul %281, %1, %cst_152 {dimension_numbers = #tpu.dot_dimension_numbers<[1], [0], [0], [1], [0, 0, 1, 1], [], []>} : vector<8x64xf32>, vector<64x16xf32>, vector<8x16xf32> -> vector<8x16xf32>
    %cst_153 = arith.constant 5.000000e-01 : f32
    %283 = arith.mulf %cst_153, %236 : f32
    %284 = arith.addf %229, %282 : vector<8x16xf32>
    %285 = vector.broadcast %283 : f32 to vector<8x16xf32>
    %286 = arith.mulf %285, %284 : vector<8x16xf32>
    %287 = arith.addf %234, %286 : vector<8x16xf32>
    %c4_i32 = arith.constant 4 : i32
    %288 = arith.index_cast %c4_i32 : i32 to index
    %289 = memref.load %arg1[%288] : memref<7xf32, #tpu.memory_space<smem>>
    %cst_154 = arith.constant 2.000000e+00 : f32
    %290 = vector.broadcast %cst_154 : f32 to vector<8x16xf32>
    %291 = arith.mulf %290, %287 : vector<8x16xf32>
    %292 = arith.subf %291, %242 : vector<8x16xf32>
    %293 = vector.broadcast %289 : f32 to vector<8x16xf32>
    %294 = arith.mulf %293, %282 : vector<8x16xf32>
    %295 = arith.addf %292, %294 : vector<8x16xf32>
    %c1_i32_155 = arith.constant 1 : i32
    %296 = arith.addi %c4_i32, %c1_i32_155 : i32
    %c0_156 = arith.constant 0 : index
    %c0_157 = arith.constant 0 : index
    %297 = vector.load %arg13[%c0_156, %c0_157] : memref<16x32xf32, #tpu.memory_space<vmem>>, vector<16x32xf32>
    %cst_158 = arith.constant dense<0.000000e+00> : vector<8x32xf32>
    %298 = tpu.matmul %295, %297, %cst_158 {dimension_numbers = #tpu.dot_dimension_numbers<[1], [0], [0], [1], [0, 0, 1, 1], [], []>} : vector<8x16xf32>, vector<16x32xf32>, vector<8x32xf32> -> vector<8x32xf32>
    %299 = arith.index_cast %296 : i32 to index
    %c0_159 = arith.constant 0 : index
    %c0_160 = arith.constant 0 : index
    %300 = vector.load %arg4[%299, %c0_159, %c0_160] : memref<8x1x32xf32, #tpu.memory_space<vmem>>, vector<1x1x32xf32>
    %301 = vector.shape_cast %300 : vector<1x1x32xf32> to vector<1x32xf32>
    %302 = vector.broadcast %301 : vector<1x32xf32> to vector<8x32xf32>
    %303 = arith.addf %298, %302 : vector<8x32xf32>
    %cst_161 = arith.constant 0.908999979 : f32
    %304 = vector.broadcast %cst_161 : f32 to vector<8x32xf32>
    %305 = arith.mulf %304, %303 : vector<8x32xf32>
    %306 = arith.negf %303 : vector<8x32xf32>
    %307 = math.exp %306 : vector<8x32xf32>
    %cst_162 = arith.constant 1.000000e+00 : f32
    %308 = vector.broadcast %cst_162 : f32 to vector<8x32xf32>
    %309 = arith.addf %308, %307 : vector<8x32xf32>
    %310 = arith.divf %308, %309 : vector<8x32xf32>
    %311 = arith.mulf %305, %310 : vector<8x32xf32>
    %c0_163 = arith.constant 0 : index
    %c0_164 = arith.constant 0 : index
    %312 = vector.load %arg14[%c0_163, %c0_164] : memref<32x32xf32, #tpu.memory_space<vmem>>, vector<32x32xf32>
    %c0_165 = arith.constant 0 : index
    %c0_166 = arith.constant 0 : index
    %313 = vector.load %arg15[%c0_165, %c0_166] : memref<1x32xf32, #tpu.memory_space<vmem>>, vector<1x32xf32>
    %cst_167 = arith.constant dense<0.000000e+00> : vector<8x32xf32>
    %314 = tpu.matmul %311, %312, %cst_167 {dimension_numbers = #tpu.dot_dimension_numbers<[1], [0], [0], [1], [0, 0, 1, 1], [], []>} : vector<8x32xf32>, vector<32x32xf32>, vector<8x32xf32> -> vector<8x32xf32>
    %315 = vector.broadcast %313 : vector<1x32xf32> to vector<8x32xf32>
    %316 = arith.addf %314, %315 : vector<8x32xf32>
    %cst_168 = arith.constant 0.908999979 : f32
    %317 = vector.broadcast %cst_168 : f32 to vector<8x32xf32>
    %318 = arith.mulf %317, %316 : vector<8x32xf32>
    %319 = arith.negf %316 : vector<8x32xf32>
    %320 = math.exp %319 : vector<8x32xf32>
    %cst_169 = arith.constant 1.000000e+00 : f32
    %321 = vector.broadcast %cst_169 : f32 to vector<8x32xf32>
    %322 = arith.addf %321, %320 : vector<8x32xf32>
    %323 = arith.divf %321, %322 : vector<8x32xf32>
    %324 = arith.mulf %318, %323 : vector<8x32xf32>
    %c0_170 = arith.constant 0 : index
    %c0_171 = arith.constant 0 : index
    %325 = vector.load %arg16[%c0_170, %c0_171] : memref<32x64xf32, #tpu.memory_space<vmem>>, vector<32x64xf32>
    %cst_172 = arith.constant dense<0.000000e+00> : vector<8x64xf32>
    %326 = tpu.matmul %324, %325, %cst_172 {dimension_numbers = #tpu.dot_dimension_numbers<[1], [0], [0], [1], [0, 0, 1, 1], [], []>} : vector<8x32xf32>, vector<32x64xf32>, vector<8x64xf32> -> vector<8x64xf32>
    %c0_173 = arith.constant 0 : index
    %c0_174 = arith.constant 0 : index
    %327 = vector.load %arg17[%c0_173, %c0_174] : memref<1x64xf32, #tpu.memory_space<vmem>>, vector<1x64xf32>
    %328 = vector.broadcast %327 : vector<1x64xf32> to vector<8x64xf32>
    %329 = arith.addf %326, %328 : vector<8x64xf32>
    %330 = math.tanh %329 : vector<8x64xf32>
    %331 = arith.index_cast %296 : i32 to index
    %c0_175 = arith.constant 0 : index
    %c0_176 = arith.constant 0 : index
    %332 = vector.load %arg21[%331, %c0_175, %c0_176] : memref<8x8x64xf32, #tpu.memory_space<vmem>>, vector<1x8x64xf32>
    %333 = vector.shape_cast %332 : vector<1x8x64xf32> to vector<8x64xf32>
    %334 = arith.mulf %330, %333 : vector<8x64xf32>
    %cst_177 = arith.constant dense<0.000000e+00> : vector<8x16xf32>
    %335 = tpu.matmul %334, %1, %cst_177 {dimension_numbers = #tpu.dot_dimension_numbers<[1], [0], [0], [1], [0, 0, 1, 1], [], []>} : vector<8x64xf32>, vector<64x16xf32>, vector<8x16xf32> -> vector<8x16xf32>
    %cst_178 = arith.constant 5.000000e-01 : f32
    %336 = arith.mulf %cst_178, %289 : f32
    %337 = arith.addf %282, %335 : vector<8x16xf32>
    %338 = vector.broadcast %336 : f32 to vector<8x16xf32>
    %339 = arith.mulf %338, %337 : vector<8x16xf32>
    %340 = arith.addf %287, %339 : vector<8x16xf32>
    %c5_i32 = arith.constant 5 : i32
    %341 = arith.index_cast %c5_i32 : i32 to index
    %342 = memref.load %arg1[%341] : memref<7xf32, #tpu.memory_space<smem>>
    %cst_179 = arith.constant 2.000000e+00 : f32
    %343 = vector.broadcast %cst_179 : f32 to vector<8x16xf32>
    %344 = arith.mulf %343, %340 : vector<8x16xf32>
    %345 = arith.subf %344, %295 : vector<8x16xf32>
    %346 = vector.broadcast %342 : f32 to vector<8x16xf32>
    %347 = arith.mulf %346, %335 : vector<8x16xf32>
    %348 = arith.addf %345, %347 : vector<8x16xf32>
    %c1_i32_180 = arith.constant 1 : i32
    %349 = arith.addi %c5_i32, %c1_i32_180 : i32
    %c0_181 = arith.constant 0 : index
    %c0_182 = arith.constant 0 : index
    %350 = vector.load %arg13[%c0_181, %c0_182] : memref<16x32xf32, #tpu.memory_space<vmem>>, vector<16x32xf32>
    %cst_183 = arith.constant dense<0.000000e+00> : vector<8x32xf32>
    %351 = tpu.matmul %348, %350, %cst_183 {dimension_numbers = #tpu.dot_dimension_numbers<[1], [0], [0], [1], [0, 0, 1, 1], [], []>} : vector<8x16xf32>, vector<16x32xf32>, vector<8x32xf32> -> vector<8x32xf32>
    %352 = arith.index_cast %349 : i32 to index
    %c0_184 = arith.constant 0 : index
    %c0_185 = arith.constant 0 : index
    %353 = vector.load %arg4[%352, %c0_184, %c0_185] : memref<8x1x32xf32, #tpu.memory_space<vmem>>, vector<1x1x32xf32>
    %354 = vector.shape_cast %353 : vector<1x1x32xf32> to vector<1x32xf32>
    %355 = vector.broadcast %354 : vector<1x32xf32> to vector<8x32xf32>
    %356 = arith.addf %351, %355 : vector<8x32xf32>
    %cst_186 = arith.constant 0.908999979 : f32
    %357 = vector.broadcast %cst_186 : f32 to vector<8x32xf32>
    %358 = arith.mulf %357, %356 : vector<8x32xf32>
    %359 = arith.negf %356 : vector<8x32xf32>
    %360 = math.exp %359 : vector<8x32xf32>
    %cst_187 = arith.constant 1.000000e+00 : f32
    %361 = vector.broadcast %cst_187 : f32 to vector<8x32xf32>
    %362 = arith.addf %361, %360 : vector<8x32xf32>
    %363 = arith.divf %361, %362 : vector<8x32xf32>
    %364 = arith.mulf %358, %363 : vector<8x32xf32>
    %c0_188 = arith.constant 0 : index
    %c0_189 = arith.constant 0 : index
    %365 = vector.load %arg14[%c0_188, %c0_189] : memref<32x32xf32, #tpu.memory_space<vmem>>, vector<32x32xf32>
    %c0_190 = arith.constant 0 : index
    %c0_191 = arith.constant 0 : index
    %366 = vector.load %arg15[%c0_190, %c0_191] : memref<1x32xf32, #tpu.memory_space<vmem>>, vector<1x32xf32>
    %cst_192 = arith.constant dense<0.000000e+00> : vector<8x32xf32>
    %367 = tpu.matmul %364, %365, %cst_192 {dimension_numbers = #tpu.dot_dimension_numbers<[1], [0], [0], [1], [0, 0, 1, 1], [], []>} : vector<8x32xf32>, vector<32x32xf32>, vector<8x32xf32> -> vector<8x32xf32>
    %368 = vector.broadcast %366 : vector<1x32xf32> to vector<8x32xf32>
    %369 = arith.addf %367, %368 : vector<8x32xf32>
    %cst_193 = arith.constant 0.908999979 : f32
    %370 = vector.broadcast %cst_193 : f32 to vector<8x32xf32>
    %371 = arith.mulf %370, %369 : vector<8x32xf32>
    %372 = arith.negf %369 : vector<8x32xf32>
    %373 = math.exp %372 : vector<8x32xf32>
    %cst_194 = arith.constant 1.000000e+00 : f32
    %374 = vector.broadcast %cst_194 : f32 to vector<8x32xf32>
    %375 = arith.addf %374, %373 : vector<8x32xf32>
    %376 = arith.divf %374, %375 : vector<8x32xf32>
    %377 = arith.mulf %371, %376 : vector<8x32xf32>
    %c0_195 = arith.constant 0 : index
    %c0_196 = arith.constant 0 : index
    %378 = vector.load %arg16[%c0_195, %c0_196] : memref<32x64xf32, #tpu.memory_space<vmem>>, vector<32x64xf32>
    %cst_197 = arith.constant dense<0.000000e+00> : vector<8x64xf32>
    %379 = tpu.matmul %377, %378, %cst_197 {dimension_numbers = #tpu.dot_dimension_numbers<[1], [0], [0], [1], [0, 0, 1, 1], [], []>} : vector<8x32xf32>, vector<32x64xf32>, vector<8x64xf32> -> vector<8x64xf32>
    %c0_198 = arith.constant 0 : index
    %c0_199 = arith.constant 0 : index
    %380 = vector.load %arg17[%c0_198, %c0_199] : memref<1x64xf32, #tpu.memory_space<vmem>>, vector<1x64xf32>
    %381 = vector.broadcast %380 : vector<1x64xf32> to vector<8x64xf32>
    %382 = arith.addf %379, %381 : vector<8x64xf32>
    %383 = math.tanh %382 : vector<8x64xf32>
    %384 = arith.index_cast %349 : i32 to index
    %c0_200 = arith.constant 0 : index
    %c0_201 = arith.constant 0 : index
    %385 = vector.load %arg21[%384, %c0_200, %c0_201] : memref<8x8x64xf32, #tpu.memory_space<vmem>>, vector<1x8x64xf32>
    %386 = vector.shape_cast %385 : vector<1x8x64xf32> to vector<8x64xf32>
    %387 = arith.mulf %383, %386 : vector<8x64xf32>
    %cst_202 = arith.constant dense<0.000000e+00> : vector<8x16xf32>
    %388 = tpu.matmul %387, %1, %cst_202 {dimension_numbers = #tpu.dot_dimension_numbers<[1], [0], [0], [1], [0, 0, 1, 1], [], []>} : vector<8x64xf32>, vector<64x16xf32>, vector<8x16xf32> -> vector<8x16xf32>
    %cst_203 = arith.constant 5.000000e-01 : f32
    %389 = arith.mulf %cst_203, %342 : f32
    %390 = arith.addf %335, %388 : vector<8x16xf32>
    %391 = vector.broadcast %389 : f32 to vector<8x16xf32>
    %392 = arith.mulf %391, %390 : vector<8x16xf32>
    %393 = arith.addf %340, %392 : vector<8x16xf32>
    %c6_i32 = arith.constant 6 : i32
    %394 = arith.index_cast %c6_i32 : i32 to index
    %395 = memref.load %arg1[%394] : memref<7xf32, #tpu.memory_space<smem>>
    %cst_204 = arith.constant 2.000000e+00 : f32
    %396 = vector.broadcast %cst_204 : f32 to vector<8x16xf32>
    %397 = arith.mulf %396, %393 : vector<8x16xf32>
    %398 = arith.subf %397, %348 : vector<8x16xf32>
    %399 = vector.broadcast %395 : f32 to vector<8x16xf32>
    %400 = arith.mulf %399, %388 : vector<8x16xf32>
    %401 = arith.addf %398, %400 : vector<8x16xf32>
    %c1_i32_205 = arith.constant 1 : i32
    %402 = arith.addi %c6_i32, %c1_i32_205 : i32
    %c0_206 = arith.constant 0 : index
    %c0_207 = arith.constant 0 : index
    %403 = vector.load %arg13[%c0_206, %c0_207] : memref<16x32xf32, #tpu.memory_space<vmem>>, vector<16x32xf32>
    %cst_208 = arith.constant dense<0.000000e+00> : vector<8x32xf32>
    %404 = tpu.matmul %401, %403, %cst_208 {dimension_numbers = #tpu.dot_dimension_numbers<[1], [0], [0], [1], [0, 0, 1, 1], [], []>} : vector<8x16xf32>, vector<16x32xf32>, vector<8x32xf32> -> vector<8x32xf32>
    %405 = arith.index_cast %402 : i32 to index
    %c0_209 = arith.constant 0 : index
    %c0_210 = arith.constant 0 : index
    %406 = vector.load %arg4[%405, %c0_209, %c0_210] : memref<8x1x32xf32, #tpu.memory_space<vmem>>, vector<1x1x32xf32>
    %407 = vector.shape_cast %406 : vector<1x1x32xf32> to vector<1x32xf32>
    %408 = vector.broadcast %407 : vector<1x32xf32> to vector<8x32xf32>
    %409 = arith.addf %404, %408 : vector<8x32xf32>
    %cst_211 = arith.constant 0.908999979 : f32
    %410 = vector.broadcast %cst_211 : f32 to vector<8x32xf32>
    %411 = arith.mulf %410, %409 : vector<8x32xf32>
    %412 = arith.negf %409 : vector<8x32xf32>
    %413 = math.exp %412 : vector<8x32xf32>
    %cst_212 = arith.constant 1.000000e+00 : f32
    %414 = vector.broadcast %cst_212 : f32 to vector<8x32xf32>
    %415 = arith.addf %414, %413 : vector<8x32xf32>
    %416 = arith.divf %414, %415 : vector<8x32xf32>
    %417 = arith.mulf %411, %416 : vector<8x32xf32>
    %c0_213 = arith.constant 0 : index
    %c0_214 = arith.constant 0 : index
    %418 = vector.load %arg14[%c0_213, %c0_214] : memref<32x32xf32, #tpu.memory_space<vmem>>, vector<32x32xf32>
    %c0_215 = arith.constant 0 : index
    %c0_216 = arith.constant 0 : index
    %419 = vector.load %arg15[%c0_215, %c0_216] : memref<1x32xf32, #tpu.memory_space<vmem>>, vector<1x32xf32>
    %cst_217 = arith.constant dense<0.000000e+00> : vector<8x32xf32>
    %420 = tpu.matmul %417, %418, %cst_217 {dimension_numbers = #tpu.dot_dimension_numbers<[1], [0], [0], [1], [0, 0, 1, 1], [], []>} : vector<8x32xf32>, vector<32x32xf32>, vector<8x32xf32> -> vector<8x32xf32>
    %421 = vector.broadcast %419 : vector<1x32xf32> to vector<8x32xf32>
    %422 = arith.addf %420, %421 : vector<8x32xf32>
    %cst_218 = arith.constant 0.908999979 : f32
    %423 = vector.broadcast %cst_218 : f32 to vector<8x32xf32>
    %424 = arith.mulf %423, %422 : vector<8x32xf32>
    %425 = arith.negf %422 : vector<8x32xf32>
    %426 = math.exp %425 : vector<8x32xf32>
    %cst_219 = arith.constant 1.000000e+00 : f32
    %427 = vector.broadcast %cst_219 : f32 to vector<8x32xf32>
    %428 = arith.addf %427, %426 : vector<8x32xf32>
    %429 = arith.divf %427, %428 : vector<8x32xf32>
    %430 = arith.mulf %424, %429 : vector<8x32xf32>
    %c0_220 = arith.constant 0 : index
    %c0_221 = arith.constant 0 : index
    %431 = vector.load %arg16[%c0_220, %c0_221] : memref<32x64xf32, #tpu.memory_space<vmem>>, vector<32x64xf32>
    %cst_222 = arith.constant dense<0.000000e+00> : vector<8x64xf32>
    %432 = tpu.matmul %430, %431, %cst_222 {dimension_numbers = #tpu.dot_dimension_numbers<[1], [0], [0], [1], [0, 0, 1, 1], [], []>} : vector<8x32xf32>, vector<32x64xf32>, vector<8x64xf32> -> vector<8x64xf32>
    %c0_223 = arith.constant 0 : index
    %c0_224 = arith.constant 0 : index
    %433 = vector.load %arg17[%c0_223, %c0_224] : memref<1x64xf32, #tpu.memory_space<vmem>>, vector<1x64xf32>
    %434 = vector.broadcast %433 : vector<1x64xf32> to vector<8x64xf32>
    %435 = arith.addf %432, %434 : vector<8x64xf32>
    %436 = math.tanh %435 : vector<8x64xf32>
    %437 = arith.index_cast %402 : i32 to index
    %c0_225 = arith.constant 0 : index
    %c0_226 = arith.constant 0 : index
    %438 = vector.load %arg21[%437, %c0_225, %c0_226] : memref<8x8x64xf32, #tpu.memory_space<vmem>>, vector<1x8x64xf32>
    %439 = vector.shape_cast %438 : vector<1x8x64xf32> to vector<8x64xf32>
    %440 = arith.mulf %436, %439 : vector<8x64xf32>
    %cst_227 = arith.constant dense<0.000000e+00> : vector<8x16xf32>
    %441 = tpu.matmul %440, %1, %cst_227 {dimension_numbers = #tpu.dot_dimension_numbers<[1], [0], [0], [1], [0, 0, 1, 1], [], []>} : vector<8x64xf32>, vector<64x16xf32>, vector<8x16xf32> -> vector<8x16xf32>
    %cst_228 = arith.constant 5.000000e-01 : f32
    %442 = arith.mulf %cst_228, %395 : f32
    %443 = arith.addf %388, %441 : vector<8x16xf32>
    %444 = vector.broadcast %442 : f32 to vector<8x16xf32>
    %445 = arith.mulf %444, %443 : vector<8x16xf32>
    %446 = arith.addf %393, %445 : vector<8x16xf32>
    %c7_i32 = arith.constant 7 : i32
    %c0_229 = arith.constant 0 : index
    %c0_230 = arith.constant 0 : index
    %447 = vector.load %arg18[%c0_229, %c0_230] : memref<1x16xf32, #tpu.memory_space<vmem>>, vector<1x16xf32>
    %448 = vector.broadcast %447 : vector<1x16xf32> to vector<8x16xf32>
    %449 = arith.mulf %446, %448 : vector<8x16xf32>
    %cst_231 = arith.constant dense<0.000000e+00> : vector<8xf32>
    %450 = vector.multi_reduction <add>, %449, %cst_231 [1] : vector<8x16xf32> to vector<8xf32>
    %451 = vector.shape_cast %450 : vector<8xf32> to vector<8x1xf32>
    %c0_232 = arith.constant 0 : index
    %c0_233 = arith.constant 0 : index
    %452 = vector.load %arg19[%c0_232, %c0_233] : memref<1x1xf32, #tpu.memory_space<vmem>>, vector<1x1xf32>
    %453 = vector.broadcast %452 : vector<1x1xf32> to vector<8x1xf32>
    %454 = arith.addf %451, %453 : vector<8x1xf32>
    %c0_234 = arith.constant 0 : index
    %c0_235 = arith.constant 0 : index
    %455 = vector.load %arg20[%c0_234, %c0_235] : memref<8x1xf32, #tpu.memory_space<vmem>>, vector<8x1xf32>
    tpu.vector_store %arg20[%c0_234, %c0_235], %454 {strides = array<i32>} : memref<8x1xf32, #tpu.memory_space<vmem>>, vector<8x1xf32>,
    return
  }
  func.func @transform_0(%arg0: i32) -> i32 {
    %c0_i32 = arith.constant 0 : i32
    %c0_i32_0 = arith.constant 0 : i32
    return %c0_i32 : i32
  }
  func.func @transform_1(%arg0: i32) -> (i32, i32) {
    %c0_i32 = arith.constant 0 : i32
    %c0_i32_0 = arith.constant 0 : i32
    return %arg0, %c0_i32 : i32, i32
  }
  func.func @transform_2(%arg0: i32) -> (i32, i32, i32) {
    %c0_i32 = arith.constant 0 : i32
    %c0_i32_0 = arith.constant 0 : i32
    %c0_i32_1 = arith.constant 0 : i32
    return %c0_i32, %arg0, %c0_i32_0 : i32, i32, i32
  }
  func.func @transform_3(%arg0: i32) -> (i32, i32, i32) {
    %c0_i32 = arith.constant 0 : i32
    %c0_i32_0 = arith.constant 0 : i32
    %c0_i32_1 = arith.constant 0 : i32
    %c0_i32_2 = arith.constant 0 : i32
    return %c0_i32, %c0_i32_0, %c0_i32_1 : i32, i32, i32
  }
  func.func @transform_4(%arg0: i32) -> (i32, i32) {
    %c0_i32 = arith.constant 0 : i32
    %c0_i32_0 = arith.constant 0 : i32
    %c0_i32_1 = arith.constant 0 : i32
    return %c0_i32, %c0_i32_0 : i32, i32
  }
  func.func @transform_5(%arg0: i32) -> (i32, i32) {
    %c0_i32 = arith.constant 0 : i32
    %c0_i32_0 = arith.constant 0 : i32
    %c0_i32_1 = arith.constant 0 : i32
    return %c0_i32, %c0_i32_0 : i32, i32
  }
  func.func @transform_6(%arg0: i32) -> (i32, i32) {
    %c0_i32 = arith.constant 0 : i32
    %c0_i32_0 = arith.constant 0 : i32
    %c0_i32_1 = arith.constant 0 : i32
    return %c0_i32, %c0_i32_0 : i32, i32
  }
  func.func @transform_7(%arg0: i32) -> (i32, i32) {
    %c0_i32 = arith.constant 0 : i32
    %c0_i32_0 = arith.constant 0 : i32
    %c0_i32_1 = arith.constant 0 : i32
    return %c0_i32, %c0_i32_0 : i32, i32
  }
  func.func @transform_8(%arg0: i32) -> (i32, i32) {
    %c0_i32 = arith.constant 0 : i32
    %c0_i32_0 = arith.constant 0 : i32
    %c0_i32_1 = arith.constant 0 : i32
    return %c0_i32, %c0_i32_0 : i32, i32
  }
  func.func @transform_9(%arg0: i32) -> (i32, i32) {
    %c0_i32 = arith.constant 0 : i32
    %c0_i32_0 = arith.constant 0 : i32
    %c0_i32_1 = arith.constant 0 : i32
    return %c0_i32, %c0_i32_0 : i32, i32
  }
  func.func @transform_10(%arg0: i32) -> (i32, i32) {
    %c0_i32 = arith.constant 0 : i32
    %c0_i32_0 = arith.constant 0 : i32
    %c0_i32_1 = arith.constant 0 : i32
    return %c0_i32, %c0_i32_0 : i32, i32
  }
  func.func @transform_11(%arg0: i32) -> (i32, i32) {
    %c0_i32 = arith.constant 0 : i32
    %c0_i32_0 = arith.constant 0 : i32
    %c0_i32_1 = arith.constant 0 : i32
    return %c0_i32, %c0_i32_0 : i32, i32
  }
  func.func @transform_12(%arg0: i32) -> (i32, i32) {
    %c0_i32 = arith.constant 0 : i32
    %c0_i32_0 = arith.constant 0 : i32
    %c0_i32_1 = arith.constant 0 : i32
    return %c0_i32, %c0_i32_0 : i32, i32
  }
  func.func @transform_13(%arg0: i32) -> (i32, i32) {
    %c0_i32 = arith.constant 0 : i32
    %c0_i32_0 = arith.constant 0 : i32
    %c0_i32_1 = arith.constant 0 : i32
    return %c0_i32, %c0_i32_0 : i32, i32
  }
  func.func @transform_14(%arg0: i32) -> (i32, i32) {
    %c0_i32 = arith.constant 0 : i32
    %c0_i32_0 = arith.constant 0 : i32
    %c0_i32_1 = arith.constant 0 : i32
    return %c0_i32, %c0_i32_0 : i32, i32
  }
  func.func @transform_15(%arg0: i32) -> (i32, i32) {
    %c0_i32 = arith.constant 0 : i32
    %c0_i32_0 = arith.constant 0 : i32
    %c0_i32_1 = arith.constant 0 : i32
    return %c0_i32, %c0_i32_0 : i32, i32
  }
  func.func @transform_16(%arg0: i32) -> (i32, i32) {
    %c0_i32 = arith.constant 0 : i32
    %c0_i32_0 = arith.constant 0 : i32
    %c0_i32_1 = arith.constant 0 : i32
    return %c0_i32, %c0_i32_0 : i32, i32
  }
  func.func @transform_17(%arg0: i32) -> (i32, i32) {
    %c0_i32 = arith.constant 0 : i32
    %c0_i32_0 = arith.constant 0 : i32
    %c0_i32_1 = arith.constant 0 : i32
    return %c0_i32, %c0_i32_0 : i32, i32
  }
  func.func @transform_18(%arg0: i32) -> (i32, i32) {
    %c0_i32 = arith.constant 0 : i32
    %c0_i32_0 = arith.constant 0 : i32
    %c0_i32_1 = arith.constant 0 : i32
    return %c0_i32, %c0_i32_0 : i32, i32
  }
  func.func @transform_19(%arg0: i32) -> (i32, i32) {
    %c0_i32 = arith.constant 0 : i32
    %c0_i32_0 = arith.constant 0 : i32
    return %arg0, %c0_i32 : i32, i32
  }
}

</mosaic_0001>

<llo_original>
// kernel: tpu_custom_call.1
$region0: #{tpu_custom_call.1}
  #allocation0 [shape = 'u32[]', space=smem, size = 0x4, offset = 0x4, fixed_abs, tag = 'smem constant byte address 0x4 - core index']
  #allocation1 [shape = 'u32[144,128]{1,0:T(1,128)}', space=vmem, size = 0x12000, scoped, tag = 'internal scratch']
  #allocation2 [shape = 'f32[8,8,64]{2,1,0:T(8,128)}', space=vmem, size = 0x8000, scoped, tag = 'scratch operand']
  #allocation3 [shape = 'f32[1,1]{1,0:T(1,128)S(1)}', space=vmem, size = 0x200, scoped, tag = 'scoped memory for tpu_custom_call.1']
  %s0 = inlined_call_operand.vmem [shape: f32[7], index: 0, kind: input, shape index: {}]
  %s1 = inlined_call_operand.vmem [shape: f32[8,4], index: 1, kind: input, shape index: {}]
  %s2 = inlined_call_operand.vmem [shape: f32[8,8,4], index: 2, kind: input, shape index: {}]
  %s3 = inlined_call_operand.vmem [shape: f32[8,1,32], index: 3, kind: input, shape index: {}]
  %s4 = inlined_call_operand.vmem [shape: f32[4,64], index: 4, kind: input, shape index: {}]
  %s5 = inlined_call_operand.vmem [shape: f32[64,16], index: 5, kind: input, shape index: {}]
  %s6 = inlined_call_operand.vmem [shape: f32[4,32], index: 6, kind: input, shape index: {}]
  %s7 = inlined_call_operand.vmem [shape: f32[1,32], index: 7, kind: input, shape index: {}]
  %s8 = inlined_call_operand.vmem [shape: f32[32,32], index: 8, kind: input, shape index: {}]
  %s9 = inlined_call_operand.vmem [shape: f32[1,32], index: 9, kind: input, shape index: {}]
  %s10 = inlined_call_operand.vmem [shape: f32[32,16], index: 10, kind: input, shape index: {}]
  %s11 = inlined_call_operand.vmem [shape: f32[1,16], index: 11, kind: input, shape index: {}]
  %s12 = inlined_call_operand.vmem [shape: f32[16,32], index: 12, kind: input, shape index: {}]
  %s13 = inlined_call_operand.vmem [shape: f32[32,32], index: 13, kind: input, shape index: {}]
  %s14 = inlined_call_operand.vmem [shape: f32[1,32], index: 14, kind: input, shape index: {}]
  %s15 = inlined_call_operand.vmem [shape: f32[32,64], index: 15, kind: input, shape index: {}]
  %s16 = inlined_call_operand.vmem [shape: f32[1,64], index: 16, kind: input, shape index: {}]
  %s17 = inlined_call_operand.vmem [shape: f32[1,16], index: 17, kind: input, shape index: {}]
  %s18 = inlined_call_operand.<no memory space> [shape: f32[1,1], index: 18, kind: input, shape index: {}]
  %s19 = inlined_call_operand.vmem [shape: f32[8,1], index: 19, kind: output, shape index: {}]
  %s20 = sld [smem:[#allocation0]]
  $region90: #{tpu_custom_call.1} parent=0
    _
  %s22 = ssub.s32 1, %s20
  %s23 = scalar_select 0, %s22, %s20
  %v24 = vstv %s18
  %25 = vst [vmem:[#allocation3] sm:$0x1] %v24
  $region1: #{tpu_custom_call.1} parent=0
    #allocation4 [shape = 'u8[512]{0}', space=smem, size = 0x200, scoped, tag = 'input window, operand 0, single buffered']
    #allocation5 [shape = 's32[1]{0}', space=sflag, size = 0x4, scoped, tag = 'scoped memory for tpu_custom_call.1']
    %26 = vsyncpa [#allocation5], 0
    // Predicated region
    $region2: #{tpu_custom_call.1} parent=1 // pred_check
      _
    $region3: #{tpu_custom_call.1} parent=1 // pred_check_branch
      %28 = sbr.rel (0) target = $region5
    $region4: #{tpu_custom_call.1} parent=1 // pred_region
      %s30 = ssub.s32 16, 16
      %31 = vsyncadd [#allocation5], %s30
      %s33 = sshll.u32 %s0, 4
      %s34 = int_to_ptr.vmem [resolvable:$true] %s33
      %36 = dma.vmem_to_smem %s34, 16, [#allocation4], [#allocation5]
    $region5: #{tpu_custom_call.1} parent=1 // pred_fallthru
      _
    // Predicated region
    $region6: #{tpu_custom_call.1} parent=1 // pred_check
      _
    $region7: #{tpu_custom_call.1} parent=1 // pred_check_branch
      %38 = sbr.rel (0) target = $region9
    $region8: #{tpu_custom_call.1} parent=1 // pred_region
      _
    $region9: #{tpu_custom_call.1} parent=1 // pred_fallthru
      _
    // Predicated region
    $region10: #{tpu_custom_call.1} parent=1 // pred_check
      _
    $region11: #{tpu_custom_call.1} parent=1 // pred_check_branch
      %40 = sbr.rel (0) target = $region13
    $region12: #{tpu_custom_call.1} parent=1 // pred_region
      _
    $region13: #{tpu_custom_call.1} parent=1 // pred_fallthru
      _
    // Predicated region
    $region14: #{tpu_custom_call.1} parent=1 // pred_check
      _
    $region15: #{tpu_custom_call.1} parent=1 // pred_check_branch
      %42 = sbr.rel (0) target = $region17
    $region16: #{tpu_custom_call.1} parent=1 // pred_region
      _
    $region17: #{tpu_custom_call.1} parent=1 // pred_fallthru
      _
    // Predicated region
    $region18: #{tpu_custom_call.1} parent=1 // pred_check
      _
    $region19: #{tpu_custom_call.1} parent=1 // pred_check_branch
      %44 = sbr.rel (0) target = $region21
    $region20: #{tpu_custom_call.1} parent=1 // pred_region
      _
    $region21: #{tpu_custom_call.1} parent=1 // pred_fallthru
      _
    // Predicated region
    $region22: #{tpu_custom_call.1} parent=1 // pred_check
      _
    $region23: #{tpu_custom_call.1} parent=1 // pred_check_branch
      %46 = sbr.rel (0) target = $region25
    $region24: #{tpu_custom_call.1} parent=1 // pred_region
      _
    $region25: #{tpu_custom_call.1} parent=1 // pred_fallthru
      _
    // Predicated region
    $region26: #{tpu_custom_call.1} parent=1 // pred_check
      _
    $region27: #{tpu_custom_call.1} parent=1 // pred_check_branch
      %48 = sbr.rel (0) target = $region29
    $region28: #{tpu_custom_call.1} parent=1 // pred_region
      _
    $region29: #{tpu_custom_call.1} parent=1 // pred_fallthru
      _
    // Predicated region
    $region30: #{tpu_custom_call.1} parent=1 // pred_check
      _
    $region31: #{tpu_custom_call.1} parent=1 // pred_check_branch
      %50 = sbr.rel (0) target = $region33
    $region32: #{tpu_custom_call.1} parent=1 // pred_region
      _
    $region33: #{tpu_custom_call.1} parent=1 // pred_fallthru
      _
    // Predicated region
    $region34: #{tpu_custom_call.1} parent=1 // pred_check
      _
    $region35: #{tpu_custom_call.1} parent=1 // pred_check_branch
      %52 = sbr.rel (0) target = $region37
    $region36: #{tpu_custom_call.1} parent=1 // pred_region
      _
    $region37: #{tpu_custom_call.1} parent=1 // pred_fallthru
      _
    // Predicated region
    $region38: #{tpu_custom_call.1} parent=1 // pred_check
      _
    $region39: #{tpu_custom_call.1} parent=1 // pred_check_branch
      %54 = sbr.rel (0) target = $region41
    $region40: #{tpu_custom_call.1} parent=1 // pred_region
      _
    $region41: #{tpu_custom_call.1} parent=1 // pred_fallthru
      _
    // Predicated region
    $region42: #{tpu_custom_call.1} parent=1 // pred_check
      _
    $region43: #{tpu_custom_call.1} parent=1 // pred_check_branch
      %56 = sbr.rel (0) target = $region45
    $region44: #{tpu_custom_call.1} parent=1 // pred_region
      _
    $region45: #{tpu_custom_call.1} parent=1 // pred_fallthru
      _
    // Predicated region
    $region46: #{tpu_custom_call.1} parent=1 // pred_check
      _
    $region47: #{tpu_custom_call.1} parent=1 // pred_check_branch
      %58 = sbr.rel (0) target = $region49
    $region48: #{tpu_custom_call.1} parent=1 // pred_region
      _
    $region49: #{tpu_custom_call.1} parent=1 // pred_fallthru
      _
    // Predicated region
    $region50: #{tpu_custom_call.1} parent=1 // pred_check
      _
    $region51: #{tpu_custom_call.1} parent=1 // pred_check_branch
      %60 = sbr.rel (0) target = $region53
    $region52: #{tpu_custom_call.1} parent=1 // pred_region
      _
    $region53: #{tpu_custom_call.1} parent=1 // pred_fallthru
      _
    // Predicated region
    $region54: #{tpu_custom_call.1} parent=1 // pred_check
      _
    $region55: #{tpu_custom_call.1} parent=1 // pred_check_branch
      %62 = sbr.rel (0) target = $region57
    $region56: #{tpu_custom_call.1} parent=1 // pred_region
      _
    $region57: #{tpu_custom_call.1} parent=1 // pred_fallthru
      _
    // Predicated region
    $region58: #{tpu_custom_call.1} parent=1 // pred_check
      _
    $region59: #{tpu_custom_call.1} parent=1 // pred_check_branch
      %64 = sbr.rel (0) target = $region61
    $region60: #{tpu_custom_call.1} parent=1 // pred_region
      _
    $region61: #{tpu_custom_call.1} parent=1 // pred_fallthru
      _
    // Predicated region
    $region62: #{tpu_custom_call.1} parent=1 // pred_check
      _
    $region63: #{tpu_custom_call.1} parent=1 // pred_check_branch
      %66 = sbr.rel (0) target = $region65
    $region64: #{tpu_custom_call.1} parent=1 // pred_region
      _
    $region65: #{tpu_custom_call.1} parent=1 // pred_fallthru
      _
    // Predicated region
    $region66: #{tpu_custom_call.1} parent=1 // pred_check
      _
    $region67: #{tpu_custom_call.1} parent=1 // pred_check_branch
      %68 = sbr.rel (0) target = $region69
    $region68: #{tpu_custom_call.1} parent=1 // pred_region
      _
    $region69: #{tpu_custom_call.1} parent=1 // pred_fallthru
      _
    // Predicated region
    $region70: #{tpu_custom_call.1} parent=1 // pred_check
      _
    $region71: #{tpu_custom_call.1} parent=1 // pred_check_branch
      %70 = sbr.rel (0) target = $region73
    $region72: #{tpu_custom_call.1} parent=1 // pred_region
      _
    $region73: #{tpu_custom_call.1} parent=1 // pred_fallthru
      _
    // Predicated region
    $region74: #{tpu_custom_call.1} parent=1 // pred_check
      _
    $region75: #{tpu_custom_call.1} parent=1 // pred_check_branch
      %72 = sbr.rel (0) target = $region77
    $region76: #{tpu_custom_call.1} parent=1 // pred_region
      _
    $region77: #{tpu_custom_call.1} parent=1 // pred_fallthru
      _
    // Predicated region
    $region78: #{tpu_custom_call.1} parent=1 // pred_check
      _
    $region79: #{tpu_custom_call.1} parent=1 // pred_check_branch
      %74 = sbr.rel (0) target = $region81
    $region80: #{tpu_custom_call.1} parent=1 // pred_region
      %75 = dma.done [#allocation5], 16
    $region81: #{tpu_custom_call.1} parent=1 // pred_fallthru
      _
    %76 = sfence
    %v77 = vld [vmem:[%s4] sm:$0xf]
    %v78 = vld [vmem:[%s5] sm:$0xff]
    %v79 = vld [vmem:[%s5 + $0x8] sm:$0xff]
    %v80 = vld [vmem:[%s5 + $0x10] sm:$0xff]
    %v81 = vld [vmem:[%s5 + $0x18] sm:$0xff]
    %v82 = vld [vmem:[%s5 + $0x20] sm:$0xff]
    %v83 = vld [vmem:[%s5 + $0x28] sm:$0xff]
    %v84 = vld [vmem:[%s5 + $0x30] sm:$0xff]
    %v85 = vld [vmem:[%s5 + $0x38] sm:$0xff]
    %v86 = vld [vmem:[%s2] sm:$0xff]
    %v87 = vld [vmem:[%s2 + $0x8] sm:$0xff]
    %v88 = vld [vmem:[%s2 + $0x10] sm:$0xff]
    %v89 = vld [vmem:[%s2 + $0x18] sm:$0xff]
    %v90 = vld [vmem:[%s2 + $0x20] sm:$0xff]
    %v91 = vld [vmem:[%s2 + $0x28] sm:$0xff]
    %v92 = vld [vmem:[%s2 + $0x30] sm:$0xff]
    %v93 = vld [vmem:[%s2 + $0x38] sm:$0xff]
    %vm94 = vcmask 31744
    %v96 = vsel %vm94, %v86, 0
    %v99 = vsel %vm94, %v87, 0
    %v102 = vsel %vm94, %v88, 0
    %v105 = vsel %vm94, %v89, 0
    %v108 = vsel %vm94, %v90, 0
    %v111 = vsel %vm94, %v91, 0
    %v114 = vsel %vm94, %v92, 0
    %v117 = vsel %vm94, %v93, 0
    %vm119 = vcmask 1043456
    %v121 = vsel %vm119, %v77, 0
    %123 = vmatprep.subr.mxu0 0.0
    %124 = vmatpush1.msra.mxu0 %v121
    %125 = vmatprep.subr.mxu0 0.0
    %126 = vmatpush1.msra.mxu0 0.0
    %127 = vmatprep.subr.mxu0 0.0
    %128 = vmatpush1.msra.mxu0 0.0
    %129 = vmatprep.subr.mxu0 0.0
    %130 = vmatpush1.msra.mxu0 0.0
    %131 = vmatprep.subr.mxu0 0.0
    %132 = vmatpush1.msra.mxu0 0.0
    %133 = vmatprep.subr.mxu0 0.0
    %134 = vmatpush1.msra.mxu0 0.0
    %135 = vmatprep.subr.mxu0 0.0
    %136 = vmatpush1.msra.mxu0 0.0
    %137 = vmatprep.subr.mxu0 0.0
    %138 = vmatpush1.msra.mxu0 0.0
    %139 = vmatprep.subr.mxu0 0.0
    %140 = vmatpush1.msra.mxu0 0.0
    %141 = vmatprep.subr.mxu0 0.0
    %142 = vmatpush1.msra.mxu0 0.0
    %143 = vmatprep.subr.mxu0 0.0
    %144 = vmatpush1.msra.mxu0 0.0
    %145 = vmatprep.subr.mxu0 0.0
    %146 = vmatpush1.msra.mxu0 0.0
    %147 = vmatprep.subr.mxu0 0.0
    %148 = vmatpush1.msra.mxu0 0.0
    %149 = vmatprep.subr.mxu0 0.0
    %150 = vmatpush1.msra.mxu0 0.0
    %151 = vmatprep.subr.mxu0 0.0
    %152 = vmatpush1.msra.mxu0 0.0
    %153 = vmatprep.subr.mxu0 0.0
    %154 = vmatpush1.msra.mxu0 0.0
    %155 = vmatprep.subr.mxu0 0.0
    %156 = vmatpush1.msra.mxu0 0.0
    %157 = vmatprep.subr.mxu0 0.0
    %158 = vmatpush1.msra.mxu0 0.0
    %159 = vmatprep.subr.mxu0 0.0
    %160 = vmatpush1.msra.mxu0 0.0
    %161 = vmatprep.subr.mxu0 0.0
    %162 = vmatpush1.msra.mxu0 0.0
    %163 = vmatprep.subr.mxu0 0.0
    %164 = vmatpush1.msra.mxu0 0.0
    %165 = vmatprep.subr.mxu0 0.0
    %166 = vmatpush1.msra.mxu0 0.0
    %167 = vmatprep.subr.mxu0 0.0
    %168 = vmatpush1.msra.mxu0 0.0
    %169 = vmatprep.subr.mxu0 0.0
    %170 = vmatpush1.msra.mxu0 0.0
    %171 = vmatprep.subr.mxu0 0.0
    %172 = vmatpush1.msra.mxu0 0.0
    %173 = vmatprep.subr.mxu0 0.0
    %174 = vmatpush1.msra.mxu0 0.0
    %175 = vmatprep.subr.mxu0 0.0
    %176 = vmatpush1.msra.mxu0 0.0
    %177 = vmatprep.subr.mxu0 0.0
    %178 = vmatpush1.msra.mxu0 0.0
    %179 = vmatprep.subr.mxu0 0.0
    %180 = vmatpush1.msra.mxu0 0.0
    %181 = vmatprep.subr.mxu0 0.0
    %182 = vmatpush1.msra.mxu0 0.0
    %183 = vmatprep.subr.mxu0 0.0
    %184 = vmatpush1.msra.mxu0 0.0
    %185 = vmatprep.subr.mxu0 0.0
    %186 = vmatpush1.msra.mxu0 0.0
    %187 = vmatprep.mubr.f32.mxu0 0.0
    %188 = vmatmul.mubr.f32.gmra.mrb[0].mxu0 %v96
    %v189 = vpop.f32.mrb[0].mxu0
    %v190 = vadd.f32 0.0, %v189
    %v191 = vpop.f32.mrb[0].mxu0
    %192 = vmatprep.mubr.f32.mxu0 0.0
    %193 = vmatmul.mubr.f32.gmra.mrb[0].mxu0 %v99
    %v194 = vpop.f32.mrb[0].mxu0
    %v195 = vadd.f32 0.0, %v194
    %v196 = vpop.f32.mrb[0].mxu0
    %197 = vmatprep.mubr.f32.mxu0 0.0
    %198 = vmatmul.mubr.f32.gmra.mrb[0].mxu0 %v102
    %v199 = vpop.f32.mrb[0].mxu0
    %v200 = vadd.f32 0.0, %v199
    %v201 = vpop.f32.mrb[0].mxu0
    %202 = vmatprep.mubr.f32.mxu0 0.0
    %203 = vmatmul.mubr.f32.gmra.mrb[0].mxu0 %v105
    %v204 = vpop.f32.mrb[0].mxu0
    %v205 = vadd.f32 0.0, %v204
    %v206 = vpop.f32.mrb[0].mxu0
    %207 = vmatprep.mubr.f32.mxu0 0.0
    %208 = vmatmul.mubr.f32.gmra.mrb[0].mxu0 %v108
    %v209 = vpop.f32.mrb[0].mxu0
    %v210 = vadd.f32 0.0, %v209
    %v211 = vpop.f32.mrb[0].mxu0
    %212 = vmatprep.mubr.f32.mxu0 0.0
    %213 = vmatmul.mubr.f32.gmra.mrb[0].mxu0 %v111
    %v214 = vpop.f32.mrb[0].mxu0
    %v215 = vadd.f32 0.0, %v214
    %v216 = vpop.f32.mrb[0].mxu0
    %217 = vmatprep.mubr.f32.mxu0 0.0
    %218 = vmatmul.mubr.f32.gmra.mrb[0].mxu0 %v114
    %v219 = vpop.f32.mrb[0].mxu0
    %v220 = vadd.f32 0.0, %v219
    %v221 = vpop.f32.mrb[0].mxu0
    %222 = vmatprep.mubr.f32.mxu0 0.0
    %223 = vmatmul.mubr.f32.gmra.mrb[0].mxu0 %v117
    %v224 = vpop.f32.mrb[0].mxu0
    %v225 = vadd.f32 0.0, %v224
    %v226 = vpop.f32.mrb[0].mxu0
    %227 = vdwg.mxu0
    %vm228 = vcmask 523264
    %229 = vst.msk [vmem:[#allocation2] sm:$0xff] %vm228, %v190
    %230 = vst.msk [vmem:[#allocation2 + $0x8] sm:$0xff] %vm228, %v195
    %231 = vst.msk [vmem:[#allocation2 + $0x10] sm:$0xff] %vm228, %v200
    %232 = vst.msk [vmem:[#allocation2 + $0x18] sm:$0xff] %vm228, %v205
    %233 = vst.msk [vmem:[#allocation2 + $0x20] sm:$0xff] %vm228, %v210
    %234 = vst.msk [vmem:[#allocation2 + $0x28] sm:$0xff] %vm228, %v215
    %235 = vst.msk [vmem:[#allocation2 + $0x30] sm:$0xff] %vm228, %v220
    %236 = vst.msk [vmem:[#allocation2 + $0x38] sm:$0xff] %vm228, %v225
    %v237 = vld [vmem:[%s1] sm:$0xff]
    %v238 = vld [vmem:[%s6] sm:$0xf]
    %v239 = vld [vmem:[%s7] sm:$0x1]
    %v241 = vlaneseq
    %v242 = vshrl.u32 %v241, 7
    %v243 = vsub.s32 0, %v242
    %v244 = vrot.slane %v239, %v243
    %v247 = vsel %vm94, %v237, 0
    %v250 = vsel %vm119, %v238, 0
    %252 = vmatprep.subr.mxu0 0.0
    %253 = vmatpush1.msra.mxu0 %v250
    %254 = vmatprep.subr.mxu0 0.0
    %255 = vmatpush1.msra.mxu0 0.0
    %256 = vmatprep.subr.mxu0 0.0
    %257 = vmatpush1.msra.mxu0 0.0
    %258 = vmatprep.subr.mxu0 0.0
    %259 = vmatpush1.msra.mxu0 0.0
    %260 = vmatprep.subr.mxu0 0.0
    %261 = vmatpush1.msra.mxu0 0.0
    %262 = vmatprep.subr.mxu0 0.0
    %263 = vmatpush1.msra.mxu0 0.0
    %264 = vmatprep.subr.mxu0 0.0
    %265 = vmatpush1.msra.mxu0 0.0
    %266 = vmatprep.subr.mxu0 0.0
    %267 = vmatpush1.msra.mxu0 0.0
    %268 = vmatprep.subr.mxu0 0.0
    %269 = vmatpush1.msra.mxu0 0.0
    %270 = vmatprep.subr.mxu0 0.0
    %271 = vmatpush1.msra.mxu0 0.0
    %272 = vmatprep.subr.mxu0 0.0
    %273 = vmatpush1.msra.mxu0 0.0
    %274 = vmatprep.subr.mxu0 0.0
    %275 = vmatpush1.msra.mxu0 0.0
    %276 = vmatprep.subr.mxu0 0.0
    %277 = vmatpush1.msra.mxu0 0.0
    %278 = vmatprep.subr.mxu0 0.0
    %279 = vmatpush1.msra.mxu0 0.0
    %280 = vmatprep.subr.mxu0 0.0
    %281 = vmatpush1.msra.mxu0 0.0
    %282 = vmatprep.subr.mxu0 0.0
    %283 = vmatpush1.msra.mxu0 0.0
    %284 = vmatprep.subr.mxu0 0.0
    %285 = vmatpush1.msra.mxu0 0.0
    %286 = vmatprep.subr.mxu0 0.0
    %287 = vmatpush1.msra.mxu0 0.0
    %288 = vmatprep.subr.mxu0 0.0
    %289 = vmatpush1.msra.mxu0 0.0
    %290 = vmatprep.subr.mxu0 0.0
    %291 = vmatpush1.msra.mxu0 0.0
    %292 = vmatprep.subr.mxu0 0.0
    %293 = vmatpush1.msra.mxu0 0.0
    %294 = vmatprep.subr.mxu0 0.0
    %295 = vmatpush1.msra.mxu0 0.0
    %296 = vmatprep.subr.mxu0 0.0
    %297 = vmatpush1.msra.mxu0 0.0
    %298 = vmatprep.subr.mxu0 0.0
    %299 = vmatpush1.msra.mxu0 0.0
    %300 = vmatprep.subr.mxu0 0.0
    %301 = vmatpush1.msra.mxu0 0.0
    %302 = vmatprep.subr.mxu0 0.0
    %303 = vmatpush1.msra.mxu0 0.0
    %304 = vmatprep.subr.mxu0 0.0
    %305 = vmatpush1.msra.mxu0 0.0
    %306 = vmatprep.subr.mxu0 0.0
    %307 = vmatpush1.msra.mxu0 0.0
    %308 = vmatprep.subr.mxu0 0.0
    %309 = vmatpush1.msra.mxu0 0.0
    %310 = vmatprep.subr.mxu0 0.0
    %311 = vmatpush1.msra.mxu0 0.0
    %312 = vmatprep.subr.mxu0 0.0
    %313 = vmatpush1.msra.mxu0 0.0
    %314 = vmatprep.subr.mxu0 0.0
    %315 = vmatpush1.msra.mxu0 0.0
    %316 = vmatprep.mubr.f32.mxu0 0.0
    %317 = vmatmul.mubr.f32.gmra.mrb[0].mxu0 %v247
    %v318 = vpop.f32.mrb[0].mxu0
    %v319 = vadd.f32 %v244, %v318
    %v320 = vpop.f32.mrb[0].mxu0
    %321 = vdwg.mxu0
    %v322 = vmul.f32 %v319, 0.909
    %v323 = vxor.u32 %v319, 2147483648
    %v324 = vmul.f32 %v323, 1.442695
    %v325 = vpow.pop %v324
    %v326 = vadd.f32 %v325, 1.0
    %v327 = vrcp.pop %v326
    %v328 = vmul.f32 1.0, %v327
    %v329 = vmul.f32 %v322, %v328
    %v330 = vld [vmem:[%s8] sm:$0xff]
    %v331 = vld [vmem:[%s8 + $0x8] sm:$0xff]
    %v332 = vld [vmem:[%s8 + $0x10] sm:$0xff]
    %v333 = vld [vmem:[%s8 + $0x18] sm:$0xff]
    %v334 = vld [vmem:[%s9] sm:$0x1]
    %v336 = vlaneseq
    %v337 = vshrl.u32 %v336, 7
    %v338 = vsub.s32 0, %v337
    %v339 = vrot.slane %v334, %v338
    %vm341 = vcmask 261120
    %v343 = vsel %vm341, %v329, 0
    %345 = vmatprep.subr.mxu0 0.0
    %346 = vmatpush1.msra.mxu0 %v330
    %347 = vmatprep.subr.mxu0 0.0
    %348 = vmatpush1.msra.mxu0 %v331
    %349 = vmatprep.subr.mxu0 0.0
    %350 = vmatpush1.msra.mxu0 %v332
    %351 = vmatprep.subr.mxu0 0.0
    %352 = vmatpush1.msra.mxu0 %v333
    %353 = vmatprep.subr.mxu0 0.0
    %354 = vmatpush1.msra.mxu0 0.0
    %355 = vmatprep.subr.mxu0 0.0
    %356 = vmatpush1.msra.mxu0 0.0
    %357 = vmatprep.subr.mxu0 0.0
    %358 = vmatpush1.msra.mxu0 0.0
    %359 = vmatprep.subr.mxu0 0.0
    %360 = vmatpush1.msra.mxu0 0.0
    %361 = vmatprep.subr.mxu0 0.0
    %362 = vmatpush1.msra.mxu0 0.0
    %363 = vmatprep.subr.mxu0 0.0
    %364 = vmatpush1.msra.mxu0 0.0
    %365 = vmatprep.subr.mxu0 0.0
    %366 = vmatpush1.msra.mxu0 0.0
    %367 = vmatprep.subr.mxu0 0.0
    %368 = vmatpush1.msra.mxu0 0.0
    %369 = vmatprep.subr.mxu0 0.0
    %370 = vmatpush1.msra.mxu0 0.0
    %371 = vmatprep.subr.mxu0 0.0
    %372 = vmatpush1.msra.mxu0 0.0
    %373 = vmatprep.subr.mxu0 0.0
    %374 = vmatpush1.msra.mxu0 0.0
    %375 = vmatprep.subr.mxu0 0.0
    %376 = vmatpush1.msra.mxu0 0.0
    %377 = vmatprep.subr.mxu0 0.0
    %378 = vmatpush1.msra.mxu0 0.0
    %379 = vmatprep.subr.mxu0 0.0
    %380 = vmatpush1.msra.mxu0 0.0
    %381 = vmatprep.subr.mxu0 0.0
    %382 = vmatpush1.msra.mxu0 0.0
    %383 = vmatprep.subr.mxu0 0.0
    %384 = vmatpush1.msra.mxu0 0.0
    %385 = vmatprep.subr.mxu0 0.0
    %386 = vmatpush1.msra.mxu0 0.0
    %387 = vmatprep.subr.mxu0 0.0
    %388 = vmatpush1.msra.mxu0 0.0
    %389 = vmatprep.subr.mxu0 0.0
    %390 = vmatpush1.msra.mxu0 0.0
    %391 = vmatprep.subr.mxu0 0.0
    %392 = vmatpush1.msra.mxu0 0.0
    %393 = vmatprep.subr.mxu0 0.0
    %394 = vmatpush1.msra.mxu0 0.0
    %395 = vmatprep.subr.mxu0 0.0
    %396 = vmatpush1.msra.mxu0 0.0
    %397 = vmatprep.subr.mxu0 0.0
    %398 = vmatpush1.msra.mxu0 0.0
    %399 = vmatprep.subr.mxu0 0.0
    %400 = vmatpush1.msra.mxu0 0.0
    %401 = vmatprep.subr.mxu0 0.0
    %402 = vmatpush1.msra.mxu0 0.0
    %403 = vmatprep.subr.mxu0 0.0
    %404 = vmatpush1.msra.mxu0 0.0
    %405 = vmatprep.subr.mxu0 0.0
    %406 = vmatpush1.msra.mxu0 0.0
    %407 = vmatprep.subr.mxu0 0.0
    %408 = vmatpush1.msra.mxu0 0.0
    %409 = vmatprep.mubr.f32.mxu0 0.0
    %410 = vmatmul.mubr.f32.gmra.mrb[0].mxu0 %v343
    %v411 = vpop.f32.mrb[0].mxu0
    %v412 = vadd.f32 %v339, %v411
    %v413 = vpop.f32.mrb[0].mxu0
    %414 = vdwg.mxu0
    %v415 = vmul.f32 %v412, 0.909
    %v416 = vxor.u32 %v412, 2147483648
    %v417 = vmul.f32 %v416, 1.442695
    %v418 = vpow.pop %v417
    %v419 = vadd.f32 %v418, 1.0
    %v420 = vrcp.pop %v419
    %v421 = vmul.f32 1.0, %v420
    %v422 = vmul.f32 %v415, %v421
    %v423 = vld [vmem:[%s10] sm:$0xff]
    %v424 = vld [vmem:[%s10 + $0x8] sm:$0xff]
    %v425 = vld [vmem:[%s10 + $0x10] sm:$0xff]
    %v426 = vld [vmem:[%s10 + $0x18] sm:$0xff]
    %v427 = vld [vmem:[%s11] sm:$0x1]
    %v429 = vlaneseq
    %v430 = vshrl.u32 %v429, 7
    %v431 = vsub.s32 0, %v430
    %v432 = vrot.slane %v427, %v431
    %v435 = vsel %vm341, %v422, 0
    %437 = vmatprep.subr.mxu0 0.0
    %438 = vmatpush1.msra.mxu0 %v423
    %439 = vmatprep.subr.mxu0 0.0
    %440 = vmatpush1.msra.mxu0 %v424
    %441 = vmatprep.subr.mxu0 0.0
    %442 = vmatpush1.msra.mxu0 %v425
    %443 = vmatprep.subr.mxu0 0.0
    %444 = vmatpush1.msra.mxu0 %v426
    %445 = vmatprep.subr.mxu0 0.0
    %446 = vmatpush1.msra.mxu0 0.0
    %447 = vmatprep.subr.mxu0 0.0
    %448 = vmatpush1.msra.mxu0 0.0
    %449 = vmatprep.subr.mxu0 0.0
    %450 = vmatpush1.msra.mxu0 0.0
    %451 = vmatprep.subr.mxu0 0.0
    %452 = vmatpush1.msra.mxu0 0.0
    %453 = vmatprep.subr.mxu0 0.0
    %454 = vmatpush1.msra.mxu0 0.0
    %455 = vmatprep.subr.mxu0 0.0
    %456 = vmatpush1.msra.mxu0 0.0
    %457 = vmatprep.subr.mxu0 0.0
    %458 = vmatpush1.msra.mxu0 0.0
    %459 = vmatprep.subr.mxu0 0.0
    %460 = vmatpush1.msra.mxu0 0.0
    %461 = vmatprep.subr.mxu0 0.0
    %462 = vmatpush1.msra.mxu0 0.0
    %463 = vmatprep.subr.mxu0 0.0
    %464 = vmatpush1.msra.mxu0 0.0
    %465 = vmatprep.subr.mxu0 0.0
    %466 = vmatpush1.msra.mxu0 0.0
    %467 = vmatprep.subr.mxu0 0.0
    %468 = vmatpush1.msra.mxu0 0.0
    %469 = vmatprep.subr.mxu0 0.0
    %470 = vmatpush1.msra.mxu0 0.0
    %471 = vmatprep.subr.mxu0 0.0
    %472 = vmatpush1.msra.mxu0 0.0
    %473 = vmatprep.subr.mxu0 0.0
    %474 = vmatpush1.msra.mxu0 0.0
    %475 = vmatprep.subr.mxu0 0.0
    %476 = vmatpush1.msra.mxu0 0.0
    %477 = vmatprep.subr.mxu0 0.0
    %478 = vmatpush1.msra.mxu0 0.0
    %479 = vmatprep.subr.mxu0 0.0
    %480 = vmatpush1.msra.mxu0 0.0
    %481 = vmatprep.subr.mxu0 0.0
    %482 = vmatpush1.msra.mxu0 0.0
    %483 = vmatprep.subr.mxu0 0.0
    %484 = vmatpush1.msra.mxu0 0.0
    %485 = vmatprep.subr.mxu0 0.0
    %486 = vmatpush1.msra.mxu0 0.0
    %487 = vmatprep.subr.mxu0 0.0
    %488 = vmatpush1.msra.mxu0 0.0
    %489 = vmatprep.subr.mxu0 0.0
    %490 = vmatpush1.msra.mxu0 0.0
    %491 = vmatprep.subr.mxu0 0.0
    %492 = vmatpush1.msra.mxu0 0.0
    %493 = vmatprep.subr.mxu0 0.0
    %494 = vmatpush1.msra.mxu0 0.0
    %495 = vmatprep.subr.mxu0 0.0
    %496 = vmatpush1.msra.mxu0 0.0
    %497 = vmatprep.subr.mxu0 0.0
    %498 = vmatpush1.msra.mxu0 0.0
    %499 = vmatprep.subr.mxu0 0.0
    %500 = vmatpush1.msra.mxu0 0.0
    %501 = vmatprep.mubr.f32.mxu0 0.0
    %502 = vmatmul.mubr.f32.gmra.mrb[0].mxu0 %v435
    %v503 = vpop.f32.mrb[0].mxu0
    %v504 = vadd.f32 %v432, %v503
    %v505 = vpop.f32.mrb[0].mxu0
    %506 = vdwg.mxu0
    %v507 = vld [vmem:[%s12] sm:$0xff]
    %v508 = vld [vmem:[%s12 + $0x8] sm:$0xff]
    %v509 = vld [vmem:[%s3] sm:$0x1]
    %v511 = vlaneseq
    %v512 = vshrl.u32 %v511, 7
    %v513 = vsub.s32 0, %v512
    %v514 = vrot.slane %v509, %v513
    %vm516 = vcmask 130048
    %v518 = vsel %vm516, %v504, 0
    %520 = vmatprep.subr.mxu0 0.0
    %521 = vmatpush1.msra.mxu0 %v507
    %522 = vmatprep.subr.mxu0 0.0
    %523 = vmatpush1.msra.mxu0 %v508
    %524 = vmatprep.subr.mxu0 0.0
    %525 = vmatpush1.msra.mxu0 0.0
    %526 = vmatprep.subr.mxu0 0.0
    %527 = vmatpush1.msra.mxu0 0.0
    %528 = vmatprep.subr.mxu0 0.0
    %529 = vmatpush1.msra.mxu0 0.0
    %530 = vmatprep.subr.mxu0 0.0
    %531 = vmatpush1.msra.mxu0 0.0
    %532 = vmatprep.subr.mxu0 0.0
    %533 = vmatpush1.msra.mxu0 0.0
    %534 = vmatprep.subr.mxu0 0.0
    %535 = vmatpush1.msra.mxu0 0.0
    %536 = vmatprep.subr.mxu0 0.0
    %537 = vmatpush1.msra.mxu0 0.0
    %538 = vmatprep.subr.mxu0 0.0
    %539 = vmatpush1.msra.mxu0 0.0
    %540 = vmatprep.subr.mxu0 0.0
    %541 = vmatpush1.msra.mxu0 0.0
    %542 = vmatprep.subr.mxu0 0.0
    %543 = vmatpush1.msra.mxu0 0.0
    %544 = vmatprep.subr.mxu0 0.0
    %545 = vmatpush1.msra.mxu0 0.0
    %546 = vmatprep.subr.mxu0 0.0
    %547 = vmatpush1.msra.mxu0 0.0
    %548 = vmatprep.subr.mxu0 0.0
    %549 = vmatpush1.msra.mxu0 0.0
    %550 = vmatprep.subr.mxu0 0.0
    %551 = vmatpush1.msra.mxu0 0.0
    %552 = vmatprep.subr.mxu0 0.0
    %553 = vmatpush1.msra.mxu0 0.0
    %554 = vmatprep.subr.mxu0 0.0
    %555 = vmatpush1.msra.mxu0 0.0
    %556 = vmatprep.subr.mxu0 0.0
    %557 = vmatpush1.msra.mxu0 0.0
    %558 = vmatprep.subr.mxu0 0.0
    %559 = vmatpush1.msra.mxu0 0.0
    %560 = vmatprep.subr.mxu0 0.0
    %561 = vmatpush1.msra.mxu0 0.0
    %562 = vmatprep.subr.mxu0 0.0
    %563 = vmatpush1.msra.mxu0 0.0
    %564 = vmatprep.subr.mxu0 0.0
    %565 = vmatpush1.msra.mxu0 0.0
    %566 = vmatprep.subr.mxu0 0.0
    %567 = vmatpush1.msra.mxu0 0.0
    %568 = vmatprep.subr.mxu0 0.0
    %569 = vmatpush1.msra.mxu0 0.0
    %570 = vmatprep.subr.mxu0 0.0
    %571 = vmatpush1.msra.mxu0 0.0
    %572 = vmatprep.subr.mxu0 0.0
    %573 = vmatpush1.msra.mxu0 0.0
    %574 = vmatprep.subr.mxu0 0.0
    %575 = vmatpush1.msra.mxu0 0.0
    %576 = vmatprep.subr.mxu0 0.0
    %577 = vmatpush1.msra.mxu0 0.0
    %578 = vmatprep.subr.mxu0 0.0
    %579 = vmatpush1.msra.mxu0 0.0
    %580 = vmatprep.subr.mxu0 0.0
    %581 = vmatpush1.msra.mxu0 0.0
    %582 = vmatprep.subr.mxu0 0.0
    %583 = vmatpush1.msra.mxu0 0.0
    %584 = vmatprep.mubr.f32.mxu0 0.0
    %585 = vmatmul.mubr.f32.gmra.mrb[0].mxu0 %v518
    %v586 = vpop.f32.mrb[0].mxu0
    %v587 = vadd.f32 %v514, %v586
    %v588 = vpop.f32.mrb[0].mxu0
    %589 = vdwg.mxu0
    %v590 = vmul.f32 %v587, 0.909
    %v591 = vxor.u32 %v587, 2147483648
    %v592 = vmul.f32 %v591, 1.442695
    %v593 = vpow.pop %v592
    %v594 = vadd.f32 %v593, 1.0
    %v595 = vrcp.pop %v594
    %v596 = vmul.f32 1.0, %v595
    %v597 = vmul.f32 %v590, %v596
    %v598 = vld [vmem:[%s13] sm:$0xff]
    %v599 = vld [vmem:[%s13 + $0x8] sm:$0xff]
    %v600 = vld [vmem:[%s13 + $0x10] sm:$0xff]
    %v601 = vld [vmem:[%s13 + $0x18] sm:$0xff]
    %v602 = vld [vmem:[%s14] sm:$0x1]
    %v604 = vlaneseq
    %v605 = vshrl.u32 %v604, 7
    %v606 = vsub.s32 0, %v605
    %v607 = vrot.slane %v602, %v606
    %v610 = vsel %vm341, %v597, 0
    %612 = vmatprep.subr.mxu0 0.0
    %613 = vmatpush1.msra.mxu0 %v598
    %614 = vmatprep.subr.mxu0 0.0
    %615 = vmatpush1.msra.mxu0 %v599
    %616 = vmatprep.subr.mxu0 0.0
    %617 = vmatpush1.msra.mxu0 %v600
    %618 = vmatprep.subr.mxu0 0.0
    %619 = vmatpush1.msra.mxu0 %v601
    %620 = vmatprep.subr.mxu0 0.0
    %621 = vmatpush1.msra.mxu0 0.0
    %622 = vmatprep.subr.mxu0 0.0
    %623 = vmatpush1.msra.mxu0 0.0
    %624 = vmatprep.subr.mxu0 0.0
    %625 = vmatpush1.msra.mxu0 0.0
    %626 = vmatprep.subr.mxu0 0.0
    %627 = vmatpush1.msra.mxu0 0.0
    %628 = vmatprep.subr.mxu0 0.0
    %629 = vmatpush1.msra.mxu0 0.0
    %630 = vmatprep.subr.mxu0 0.0
    %631 = vmatpush1.msra.mxu0 0.0
    %632 = vmatprep.subr.mxu0 0.0
    %633 = vmatpush1.msra.mxu0 0.0
    %634 = vmatprep.subr.mxu0 0.0
    %635 = vmatpush1.msra.mxu0 0.0
    %636 = vmatprep.subr.mxu0 0.0
    %637 = vmatpush1.msra.mxu0 0.0
    %638 = vmatprep.subr.mxu0 0.0
    %639 = vmatpush1.msra.mxu0 0.0
    %640 = vmatprep.subr.mxu0 0.0
    %641 = vmatpush1.msra.mxu0 0.0
    %642 = vmatprep.subr.mxu0 0.0
    %643 = vmatpush1.msra.mxu0 0.0
    %644 = vmatprep.subr.mxu0 0.0
    %645 = vmatpush1.msra.mxu0 0.0
    %646 = vmatprep.subr.mxu0 0.0
    %647 = vmatpush1.msra.mxu0 0.0
    %648 = vmatprep.subr.mxu0 0.0
    %649 = vmatpush1.msra.mxu0 0.0
    %650 = vmatprep.subr.mxu0 0.0
    %651 = vmatpush1.msra.mxu0 0.0
    %652 = vmatprep.subr.mxu0 0.0
    %653 = vmatpush1.msra.mxu0 0.0
    %654 = vmatprep.subr.mxu0 0.0
    %655 = vmatpush1.msra.mxu0 0.0
    %656 = vmatprep.subr.mxu0 0.0
    %657 = vmatpush1.msra.mxu0 0.0
    %658 = vmatprep.subr.mxu0 0.0
    %659 = vmatpush1.msra.mxu0 0.0
    %660 = vmatprep.subr.mxu0 0.0
    %661 = vmatpush1.msra.mxu0 0.0
    %662 = vmatprep.subr.mxu0 0.0
    %663 = vmatpush1.msra.mxu0 0.0
    %664 = vmatprep.subr.mxu0 0.0
    %665 = vmatpush1.msra.mxu0 0.0
    %666 = vmatprep.subr.mxu0 0.0
    %667 = vmatpush1.msra.mxu0 0.0
    %668 = vmatprep.subr.mxu0 0.0
    %669 = vmatpush1.msra.mxu0 0.0
    %670 = vmatprep.subr.mxu0 0.0
    %671 = vmatpush1.msra.mxu0 0.0
    %672 = vmatprep.subr.mxu0 0.0
    %673 = vmatpush1.msra.mxu0 0.0
    %674 = vmatprep.subr.mxu0 0.0
    %675 = vmatpush1.msra.mxu0 0.0
    %676 = vmatprep.mubr.f32.mxu0 0.0
    %677 = vmatmul.mubr.f32.gmra.mrb[0].mxu0 %v610
    %v678 = vpop.f32.mrb[0].mxu0
    %v679 = vadd.f32 %v607, %v678
    %v680 = vpop.f32.mrb[0].mxu0
    %681 = vdwg.mxu0
    %v682 = vmul.f32 %v679, 0.909
    %v683 = vxor.u32 %v679, 2147483648
    %v684 = vmul.f32 %v683, 1.442695
    %v685 = vpow.pop %v684
    %v686 = vadd.f32 %v685, 1.0
    %v687 = vrcp.pop %v686
    %v688 = vmul.f32 1.0, %v687
    %v689 = vmul.f32 %v682, %v688
    %v690 = vld [vmem:[%s15] sm:$0xff]
    %v691 = vld [vmem:[%s15 + $0x8] sm:$0xff]
    %v692 = vld [vmem:[%s15 + $0x10] sm:$0xff]
    %v693 = vld [vmem:[%s15 + $0x18] sm:$0xff]
    %v694 = vld [vmem:[%s16] sm:$0x1]
    %v696 = vlaneseq
    %v697 = vshrl.u32 %v696, 7
    %v698 = vsub.s32 0, %v697
    %v699 = vrot.slane %v694, %v698
    %v702 = vsel %vm341, %v689, 0
    %704 = vmatprep.subr.mxu0 0.0
    %705 = vmatpush1.msra.mxu0 %v690
    %706 = vmatprep.subr.mxu0 0.0
    %707 = vmatpush1.msra.mxu0 %v691
    %708 = vmatprep.subr.mxu0 0.0
    %709 = vmatpush1.msra.mxu0 %v692
    %710 = vmatprep.subr.mxu0 0.0
    %711 = vmatpush1.msra.mxu0 %v693
    %712 = vmatprep.subr.mxu0 0.0
    %713 = vmatpush1.msra.mxu0 0.0
    %714 = vmatprep.subr.mxu0 0.0
    %715 = vmatpush1.msra.mxu0 0.0
    %716 = vmatprep.subr.mxu0 0.0
    %717 = vmatpush1.msra.mxu0 0.0
    %718 = vmatprep.subr.mxu0 0.0
    %719 = vmatpush1.msra.mxu0 0.0
    %720 = vmatprep.subr.mxu0 0.0
    %721 = vmatpush1.msra.mxu0 0.0
    %722 = vmatprep.subr.mxu0 0.0
    %723 = vmatpush1.msra.mxu0 0.0
    %724 = vmatprep.subr.mxu0 0.0
    %725 = vmatpush1.msra.mxu0 0.0
    %726 = vmatprep.subr.mxu0 0.0
    %727 = vmatpush1.msra.mxu0 0.0
    %728 = vmatprep.subr.mxu0 0.0
    %729 = vmatpush1.msra.mxu0 0.0
    %730 = vmatprep.subr.mxu0 0.0
    %731 = vmatpush1.msra.mxu0 0.0
    %732 = vmatprep.subr.mxu0 0.0
    %733 = vmatpush1.msra.mxu0 0.0
    %734 = vmatprep.subr.mxu0 0.0
    %735 = vmatpush1.msra.mxu0 0.0
    %736 = vmatprep.subr.mxu0 0.0
    %737 = vmatpush1.msra.mxu0 0.0
    %738 = vmatprep.subr.mxu0 0.0
    %739 = vmatpush1.msra.mxu0 0.0
    %740 = vmatprep.subr.mxu0 0.0
    %741 = vmatpush1.msra.mxu0 0.0
    %742 = vmatprep.subr.mxu0 0.0
    %743 = vmatpush1.msra.mxu0 0.0
    %744 = vmatprep.subr.mxu0 0.0
    %745 = vmatpush1.msra.mxu0 0.0
    %746 = vmatprep.subr.mxu0 0.0
    %747 = vmatpush1.msra.mxu0 0.0
    %748 = vmatprep.subr.mxu0 0.0
    %749 = vmatpush1.msra.mxu0 0.0
    %750 = vmatprep.subr.mxu0 0.0
    %751 = vmatpush1.msra.mxu0 0.0
    %752 = vmatprep.subr.mxu0 0.0
    %753 = vmatpush1.msra.mxu0 0.0
    %754 = vmatprep.subr.mxu0 0.0
    %755 = vmatpush1.msra.mxu0 0.0
    %756 = vmatprep.subr.mxu0 0.0
    %757 = vmatpush1.msra.mxu0 0.0
    %758 = vmatprep.subr.mxu0 0.0
    %759 = vmatpush1.msra.mxu0 0.0
    %760 = vmatprep.subr.mxu0 0.0
    %761 = vmatpush1.msra.mxu0 0.0
    %762 = vmatprep.subr.mxu0 0.0
    %763 = vmatpush1.msra.mxu0 0.0
    %764 = vmatprep.subr.mxu0 0.0
    %765 = vmatpush1.msra.mxu0 0.0
    %766 = vmatprep.subr.mxu0 0.0
    %767 = vmatpush1.msra.mxu0 0.0
    %768 = vmatprep.mubr.f32.mxu0 0.0
    %769 = vmatmul.mubr.f32.gmra.mrb[0].mxu0 %v702
    %v770 = vpop.f32.mrb[0].mxu0
    %v771 = vadd.f32 %v699, %v770
    %v772 = vpop.f32.mrb[0].mxu0
    %773 = vdwg.mxu0
    %v774 = vtanh.pop %v771
    %v775 = vld [vmem:[#allocation2] sm:$0xff]
    %v776 = vmul.f32 %v774, %v775
    %v778 = vsel %vm228, %v776, 0
    %780 = vmatprep.subr.mxu0 0.0
    %781 = vmatpush1.msra.mxu0 %v78
    %782 = vmatprep.subr.mxu0 0.0
    %783 = vmatpush1.msra.mxu0 %v79
    %784 = vmatprep.subr.mxu0 0.0
    %785 = vmatpush1.msra.mxu0 %v80
    %786 = vmatprep.subr.mxu0 0.0
    %787 = vmatpush1.msra.mxu0 %v81
    %788 = vmatprep.subr.mxu0 0.0
    %789 = vmatpush1.msra.mxu0 %v82
    %790 = vmatprep.subr.mxu0 0.0
    %791 = vmatpush1.msra.mxu0 %v83
    %792 = vmatprep.subr.mxu0 0.0
    %793 = vmatpush1.msra.mxu0 %v84
    %794 = vmatprep.subr.mxu0 0.0
    %795 = vmatpush1.msra.mxu0 %v85
    %796 = vmatprep.subr.mxu0 0.0
    %797 = vmatpush1.msra.mxu0 0.0
    %798 = vmatprep.subr.mxu0 0.0
    %799 = vmatpush1.msra.mxu0 0.0
    %800 = vmatprep.subr.mxu0 0.0
    %801 = vmatpush1.msra.mxu0 0.0
    %802 = vmatprep.subr.mxu0 0.0
    %803 = vmatpush1.msra.mxu0 0.0
    %804 = vmatprep.subr.mxu0 0.0
    %805 = vmatpush1.msra.mxu0 0.0
    %806 = vmatprep.subr.mxu0 0.0
    %807 = vmatpush1.msra.mxu0 0.0
    %808 = vmatprep.subr.mxu0 0.0
    %809 = vmatpush1.msra.mxu0 0.0
    %810 = vmatprep.subr.mxu0 0.0
    %811 = vmatpush1.msra.mxu0 0.0
    %812 = vmatprep.subr.mxu0 0.0
    %813 = vmatpush1.msra.mxu0 0.0
    %814 = vmatprep.subr.mxu0 0.0
    %815 = vmatpush1.msra.mxu0 0.0
    %816 = vmatprep.subr.mxu0 0.0
    %817 = vmatpush1.msra.mxu0 0.0
    %818 = vmatprep.subr.mxu0 0.0
    %819 = vmatpush1.msra.mxu0 0.0
    %820 = vmatprep.subr.mxu0 0.0
    %821 = vmatpush1.msra.mxu0 0.0
    %822 = vmatprep.subr.mxu0 0.0
    %823 = vmatpush1.msra.mxu0 0.0
    %824 = vmatprep.subr.mxu0 0.0
    %825 = vmatpush1.msra.mxu0 0.0
    %826 = vmatprep.subr.mxu0 0.0
    %827 = vmatpush1.msra.mxu0 0.0
    %828 = vmatprep.subr.mxu0 0.0
    %829 = vmatpush1.msra.mxu0 0.0
    %830 = vmatprep.subr.mxu0 0.0
    %831 = vmatpush1.msra.mxu0 0.0
    %832 = vmatprep.subr.mxu0 0.0
    %833 = vmatpush1.msra.mxu0 0.0
    %834 = vmatprep.subr.mxu0 0.0
    %835 = vmatpush1.msra.mxu0 0.0
    %836 = vmatprep.subr.mxu0 0.0
    %837 = vmatpush1.msra.mxu0 0.0
    %838 = vmatprep.subr.mxu0 0.0
    %839 = vmatpush1.msra.mxu0 0.0
    %840 = vmatprep.subr.mxu0 0.0
    %841 = vmatpush1.msra.mxu0 0.0
    %842 = vmatprep.subr.mxu0 0.0
    %843 = vmatpush1.msra.mxu0 0.0
    %844 = vmatprep.mubr.f32.mxu0 0.0
    %845 = vmatmul.mubr.f32.gmra.mrb[0].mxu0 %v778
    %v846 = vpop.f32.mrb[0].mxu0
    %v847 = vadd.f32 0.0, %v846
    %v848 = vpop.f32.mrb[0].mxu0
    %849 = vdwg.mxu0
    %s850 = sld [smem:[#allocation4]]
    %v851 = vmul.f32 %v504, 2.0
    %v852 = vsub.f32 %v851, %v504
    %v853 = vstv %s850
    %v854 = vmul.f32 %v853, %v847
    %v855 = vadd.f32 %v852, %v854
    %s856 = scalar_lea.vmem %s3, 1
    %v857 = vld [vmem:[%s856] sm:$0x1]
    %v859 = vlaneseq
    %v860 = vshrl.u32 %v859, 7
    %v861 = vsub.s32 0, %v860
    %v862 = vrot.slane %v857, %v861
    %v865 = vsel %vm516, %v855, 0
    %867 = vmatprep.subr.mxu0 0.0
    %868 = vmatpush1.msra.mxu0 %v507
    %869 = vmatprep.subr.mxu0 0.0
    %870 = vmatpush1.msra.mxu0 %v508
    %871 = vmatprep.subr.mxu0 0.0
    %872 = vmatpush1.msra.mxu0 0.0
    %873 = vmatprep.subr.mxu0 0.0
    %874 = vmatpush1.msra.mxu0 0.0
    %875 = vmatprep.subr.mxu0 0.0
    %876 = vmatpush1.msra.mxu0 0.0
    %877 = vmatprep.subr.mxu0 0.0
    %878 = vmatpush1.msra.mxu0 0.0
    %879 = vmatprep.subr.mxu0 0.0
    %880 = vmatpush1.msra.mxu0 0.0
    %881 = vmatprep.subr.mxu0 0.0
    %882 = vmatpush1.msra.mxu0 0.0
    %883 = vmatprep.subr.mxu0 0.0
    %884 = vmatpush1.msra.mxu0 0.0
    %885 = vmatprep.subr.mxu0 0.0
    %886 = vmatpush1.msra.mxu0 0.0
    %887 = vmatprep.subr.mxu0 0.0
    %888 = vmatpush1.msra.mxu0 0.0
    %889 = vmatprep.subr.mxu0 0.0
    %890 = vmatpush1.msra.mxu0 0.0
    %891 = vmatprep.subr.mxu0 0.0
    %892 = vmatpush1.msra.mxu0 0.0
    %893 = vmatprep.subr.mxu0 0.0
    %894 = vmatpush1.msra.mxu0 0.0
    %895 = vmatprep.subr.mxu0 0.0
    %896 = vmatpush1.msra.mxu0 0.0
    %897 = vmatprep.subr.mxu0 0.0
    %898 = vmatpush1.msra.mxu0 0.0
    %899 = vmatprep.subr.mxu0 0.0
    %900 = vmatpush1.msra.mxu0 0.0
    %901 = vmatprep.subr.mxu0 0.0
    %902 = vmatpush1.msra.mxu0 0.0
    %903 = vmatprep.subr.mxu0 0.0
    %904 = vmatpush1.msra.mxu0 0.0
    %905 = vmatprep.subr.mxu0 0.0
    %906 = vmatpush1.msra.mxu0 0.0
    %907 = vmatprep.subr.mxu0 0.0
    %908 = vmatpush1.msra.mxu0 0.0
    %909 = vmatprep.subr.mxu0 0.0
    %910 = vmatpush1.msra.mxu0 0.0
    %911 = vmatprep.subr.mxu0 0.0
    %912 = vmatpush1.msra.mxu0 0.0
    %913 = vmatprep.subr.mxu0 0.0
    %914 = vmatpush1.msra.mxu0 0.0
    %915 = vmatprep.subr.mxu0 0.0
    %916 = vmatpush1.msra.mxu0 0.0
    %917 = vmatprep.subr.mxu0 0.0
    %918 = vmatpush1.msra.mxu0 0.0
    %919 = vmatprep.subr.mxu0 0.0
    %920 = vmatpush1.msra.mxu0 0.0
    %921 = vmatprep.subr.mxu0 0.0
    %922 = vmatpush1.msra.mxu0 0.0
    %923 = vmatprep.subr.mxu0 0.0
    %924 = vmatpush1.msra.mxu0 0.0
    %925 = vmatprep.subr.mxu0 0.0
    %926 = vmatpush1.msra.mxu0 0.0
    %927 = vmatprep.subr.mxu0 0.0
    %928 = vmatpush1.msra.mxu0 0.0
    %929 = vmatprep.subr.mxu0 0.0
    %930 = vmatpush1.msra.mxu0 0.0
    %931 = vmatprep.mubr.f32.mxu0 0.0
    %932 = vmatmul.mubr.f32.gmra.mrb[0].mxu0 %v865
    %v933 = vpop.f32.mrb[0].mxu0
    %v934 = vadd.f32 %v862, %v933
    %v935 = vpop.f32.mrb[0].mxu0
    %936 = vdwg.mxu0
    %v937 = vmul.f32 %v934, 0.909
    %v938 = vxor.u32 %v934, 2147483648
    %v939 = vmul.f32 %v938, 1.442695
    %v940 = vpow.pop %v939
    %v941 = vadd.f32 %v940, 1.0
    %v942 = vrcp.pop %v941
    %v943 = vmul.f32 1.0, %v942
    %v944 = vmul.f32 %v937, %v943
    %v946 = vsel %vm341, %v944, 0
    %948 = vmatprep.subr.mxu0 0.0
    %949 = vmatpush1.msra.mxu0 %v598
    %950 = vmatprep.subr.mxu0 0.0
    %951 = vmatpush1.msra.mxu0 %v599
    %952 = vmatprep.subr.mxu0 0.0
    %953 = vmatpush1.msra.mxu0 %v600
    %954 = vmatprep.subr.mxu0 0.0
    %955 = vmatpush1.msra.mxu0 %v601
    %956 = vmatprep.subr.mxu0 0.0
    %957 = vmatpush1.msra.mxu0 0.0
    %958 = vmatprep.subr.mxu0 0.0
    %959 = vmatpush1.msra.mxu0 0.0
    %960 = vmatprep.subr.mxu0 0.0
    %961 = vmatpush1.msra.mxu0 0.0
    %962 = vmatprep.subr.mxu0 0.0
    %963 = vmatpush1.msra.mxu0 0.0
    %964 = vmatprep.subr.mxu0 0.0
    %965 = vmatpush1.msra.mxu0 0.0
    %966 = vmatprep.subr.mxu0 0.0
    %967 = vmatpush1.msra.mxu0 0.0
    %968 = vmatprep.subr.mxu0 0.0
    %969 = vmatpush1.msra.mxu0 0.0
    %970 = vmatprep.subr.mxu0 0.0
    %971 = vmatpush1.msra.mxu0 0.0
    %972 = vmatprep.subr.mxu0 0.0
    %973 = vmatpush1.msra.mxu0 0.0
    %974 = vmatprep.subr.mxu0 0.0
    %975 = vmatpush1.msra.mxu0 0.0
    %976 = vmatprep.subr.mxu0 0.0
    %977 = vmatpush1.msra.mxu0 0.0
    %978 = vmatprep.subr.mxu0 0.0
    %979 = vmatpush1.msra.mxu0 0.0
    %980 = vmatprep.subr.mxu0 0.0
    %981 = vmatpush1.msra.mxu0 0.0
    %982 = vmatprep.subr.mxu0 0.0
    %983 = vmatpush1.msra.mxu0 0.0
    %984 = vmatprep.subr.mxu0 0.0
    %985 = vmatpush1.msra.mxu0 0.0
    %986 = vmatprep.subr.mxu0 0.0
    %987 = vmatpush1.msra.mxu0 0.0
    %988 = vmatprep.subr.mxu0 0.0
    %989 = vmatpush1.msra.mxu0 0.0
    %990 = vmatprep.subr.mxu0 0.0
    %991 = vmatpush1.msra.mxu0 0.0
    %992 = vmatprep.subr.mxu0 0.0
    %993 = vmatpush1.msra.mxu0 0.0
    %994 = vmatprep.subr.mxu0 0.0
    %995 = vmatpush1.msra.mxu0 0.0
    %996 = vmatprep.subr.mxu0 0.0
    %997 = vmatpush1.msra.mxu0 0.0
    %998 = vmatprep.subr.mxu0 0.0
    %999 = vmatpush1.msra.mxu0 0.0
    %1000 = vmatprep.subr.mxu0 0.0
    %1001 = vmatpush1.msra.mxu0 0.0
    %1002 = vmatprep.subr.mxu0 0.0
    %1003 = vmatpush1.msra.mxu0 0.0
    %1004 = vmatprep.subr.mxu0 0.0
    %1005 = vmatpush1.msra.mxu0 0.0
    %1006 = vmatprep.subr.mxu0 0.0
    %1007 = vmatpush1.msra.mxu0 0.0
    %1008 = vmatprep.subr.mxu0 0.0
    %1009 = vmatpush1.msra.mxu0 0.0
    %1010 = vmatprep.subr.mxu0 0.0
    %1011 = vmatpush1.msra.mxu0 0.0
    %1012 = vmatprep.mubr.f32.mxu0 0.0
    %1013 = vmatmul.mubr.f32.gmra.mrb[0].mxu0 %v946
    %v1014 = vpop.f32.mrb[0].mxu0
    %v1015 = vadd.f32 %v607, %v1014
    %v1016 = vpop.f32.mrb[0].mxu0
    %1017 = vdwg.mxu0
    %v1018 = vmul.f32 %v1015, 0.909
    %v1019 = vxor.u32 %v1015, 2147483648
    %v1020 = vmul.f32 %v1019, 1.442695
    %v1021 = vpow.pop %v1020
    %v1022 = vadd.f32 %v1021, 1.0
    %v1023 = vrcp.pop %v1022
    %v1024 = vmul.f32 1.0, %v1023
    %v1025 = vmul.f32 %v1018, %v1024
    %v1027 = vsel %vm341, %v1025, 0
    %1029 = vmatprep.subr.mxu0 0.0
    %1030 = vmatpush1.msra.mxu0 %v690
    %1031 = vmatprep.subr.mxu0 0.0
    %1032 = vmatpush1.msra.mxu0 %v691
    %1033 = vmatprep.subr.mxu0 0.0
    %1034 = vmatpush1.msra.mxu0 %v692
    %1035 = vmatprep.subr.mxu0 0.0
    %1036 = vmatpush1.msra.mxu0 %v693
    %1037 = vmatprep.subr.mxu0 0.0
    %1038 = vmatpush1.msra.mxu0 0.0
    %1039 = vmatprep.subr.mxu0 0.0
    %1040 = vmatpush1.msra.mxu0 0.0
    %1041 = vmatprep.subr.mxu0 0.0
    %1042 = vmatpush1.msra.mxu0 0.0
    %1043 = vmatprep.subr.mxu0 0.0
    %1044 = vmatpush1.msra.mxu0 0.0
    %1045 = vmatprep.subr.mxu0 0.0
    %1046 = vmatpush1.msra.mxu0 0.0
    %1047 = vmatprep.subr.mxu0 0.0
    %1048 = vmatpush1.msra.mxu0 0.0
    %1049 = vmatprep.subr.mxu0 0.0
    %1050 = vmatpush1.msra.mxu0 0.0
    %1051 = vmatprep.subr.mxu0 0.0
    %1052 = vmatpush1.msra.mxu0 0.0
    %1053 = vmatprep.subr.mxu0 0.0
    %1054 = vmatpush1.msra.mxu0 0.0
    %1055 = vmatprep.subr.mxu0 0.0
    %1056 = vmatpush1.msra.mxu0 0.0
    %1057 = vmatprep.subr.mxu0 0.0
    %1058 = vmatpush1.msra.mxu0 0.0
    %1059 = vmatprep.subr.mxu0 0.0
    %1060 = vmatpush1.msra.mxu0 0.0
    %1061 = vmatprep.subr.mxu0 0.0
    %1062 = vmatpush1.msra.mxu0 0.0
    %1063 = vmatprep.subr.mxu0 0.0
    %1064 = vmatpush1.msra.mxu0 0.0
    %1065 = vmatprep.subr.mxu0 0.0
    %1066 = vmatpush1.msra.mxu0 0.0
    %1067 = vmatprep.subr.mxu0 0.0
    %1068 = vmatpush1.msra.mxu0 0.0
    %1069 = vmatprep.subr.mxu0 0.0
    %1070 = vmatpush1.msra.mxu0 0.0
    %1071 = vmatprep.subr.mxu0 0.0
    %1072 = vmatpush1.msra.mxu0 0.0
    %1073 = vmatprep.subr.mxu0 0.0
    %1074 = vmatpush1.msra.mxu0 0.0
    %1075 = vmatprep.subr.mxu0 0.0
    %1076 = vmatpush1.msra.mxu0 0.0
    %1077 = vmatprep.subr.mxu0 0.0
    %1078 = vmatpush1.msra.mxu0 0.0
    %1079 = vmatprep.subr.mxu0 0.0
    %1080 = vmatpush1.msra.mxu0 0.0
    %1081 = vmatprep.subr.mxu0 0.0
    %1082 = vmatpush1.msra.mxu0 0.0
    %1083 = vmatprep.subr.mxu0 0.0
    %1084 = vmatpush1.msra.mxu0 0.0
    %1085 = vmatprep.subr.mxu0 0.0
    %1086 = vmatpush1.msra.mxu0 0.0
    %1087 = vmatprep.subr.mxu0 0.0
    %1088 = vmatpush1.msra.mxu0 0.0
    %1089 = vmatprep.subr.mxu0 0.0
    %1090 = vmatpush1.msra.mxu0 0.0
    %1091 = vmatprep.subr.mxu0 0.0
    %1092 = vmatpush1.msra.mxu0 0.0
    %1093 = vmatprep.mubr.f32.mxu0 0.0
    %1094 = vmatmul.mubr.f32.gmra.mrb[0].mxu0 %v1027
    %v1095 = vpop.f32.mrb[0].mxu0
    %v1096 = vadd.f32 %v699, %v1095
    %v1097 = vpop.f32.mrb[0].mxu0
    %1098 = vdwg.mxu0
    %v1099 = vtanh.pop %v1096
    %s1100 = scalar_lea.vmem [#allocation2], 8
    %v1101 = vld [vmem:[%s1100] sm:$0xff]
    %v1102 = vmul.f32 %v1099, %v1101
    %v1104 = vsel %vm228, %v1102, 0
    %1106 = vmatprep.subr.mxu0 0.0
    %1107 = vmatpush1.msra.mxu0 %v78
    %1108 = vmatprep.subr.mxu0 0.0
    %1109 = vmatpush1.msra.mxu0 %v79
    %1110 = vmatprep.subr.mxu0 0.0
    %1111 = vmatpush1.msra.mxu0 %v80
    %1112 = vmatprep.subr.mxu0 0.0
    %1113 = vmatpush1.msra.mxu0 %v81
    %1114 = vmatprep.subr.mxu0 0.0
    %1115 = vmatpush1.msra.mxu0 %v82
    %1116 = vmatprep.subr.mxu0 0.0
    %1117 = vmatpush1.msra.mxu0 %v83
    %1118 = vmatprep.subr.mxu0 0.0
    %1119 = vmatpush1.msra.mxu0 %v84
    %1120 = vmatprep.subr.mxu0 0.0
    %1121 = vmatpush1.msra.mxu0 %v85
    %1122 = vmatprep.subr.mxu0 0.0
    %1123 = vmatpush1.msra.mxu0 0.0
    %1124 = vmatprep.subr.mxu0 0.0
    %1125 = vmatpush1.msra.mxu0 0.0
    %1126 = vmatprep.subr.mxu0 0.0
    %1127 = vmatpush1.msra.mxu0 0.0
    %1128 = vmatprep.subr.mxu0 0.0
    %1129 = vmatpush1.msra.mxu0 0.0
    %1130 = vmatprep.subr.mxu0 0.0
    %1131 = vmatpush1.msra.mxu0 0.0
    %1132 = vmatprep.subr.mxu0 0.0
    %1133 = vmatpush1.msra.mxu0 0.0
    %1134 = vmatprep.subr.mxu0 0.0
    %1135 = vmatpush1.msra.mxu0 0.0
    %1136 = vmatprep.subr.mxu0 0.0
    %1137 = vmatpush1.msra.mxu0 0.0
    %1138 = vmatprep.subr.mxu0 0.0
    %1139 = vmatpush1.msra.mxu0 0.0
    %1140 = vmatprep.subr.mxu0 0.0
    %1141 = vmatpush1.msra.mxu0 0.0
    %1142 = vmatprep.subr.mxu0 0.0
    %1143 = vmatpush1.msra.mxu0 0.0
    %1144 = vmatprep.subr.mxu0 0.0
    %1145 = vmatpush1.msra.mxu0 0.0
    %1146 = vmatprep.subr.mxu0 0.0
    %1147 = vmatpush1.msra.mxu0 0.0
    %1148 = vmatprep.subr.mxu0 0.0
    %1149 = vmatpush1.msra.mxu0 0.0
    %1150 = vmatprep.subr.mxu0 0.0
    %1151 = vmatpush1.msra.mxu0 0.0
    %1152 = vmatprep.subr.mxu0 0.0
    %1153 = vmatpush1.msra.mxu0 0.0
    %1154 = vmatprep.subr.mxu0 0.0
    %1155 = vmatpush1.msra.mxu0 0.0
    %1156 = vmatprep.subr.mxu0 0.0
    %1157 = vmatpush1.msra.mxu0 0.0
    %1158 = vmatprep.subr.mxu0 0.0
    %1159 = vmatpush1.msra.mxu0 0.0
    %1160 = vmatprep.subr.mxu0 0.0
    %1161 = vmatpush1.msra.mxu0 0.0
    %1162 = vmatprep.subr.mxu0 0.0
    %1163 = vmatpush1.msra.mxu0 0.0
    %1164 = vmatprep.subr.mxu0 0.0
    %1165 = vmatpush1.msra.mxu0 0.0
    %1166 = vmatprep.subr.mxu0 0.0
    %1167 = vmatpush1.msra.mxu0 0.0
    %1168 = vmatprep.subr.mxu0 0.0
    %1169 = vmatpush1.msra.mxu0 0.0
    %1170 = vmatprep.mubr.f32.mxu0 0.0
    %1171 = vmatmul.mubr.f32.gmra.mrb[0].mxu0 %v1104
    %v1172 = vpop.f32.mrb[0].mxu0
    %v1173 = vadd.f32 0.0, %v1172
    %v1174 = vpop.f32.mrb[0].mxu0
    %1175 = vdwg.mxu0
    %s1176 = smul.f32 %s850, 0.5
    %v1177 = vadd.f32 %v847, %v1173
    %v1178 = vstv %s1176
    %v1179 = vmul.f32 %v1178, %v1177
    %v1180 = vadd.f32 %v504, %v1179
    %s1181 = sld [smem:[#allocation4 + $0x1]]
    %v1182 = vmul.f32 %v1180, 2.0
    %v1183 = vsub.f32 %v1182, %v855
    %v1184 = vstv %s1181
    %v1185 = vmul.f32 %v1184, %v1173
    %v1186 = vadd.f32 %v1183, %v1185
    %s1187 = scalar_lea.vmem %s3, 2
    %v1188 = vld [vmem:[%s1187] sm:$0x1]
    %v1190 = vlaneseq
    %v1191 = vshrl.u32 %v1190, 7
    %v1192 = vsub.s32 0, %v1191
    %v1193 = vrot.slane %v1188, %v1192
    %v1196 = vsel %vm516, %v1186, 0
    %1198 = vmatprep.subr.mxu0 0.0
    %1199 = vmatpush1.msra.mxu0 %v507
    %1200 = vmatprep.subr.mxu0 0.0
    %1201 = vmatpush1.msra.mxu0 %v508
    %1202 = vmatprep.subr.mxu0 0.0
    %1203 = vmatpush1.msra.mxu0 0.0
    %1204 = vmatprep.subr.mxu0 0.0
    %1205 = vmatpush1.msra.mxu0 0.0
    %1206 = vmatprep.subr.mxu0 0.0
    %1207 = vmatpush1.msra.mxu0 0.0
    %1208 = vmatprep.subr.mxu0 0.0
    %1209 = vmatpush1.msra.mxu0 0.0
    %1210 = vmatprep.subr.mxu0 0.0
    %1211 = vmatpush1.msra.mxu0 0.0
    %1212 = vmatprep.subr.mxu0 0.0
    %1213 = vmatpush1.msra.mxu0 0.0
    %1214 = vmatprep.subr.mxu0 0.0
    %1215 = vmatpush1.msra.mxu0 0.0
    %1216 = vmatprep.subr.mxu0 0.0
    %1217 = vmatpush1.msra.mxu0 0.0
    %1218 = vmatprep.subr.mxu0 0.0
    %1219 = vmatpush1.msra.mxu0 0.0
    %1220 = vmatprep.subr.mxu0 0.0
    %1221 = vmatpush1.msra.mxu0 0.0
    %1222 = vmatprep.subr.mxu0 0.0
    %1223 = vmatpush1.msra.mxu0 0.0
    %1224 = vmatprep.subr.mxu0 0.0
    %1225 = vmatpush1.msra.mxu0 0.0
    %1226 = vmatprep.subr.mxu0 0.0
    %1227 = vmatpush1.msra.mxu0 0.0
    %1228 = vmatprep.subr.mxu0 0.0
    %1229 = vmatpush1.msra.mxu0 0.0
    %1230 = vmatprep.subr.mxu0 0.0
    %1231 = vmatpush1.msra.mxu0 0.0
    %1232 = vmatprep.subr.mxu0 0.0
    %1233 = vmatpush1.msra.mxu0 0.0
    %1234 = vmatprep.subr.mxu0 0.0
    %1235 = vmatpush1.msra.mxu0 0.0
    %1236 = vmatprep.subr.mxu0 0.0
    %1237 = vmatpush1.msra.mxu0 0.0
    %1238 = vmatprep.subr.mxu0 0.0
    %1239 = vmatpush1.msra.mxu0 0.0
    %1240 = vmatprep.subr.mxu0 0.0
    %1241 = vmatpush1.msra.mxu0 0.0
    %1242 = vmatprep.subr.mxu0 0.0
    %1243 = vmatpush1.msra.mxu0 0.0
    %1244 = vmatprep.subr.mxu0 0.0
    %1245 = vmatpush1.msra.mxu0 0.0
    %1246 = vmatprep.subr.mxu0 0.0
    %1247 = vmatpush1.msra.mxu0 0.0
    %1248 = vmatprep.subr.mxu0 0.0
    %1249 = vmatpush1.msra.mxu0 0.0
    %1250 = vmatprep.subr.mxu0 0.0
    %1251 = vmatpush1.msra.mxu0 0.0
    %1252 = vmatprep.subr.mxu0 0.0
    %1253 = vmatpush1.msra.mxu0 0.0
    %1254 = vmatprep.subr.mxu0 0.0
    %1255 = vmatpush1.msra.mxu0 0.0
    %1256 = vmatprep.subr.mxu0 0.0
    %1257 = vmatpush1.msra.mxu0 0.0
    %1258 = vmatprep.subr.mxu0 0.0
    %1259 = vmatpush1.msra.mxu0 0.0
    %1260 = vmatprep.subr.mxu0 0.0
    %1261 = vmatpush1.msra.mxu0 0.0
    %1262 = vmatprep.mubr.f32.mxu0 0.0
    %1263 = vmatmul.mubr.f32.gmra.mrb[0].mxu0 %v1196
    %v1264 = vpop.f32.mrb[0].mxu0
    %v1265 = vadd.f32 %v1193, %v1264
    %v1266 = vpop.f32.mrb[0].mxu0
    %1267 = vdwg.mxu0
    %v1268 = vmul.f32 %v1265, 0.909
    %v1269 = vxor.u32 %v1265, 2147483648
    %v1270 = vmul.f32 %v1269, 1.442695
    %v1271 = vpow.pop %v1270
    %v1272 = vadd.f32 %v1271, 1.0
    %v1273 = vrcp.pop %v1272
    %v1274 = vmul.f32 1.0, %v1273
    %v1275 = vmul.f32 %v1268, %v1274
    %v1277 = vsel %vm341, %v1275, 0
    %1279 = vmatprep.subr.mxu0 0.0
    %1280 = vmatpush1.msra.mxu0 %v598
    %1281 = vmatprep.subr.mxu0 0.0
    %1282 = vmatpush1.msra.mxu0 %v599
    %1283 = vmatprep.subr.mxu0 0.0
    %1284 = vmatpush1.msra.mxu0 %v600
    %1285 = vmatprep.subr.mxu0 0.0
    %1286 = vmatpush1.msra.mxu0 %v601
    %1287 = vmatprep.subr.mxu0 0.0
    %1288 = vmatpush1.msra.mxu0 0.0
    %1289 = vmatprep.subr.mxu0 0.0
    %1290 = vmatpush1.msra.mxu0 0.0
    %1291 = vmatprep.subr.mxu0 0.0
    %1292 = vmatpush1.msra.mxu0 0.0
    %1293 = vmatprep.subr.mxu0 0.0
    %1294 = vmatpush1.msra.mxu0 0.0
    %1295 = vmatprep.subr.mxu0 0.0
    %1296 = vmatpush1.msra.mxu0 0.0
    %1297 = vmatprep.subr.mxu0 0.0
    %1298 = vmatpush1.msra.mxu0 0.0
    %1299 = vmatprep.subr.mxu0 0.0
    %1300 = vmatpush1.msra.mxu0 0.0
    %1301 = vmatprep.subr.mxu0 0.0
    %1302 = vmatpush1.msra.mxu0 0.0
    %1303 = vmatprep.subr.mxu0 0.0
    %1304 = vmatpush1.msra.mxu0 0.0
    %1305 = vmatprep.subr.mxu0 0.0
    %1306 = vmatpush1.msra.mxu0 0.0
    %1307 = vmatprep.subr.mxu0 0.0
    %1308 = vmatpush1.msra.mxu0 0.0
    %1309 = vmatprep.subr.mxu0 0.0
    %1310 = vmatpush1.msra.mxu0 0.0
    %1311 = vmatprep.subr.mxu0 0.0
    %1312 = vmatpush1.msra.mxu0 0.0
    %1313 = vmatprep.subr.mxu0 0.0
    %1314 = vmatpush1.msra.mxu0 0.0
    %1315 = vmatprep.subr.mxu0 0.0
    %1316 = vmatpush1.msra.mxu0 0.0
    %1317 = vmatprep.subr.mxu0 0.0
    %1318 = vmatpush1.msra.mxu0 0.0
    %1319 = vmatprep.subr.mxu0 0.0
    %1320 = vmatpush1.msra.mxu0 0.0
    %1321 = vmatprep.subr.mxu0 0.0
    %1322 = vmatpush1.msra.mxu0 0.0
    %1323 = vmatprep.subr.mxu0 0.0
    %1324 = vmatpush1.msra.mxu0 0.0
    %1325 = vmatprep.subr.mxu0 0.0
    %1326 = vmatpush1.msra.mxu0 0.0
    %1327 = vmatprep.subr.mxu0 0.0
    %1328 = vmatpush1.msra.mxu0 0.0
    %1329 = vmatprep.subr.mxu0 0.0
    %1330 = vmatpush1.msra.mxu0 0.0
    %1331 = vmatprep.subr.mxu0 0.0
    %1332 = vmatpush1.msra.mxu0 0.0
    %1333 = vmatprep.subr.mxu0 0.0
    %1334 = vmatpush1.msra.mxu0 0.0
    %1335 = vmatprep.subr.mxu0 0.0
    %1336 = vmatpush1.msra.mxu0 0.0
    %1337 = vmatprep.subr.mxu0 0.0
    %1338 = vmatpush1.msra.mxu0 0.0
    %1339 = vmatprep.subr.mxu0 0.0
    %1340 = vmatpush1.msra.mxu0 0.0
    %1341 = vmatprep.subr.mxu0 0.0
    %1342 = vmatpush1.msra.mxu0 0.0
    %1343 = vmatprep.mubr.f32.mxu0 0.0
    %1344 = vmatmul.mubr.f32.gmra.mrb[0].mxu0 %v1277
    %v1345 = vpop.f32.mrb[0].mxu0
    %v1346 = vadd.f32 %v607, %v1345
    %v1347 = vpop.f32.mrb[0].mxu0
    %1348 = vdwg.mxu0
    %v1349 = vmul.f32 %v1346, 0.909
    %v1350 = vxor.u32 %v1346, 2147483648
    %v1351 = vmul.f32 %v1350, 1.442695
    %v1352 = vpow.pop %v1351
    %v1353 = vadd.f32 %v1352, 1.0
    %v1354 = vrcp.pop %v1353
    %v1355 = vmul.f32 1.0, %v1354
    %v1356 = vmul.f32 %v1349, %v1355
    %v1358 = vsel %vm341, %v1356, 0
    %1360 = vmatprep.subr.mxu0 0.0
    %1361 = vmatpush1.msra.mxu0 %v690
    %1362 = vmatprep.subr.mxu0 0.0
    %1363 = vmatpush1.msra.mxu0 %v691
    %1364 = vmatprep.subr.mxu0 0.0
    %1365 = vmatpush1.msra.mxu0 %v692
    %1366 = vmatprep.subr.mxu0 0.0
    %1367 = vmatpush1.msra.mxu0 %v693
    %1368 = vmatprep.subr.mxu0 0.0
    %1369 = vmatpush1.msra.mxu0 0.0
    %1370 = vmatprep.subr.mxu0 0.0
    %1371 = vmatpush1.msra.mxu0 0.0
    %1372 = vmatprep.subr.mxu0 0.0
    %1373 = vmatpush1.msra.mxu0 0.0
    %1374 = vmatprep.subr.mxu0 0.0
    %1375 = vmatpush1.msra.mxu0 0.0
    %1376 = vmatprep.subr.mxu0 0.0
    %1377 = vmatpush1.msra.mxu0 0.0
    %1378 = vmatprep.subr.mxu0 0.0
    %1379 = vmatpush1.msra.mxu0 0.0
    %1380 = vmatprep.subr.mxu0 0.0
    %1381 = vmatpush1.msra.mxu0 0.0
    %1382 = vmatprep.subr.mxu0 0.0
    %1383 = vmatpush1.msra.mxu0 0.0
    %1384 = vmatprep.subr.mxu0 0.0
    %1385 = vmatpush1.msra.mxu0 0.0
    %1386 = vmatprep.subr.mxu0 0.0
    %1387 = vmatpush1.msra.mxu0 0.0
    %1388 = vmatprep.subr.mxu0 0.0
    %1389 = vmatpush1.msra.mxu0 0.0
    %1390 = vmatprep.subr.mxu0 0.0
    %1391 = vmatpush1.msra.mxu0 0.0
    %1392 = vmatprep.subr.mxu0 0.0
    %1393 = vmatpush1.msra.mxu0 0.0
    %1394 = vmatprep.subr.mxu0 0.0
    %1395 = vmatpush1.msra.mxu0 0.0
    %1396 = vmatprep.subr.mxu0 0.0
    %1397 = vmatpush1.msra.mxu0 0.0
    %1398 = vmatprep.subr.mxu0 0.0
    %1399 = vmatpush1.msra.mxu0 0.0
    %1400 = vmatprep.subr.mxu0 0.0
    %1401 = vmatpush1.msra.mxu0 0.0
    %1402 = vmatprep.subr.mxu0 0.0
    %1403 = vmatpush1.msra.mxu0 0.0
    %1404 = vmatprep.subr.mxu0 0.0
    %1405 = vmatpush1.msra.mxu0 0.0
    %1406 = vmatprep.subr.mxu0 0.0
    %1407 = vmatpush1.msra.mxu0 0.0
    %1408 = vmatprep.subr.mxu0 0.0
    %1409 = vmatpush1.msra.mxu0 0.0
    %1410 = vmatprep.subr.mxu0 0.0
    %1411 = vmatpush1.msra.mxu0 0.0
    %1412 = vmatprep.subr.mxu0 0.0
    %1413 = vmatpush1.msra.mxu0 0.0
    %1414 = vmatprep.subr.mxu0 0.0
    %1415 = vmatpush1.msra.mxu0 0.0
    %1416 = vmatprep.subr.mxu0 0.0
    %1417 = vmatpush1.msra.mxu0 0.0
    %1418 = vmatprep.subr.mxu0 0.0
    %1419 = vmatpush1.msra.mxu0 0.0
    %1420 = vmatprep.subr.mxu0 0.0
    %1421 = vmatpush1.msra.mxu0 0.0
    %1422 = vmatprep.subr.mxu0 0.0
    %1423 = vmatpush1.msra.mxu0 0.0
    %1424 = vmatprep.mubr.f32.mxu0 0.0
    %1425 = vmatmul.mubr.f32.gmra.mrb[0].mxu0 %v1358
    %v1426 = vpop.f32.mrb[0].mxu0
    %v1427 = vadd.f32 %v699, %v1426
    %v1428 = vpop.f32.mrb[0].mxu0
    %1429 = vdwg.mxu0
    %v1430 = vtanh.pop %v1427
    %s1431 = scalar_lea.vmem [#allocation2], 16
    %v1432 = vld [vmem:[%s1431] sm:$0xff]
    %v1433 = vmul.f32 %v1430, %v1432
    %v1435 = vsel %vm228, %v1433, 0
    %1437 = vmatprep.subr.mxu0 0.0
    %1438 = vmatpush1.msra.mxu0 %v78
    %1439 = vmatprep.subr.mxu0 0.0
    %1440 = vmatpush1.msra.mxu0 %v79
    %1441 = vmatprep.subr.mxu0 0.0
    %1442 = vmatpush1.msra.mxu0 %v80
    %1443 = vmatprep.subr.mxu0 0.0
    %1444 = vmatpush1.msra.mxu0 %v81
    %1445 = vmatprep.subr.mxu0 0.0
    %1446 = vmatpush1.msra.mxu0 %v82
    %1447 = vmatprep.subr.mxu0 0.0
    %1448 = vmatpush1.msra.mxu0 %v83
    %1449 = vmatprep.subr.mxu0 0.0
    %1450 = vmatpush1.msra.mxu0 %v84
    %1451 = vmatprep.subr.mxu0 0.0
    %1452 = vmatpush1.msra.mxu0 %v85
    %1453 = vmatprep.subr.mxu0 0.0
    %1454 = vmatpush1.msra.mxu0 0.0
    %1455 = vmatprep.subr.mxu0 0.0
    %1456 = vmatpush1.msra.mxu0 0.0
    %1457 = vmatprep.subr.mxu0 0.0
    %1458 = vmatpush1.msra.mxu0 0.0
    %1459 = vmatprep.subr.mxu0 0.0
    %1460 = vmatpush1.msra.mxu0 0.0
    %1461 = vmatprep.subr.mxu0 0.0
    %1462 = vmatpush1.msra.mxu0 0.0
    %1463 = vmatprep.subr.mxu0 0.0
    %1464 = vmatpush1.msra.mxu0 0.0
    %1465 = vmatprep.subr.mxu0 0.0
    %1466 = vmatpush1.msra.mxu0 0.0
    %1467 = vmatprep.subr.mxu0 0.0
    %1468 = vmatpush1.msra.mxu0 0.0
    %1469 = vmatprep.subr.mxu0 0.0
    %1470 = vmatpush1.msra.mxu0 0.0
    %1471 = vmatprep.subr.mxu0 0.0
    %1472 = vmatpush1.msra.mxu0 0.0
    %1473 = vmatprep.subr.mxu0 0.0
    %1474 = vmatpush1.msra.mxu0 0.0
    %1475 = vmatprep.subr.mxu0 0.0
    %1476 = vmatpush1.msra.mxu0 0.0
    %1477 = vmatprep.subr.mxu0 0.0
    %1478 = vmatpush1.msra.mxu0 0.0
    %1479 = vmatprep.subr.mxu0 0.0
    %1480 = vmatpush1.msra.mxu0 0.0
    %1481 = vmatprep.subr.mxu0 0.0
    %1482 = vmatpush1.msra.mxu0 0.0
    %1483 = vmatprep.subr.mxu0 0.0
    %1484 = vmatpush1.msra.mxu0 0.0
    %1485 = vmatprep.subr.mxu0 0.0
    %1486 = vmatpush1.msra.mxu0 0.0
    %1487 = vmatprep.subr.mxu0 0.0
    %1488 = vmatpush1.msra.mxu0 0.0
    %1489 = vmatprep.subr.mxu0 0.0
    %1490 = vmatpush1.msra.mxu0 0.0
    %1491 = vmatprep.subr.mxu0 0.0
    %1492 = vmatpush1.msra.mxu0 0.0
    %1493 = vmatprep.subr.mxu0 0.0
    %1494 = vmatpush1.msra.mxu0 0.0
    %1495 = vmatprep.subr.mxu0 0.0
    %1496 = vmatpush1.msra.mxu0 0.0
    %1497 = vmatprep.subr.mxu0 0.0
    %1498 = vmatpush1.msra.mxu0 0.0
    %1499 = vmatprep.subr.mxu0 0.0
    %1500 = vmatpush1.msra.mxu0 0.0
    %1501 = vmatprep.mubr.f32.mxu0 0.0
    %1502 = vmatmul.mubr.f32.gmra.mrb[0].mxu0 %v1435
    %v1503 = vpop.f32.mrb[0].mxu0
    %v1504 = vadd.f32 0.0, %v1503
    %v1505 = vpop.f32.mrb[0].mxu0
    %1506 = vdwg.mxu0
    %s1507 = smul.f32 %s1181, 0.5
    %v1508 = vadd.f32 %v1173, %v1504
    %v1509 = vstv %s1507
    %v1510 = vmul.f32 %v1509, %v1508
    %v1511 = vadd.f32 %v1180, %v1510
    %s1512 = sld [smem:[#allocation4 + $0x2]]
    %v1513 = vmul.f32 %v1511, 2.0
    %v1514 = vsub.f32 %v1513, %v1186
    %v1515 = vstv %s1512
    %v1516 = vmul.f32 %v1515, %v1504
    %v1517 = vadd.f32 %v1514, %v1516
    %s1518 = scalar_lea.vmem %s3, 3
    %v1519 = vld [vmem:[%s1518] sm:$0x1]
    %v1521 = vlaneseq
    %v1522 = vshrl.u32 %v1521, 7
    %v1523 = vsub.s32 0, %v1522
    %v1524 = vrot.slane %v1519, %v1523
    %v1527 = vsel %vm516, %v1517, 0
    %1529 = vmatprep.subr.mxu0 0.0
    %1530 = vmatpush1.msra.mxu0 %v507
    %1531 = vmatprep.subr.mxu0 0.0
    %1532 = vmatpush1.msra.mxu0 %v508
    %1533 = vmatprep.subr.mxu0 0.0
    %1534 = vmatpush1.msra.mxu0 0.0
    %1535 = vmatprep.subr.mxu0 0.0
    %1536 = vmatpush1.msra.mxu0 0.0
    %1537 = vmatprep.subr.mxu0 0.0
    %1538 = vmatpush1.msra.mxu0 0.0
    %1539 = vmatprep.subr.mxu0 0.0
    %1540 = vmatpush1.msra.mxu0 0.0
    %1541 = vmatprep.subr.mxu0 0.0
    %1542 = vmatpush1.msra.mxu0 0.0
    %1543 = vmatprep.subr.mxu0 0.0
    %1544 = vmatpush1.msra.mxu0 0.0
    %1545 = vmatprep.subr.mxu0 0.0
    %1546 = vmatpush1.msra.mxu0 0.0
    %1547 = vmatprep.subr.mxu0 0.0
    %1548 = vmatpush1.msra.mxu0 0.0
    %1549 = vmatprep.subr.mxu0 0.0
    %1550 = vmatpush1.msra.mxu0 0.0
    %1551 = vmatprep.subr.mxu0 0.0
    %1552 = vmatpush1.msra.mxu0 0.0
    %1553 = vmatprep.subr.mxu0 0.0
    %1554 = vmatpush1.msra.mxu0 0.0
    %1555 = vmatprep.subr.mxu0 0.0
    %1556 = vmatpush1.msra.mxu0 0.0
    %1557 = vmatprep.subr.mxu0 0.0
    %1558 = vmatpush1.msra.mxu0 0.0
    %1559 = vmatprep.subr.mxu0 0.0
    %1560 = vmatpush1.msra.mxu0 0.0
    %1561 = vmatprep.subr.mxu0 0.0
    %1562 = vmatpush1.msra.mxu0 0.0
    %1563 = vmatprep.subr.mxu0 0.0
    %1564 = vmatpush1.msra.mxu0 0.0
    %1565 = vmatprep.subr.mxu0 0.0
    %1566 = vmatpush1.msra.mxu0 0.0
    %1567 = vmatprep.subr.mxu0 0.0
    %1568 = vmatpush1.msra.mxu0 0.0
    %1569 = vmatprep.subr.mxu0 0.0
    %1570 = vmatpush1.msra.mxu0 0.0
    %1571 = vmatprep.subr.mxu0 0.0
    %1572 = vmatpush1.msra.mxu0 0.0
    %1573 = vmatprep.subr.mxu0 0.0
    %1574 = vmatpush1.msra.mxu0 0.0
    %1575 = vmatprep.subr.mxu0 0.0
    %1576 = vmatpush1.msra.mxu0 0.0
    %1577 = vmatprep.subr.mxu0 0.0
    %1578 = vmatpush1.msra.mxu0 0.0
    %1579 = vmatprep.subr.mxu0 0.0
    %1580 = vmatpush1.msra.mxu0 0.0
    %1581 = vmatprep.subr.mxu0 0.0
    %1582 = vmatpush1.msra.mxu0 0.0
    %1583 = vmatprep.subr.mxu0 0.0
    %1584 = vmatpush1.msra.mxu0 0.0
    %1585 = vmatprep.subr.mxu0 0.0
    %1586 = vmatpush1.msra.mxu0 0.0
    %1587 = vmatprep.subr.mxu0 0.0
    %1588 = vmatpush1.msra.mxu0 0.0
    %1589 = vmatprep.subr.mxu0 0.0
    %1590 = vmatpush1.msra.mxu0 0.0
    %1591 = vmatprep.subr.mxu0 0.0
    %1592 = vmatpush1.msra.mxu0 0.0
    %1593 = vmatprep.mubr.f32.mxu0 0.0
    %1594 = vmatmul.mubr.f32.gmra.mrb[0].mxu0 %v1527
    %v1595 = vpop.f32.mrb[0].mxu0
    %v1596 = vadd.f32 %v1524, %v1595
    %v1597 = vpop.f32.mrb[0].mxu0
    %1598 = vdwg.mxu0
    %v1599 = vmul.f32 %v1596, 0.909
    %v1600 = vxor.u32 %v1596, 2147483648
    %v1601 = vmul.f32 %v1600, 1.442695
    %v1602 = vpow.pop %v1601
    %v1603 = vadd.f32 %v1602, 1.0
    %v1604 = vrcp.pop %v1603
    %v1605 = vmul.f32 1.0, %v1604
    %v1606 = vmul.f32 %v1599, %v1605
    %v1608 = vsel %vm341, %v1606, 0
    %1610 = vmatprep.subr.mxu0 0.0
    %1611 = vmatpush1.msra.mxu0 %v598
    %1612 = vmatprep.subr.mxu0 0.0
    %1613 = vmatpush1.msra.mxu0 %v599
    %1614 = vmatprep.subr.mxu0 0.0
    %1615 = vmatpush1.msra.mxu0 %v600
    %1616 = vmatprep.subr.mxu0 0.0
    %1617 = vmatpush1.msra.mxu0 %v601
    %1618 = vmatprep.subr.mxu0 0.0
    %1619 = vmatpush1.msra.mxu0 0.0
    %1620 = vmatprep.subr.mxu0 0.0
    %1621 = vmatpush1.msra.mxu0 0.0
    %1622 = vmatprep.subr.mxu0 0.0
    %1623 = vmatpush1.msra.mxu0 0.0
    %1624 = vmatprep.subr.mxu0 0.0
    %1625 = vmatpush1.msra.mxu0 0.0
    %1626 = vmatprep.subr.mxu0 0.0
    %1627 = vmatpush1.msra.mxu0 0.0
    %1628 = vmatprep.subr.mxu0 0.0
    %1629 = vmatpush1.msra.mxu0 0.0
    %1630 = vmatprep.subr.mxu0 0.0
    %1631 = vmatpush1.msra.mxu0 0.0
    %1632 = vmatprep.subr.mxu0 0.0
    %1633 = vmatpush1.msra.mxu0 0.0
    %1634 = vmatprep.subr.mxu0 0.0
    %1635 = vmatpush1.msra.mxu0 0.0
    %1636 = vmatprep.subr.mxu0 0.0
    %1637 = vmatpush1.msra.mxu0 0.0
    %1638 = vmatprep.subr.mxu0 0.0
    %1639 = vmatpush1.msra.mxu0 0.0
    %1640 = vmatprep.subr.mxu0 0.0
    %1641 = vmatpush1.msra.mxu0 0.0
    %1642 = vmatprep.subr.mxu0 0.0
    %1643 = vmatpush1.msra.mxu0 0.0
    %1644 = vmatprep.subr.mxu0 0.0
    %1645 = vmatpush1.msra.mxu0 0.0
    %1646 = vmatprep.subr.mxu0 0.0
    %1647 = vmatpush1.msra.mxu0 0.0
    %1648 = vmatprep.subr.mxu0 0.0
    %1649 = vmatpush1.msra.mxu0 0.0
    %1650 = vmatprep.subr.mxu0 0.0
    %1651 = vmatpush1.msra.mxu0 0.0
    %1652 = vmatprep.subr.mxu0 0.0
    %1653 = vmatpush1.msra.mxu0 0.0
    %1654 = vmatprep.subr.mxu0 0.0
    %1655 = vmatpush1.msra.mxu0 0.0
    %1656 = vmatprep.subr.mxu0 0.0
    %1657 = vmatpush1.msra.mxu0 0.0
    %1658 = vmatprep.subr.mxu0 0.0
    %1659 = vmatpush1.msra.mxu0 0.0
    %1660 = vmatprep.subr.mxu0 0.0
    %1661 = vmatpush1.msra.mxu0 0.0
    %1662 = vmatprep.subr.mxu0 0.0
    %1663 = vmatpush1.msra.mxu0 0.0
    %1664 = vmatprep.subr.mxu0 0.0
    %1665 = vmatpush1.msra.mxu0 0.0
    %1666 = vmatprep.subr.mxu0 0.0
    %1667 = vmatpush1.msra.mxu0 0.0
    %1668 = vmatprep.subr.mxu0 0.0
    %1669 = vmatpush1.msra.mxu0 0.0
    %1670 = vmatprep.subr.mxu0 0.0
    %1671 = vmatpush1.msra.mxu0 0.0
    %1672 = vmatprep.subr.mxu0 0.0
    %1673 = vmatpush1.msra.mxu0 0.0
    %1674 = vmatprep.mubr.f32.mxu0 0.0
    %1675 = vmatmul.mubr.f32.gmra.mrb[0].mxu0 %v1608
    %v1676 = vpop.f32.mrb[0].mxu0
    %v1677 = vadd.f32 %v607, %v1676
    %v1678 = vpop.f32.mrb[0].mxu0
    %1679 = vdwg.mxu0
    %v1680 = vmul.f32 %v1677, 0.909
    %v1681 = vxor.u32 %v1677, 2147483648
    %v1682 = vmul.f32 %v1681, 1.442695
    %v1683 = vpow.pop %v1682
    %v1684 = vadd.f32 %v1683, 1.0
    %v1685 = vrcp.pop %v1684
    %v1686 = vmul.f32 1.0, %v1685
    %v1687 = vmul.f32 %v1680, %v1686
    %v1689 = vsel %vm341, %v1687, 0
    %1691 = vmatprep.subr.mxu0 0.0
    %1692 = vmatpush1.msra.mxu0 %v690
    %1693 = vmatprep.subr.mxu0 0.0
    %1694 = vmatpush1.msra.mxu0 %v691
    %1695 = vmatprep.subr.mxu0 0.0
    %1696 = vmatpush1.msra.mxu0 %v692
    %1697 = vmatprep.subr.mxu0 0.0
    %1698 = vmatpush1.msra.mxu0 %v693
    %1699 = vmatprep.subr.mxu0 0.0
    %1700 = vmatpush1.msra.mxu0 0.0
    %1701 = vmatprep.subr.mxu0 0.0
    %1702 = vmatpush1.msra.mxu0 0.0
    %1703 = vmatprep.subr.mxu0 0.0
    %1704 = vmatpush1.msra.mxu0 0.0
    %1705 = vmatprep.subr.mxu0 0.0
    %1706 = vmatpush1.msra.mxu0 0.0
    %1707 = vmatprep.subr.mxu0 0.0
    %1708 = vmatpush1.msra.mxu0 0.0
    %1709 = vmatprep.subr.mxu0 0.0
    %1710 = vmatpush1.msra.mxu0 0.0
    %1711 = vmatprep.subr.mxu0 0.0
    %1712 = vmatpush1.msra.mxu0 0.0
    %1713 = vmatprep.subr.mxu0 0.0
    %1714 = vmatpush1.msra.mxu0 0.0
    %1715 = vmatprep.subr.mxu0 0.0
    %1716 = vmatpush1.msra.mxu0 0.0
    %1717 = vmatprep.subr.mxu0 0.0
    %1718 = vmatpush1.msra.mxu0 0.0
    %1719 = vmatprep.subr.mxu0 0.0
    %1720 = vmatpush1.msra.mxu0 0.0
    %1721 = vmatprep.subr.mxu0 0.0
    %1722 = vmatpush1.msra.mxu0 0.0
    %1723 = vmatprep.subr.mxu0 0.0
    %1724 = vmatpush1.msra.mxu0 0.0
    %1725 = vmatprep.subr.mxu0 0.0
    %1726 = vmatpush1.msra.mxu0 0.0
    %1727 = vmatprep.subr.mxu0 0.0
    %1728 = vmatpush1.msra.mxu0 0.0
    %1729 = vmatprep.subr.mxu0 0.0
    %1730 = vmatpush1.msra.mxu0 0.0
    %1731 = vmatprep.subr.mxu0 0.0
    %1732 = vmatpush1.msra.mxu0 0.0
    %1733 = vmatprep.subr.mxu0 0.0
    %1734 = vmatpush1.msra.mxu0 0.0
    %1735 = vmatprep.subr.mxu0 0.0
    %1736 = vmatpush1.msra.mxu0 0.0
    %1737 = vmatprep.subr.mxu0 0.0
    %1738 = vmatpush1.msra.mxu0 0.0
    %1739 = vmatprep.subr.mxu0 0.0
    %1740 = vmatpush1.msra.mxu0 0.0
    %1741 = vmatprep.subr.mxu0 0.0
    %1742 = vmatpush1.msra.mxu0 0.0
    %1743 = vmatprep.subr.mxu0 0.0
    %1744 = vmatpush1.msra.mxu0 0.0
    %1745 = vmatprep.subr.mxu0 0.0
    %1746 = vmatpush1.msra.mxu0 0.0
    %1747 = vmatprep.subr.mxu0 0.0
    %1748 = vmatpush1.msra.mxu0 0.0
    %1749 = vmatprep.subr.mxu0 0.0
    %1750 = vmatpush1.msra.mxu0 0.0
    %1751 = vmatprep.subr.mxu0 0.0
    %1752 = vmatpush1.msra.mxu0 0.0
    %1753 = vmatprep.subr.mxu0 0.0
    %1754 = vmatpush1.msra.mxu0 0.0
    %1755 = vmatprep.mubr.f32.mxu0 0.0
    %1756 = vmatmul.mubr.f32.gmra.mrb[0].mxu0 %v1689
    %v1757 = vpop.f32.mrb[0].mxu0
    %v1758 = vadd.f32 %v699, %v1757
    %v1759 = vpop.f32.mrb[0].mxu0
    %1760 = vdwg.mxu0
    %v1761 = vtanh.pop %v1758
    %s1762 = scalar_lea.vmem [#allocation2], 24
    %v1763 = vld [vmem:[%s1762] sm:$0xff]
    %v1764 = vmul.f32 %v1761, %v1763
    %v1766 = vsel %vm228, %v1764, 0
    %1768 = vmatprep.subr.mxu0 0.0
    %1769 = vmatpush1.msra.mxu0 %v78
    %1770 = vmatprep.subr.mxu0 0.0
    %1771 = vmatpush1.msra.mxu0 %v79
    %1772 = vmatprep.subr.mxu0 0.0
    %1773 = vmatpush1.msra.mxu0 %v80
    %1774 = vmatprep.subr.mxu0 0.0
    %1775 = vmatpush1.msra.mxu0 %v81
    %1776 = vmatprep.subr.mxu0 0.0
    %1777 = vmatpush1.msra.mxu0 %v82
    %1778 = vmatprep.subr.mxu0 0.0
    %1779 = vmatpush1.msra.mxu0 %v83
    %1780 = vmatprep.subr.mxu0 0.0
    %1781 = vmatpush1.msra.mxu0 %v84
    %1782 = vmatprep.subr.mxu0 0.0
    %1783 = vmatpush1.msra.mxu0 %v85
    %1784 = vmatprep.subr.mxu0 0.0
    %1785 = vmatpush1.msra.mxu0 0.0
    %1786 = vmatprep.subr.mxu0 0.0
    %1787 = vmatpush1.msra.mxu0 0.0
    %1788 = vmatprep.subr.mxu0 0.0
    %1789 = vmatpush1.msra.mxu0 0.0
    %1790 = vmatprep.subr.mxu0 0.0
    %1791 = vmatpush1.msra.mxu0 0.0
    %1792 = vmatprep.subr.mxu0 0.0
    %1793 = vmatpush1.msra.mxu0 0.0
    %1794 = vmatprep.subr.mxu0 0.0
    %1795 = vmatpush1.msra.mxu0 0.0
    %1796 = vmatprep.subr.mxu0 0.0
    %1797 = vmatpush1.msra.mxu0 0.0
    %1798 = vmatprep.subr.mxu0 0.0
    %1799 = vmatpush1.msra.mxu0 0.0
    %1800 = vmatprep.subr.mxu0 0.0
    %1801 = vmatpush1.msra.mxu0 0.0
    %1802 = vmatprep.subr.mxu0 0.0
    %1803 = vmatpush1.msra.mxu0 0.0
    %1804 = vmatprep.subr.mxu0 0.0
    %1805 = vmatpush1.msra.mxu0 0.0
    %1806 = vmatprep.subr.mxu0 0.0
    %1807 = vmatpush1.msra.mxu0 0.0
    %1808 = vmatprep.subr.mxu0 0.0
    %1809 = vmatpush1.msra.mxu0 0.0
    %1810 = vmatprep.subr.mxu0 0.0
    %1811 = vmatpush1.msra.mxu0 0.0
    %1812 = vmatprep.subr.mxu0 0.0
    %1813 = vmatpush1.msra.mxu0 0.0
    %1814 = vmatprep.subr.mxu0 0.0
    %1815 = vmatpush1.msra.mxu0 0.0
    %1816 = vmatprep.subr.mxu0 0.0
    %1817 = vmatpush1.msra.mxu0 0.0
    %1818 = vmatprep.subr.mxu0 0.0
    %1819 = vmatpush1.msra.mxu0 0.0
    %1820 = vmatprep.subr.mxu0 0.0
    %1821 = vmatpush1.msra.mxu0 0.0
    %1822 = vmatprep.subr.mxu0 0.0
    %1823 = vmatpush1.msra.mxu0 0.0
    %1824 = vmatprep.subr.mxu0 0.0
    %1825 = vmatpush1.msra.mxu0 0.0
    %1826 = vmatprep.subr.mxu0 0.0
    %1827 = vmatpush1.msra.mxu0 0.0
    %1828 = vmatprep.subr.mxu0 0.0
    %1829 = vmatpush1.msra.mxu0 0.0
    %1830 = vmatprep.subr.mxu0 0.0
    %1831 = vmatpush1.msra.mxu0 0.0
    %1832 = vmatprep.mubr.f32.mxu0 0.0
    %1833 = vmatmul.mubr.f32.gmra.mrb[0].mxu0 %v1766
    %v1834 = vpop.f32.mrb[0].mxu0
    %v1835 = vadd.f32 0.0, %v1834
    %v1836 = vpop.f32.mrb[0].mxu0
    %1837 = vdwg.mxu0
    %s1838 = smul.f32 %s1512, 0.5
    %v1839 = vadd.f32 %v1504, %v1835
    %v1840 = vstv %s1838
    %v1841 = vmul.f32 %v1840, %v1839
    %v1842 = vadd.f32 %v1511, %v1841
    %s1843 = sld [smem:[#allocation4 + $0x3]]
    %v1844 = vmul.f32 %v1842, 2.0
    %v1845 = vsub.f32 %v1844, %v1517
    %v1846 = vstv %s1843
    %v1847 = vmul.f32 %v1846, %v1835
    %v1848 = vadd.f32 %v1845, %v1847
    %s1849 = scalar_lea.vmem %s3, 4
    %v1850 = vld [vmem:[%s1849] sm:$0x1]
    %v1852 = vlaneseq
    %v1853 = vshrl.u32 %v1852, 7
    %v1854 = vsub.s32 0, %v1853
    %v1855 = vrot.slane %v1850, %v1854
    %v1858 = vsel %vm516, %v1848, 0
    %1860 = vmatprep.subr.mxu0 0.0
    %1861 = vmatpush1.msra.mxu0 %v507
    %1862 = vmatprep.subr.mxu0 0.0
    %1863 = vmatpush1.msra.mxu0 %v508
    %1864 = vmatprep.subr.mxu0 0.0
    %1865 = vmatpush1.msra.mxu0 0.0
    %1866 = vmatprep.subr.mxu0 0.0
    %1867 = vmatpush1.msra.mxu0 0.0
    %1868 = vmatprep.subr.mxu0 0.0
    %1869 = vmatpush1.msra.mxu0 0.0
    %1870 = vmatprep.subr.mxu0 0.0
    %1871 = vmatpush1.msra.mxu0 0.0
    %1872 = vmatprep.subr.mxu0 0.0
    %1873 = vmatpush1.msra.mxu0 0.0
    %1874 = vmatprep.subr.mxu0 0.0
    %1875 = vmatpush1.msra.mxu0 0.0
    %1876 = vmatprep.subr.mxu0 0.0
    %1877 = vmatpush1.msra.mxu0 0.0
    %1878 = vmatprep.subr.mxu0 0.0
    %1879 = vmatpush1.msra.mxu0 0.0
    %1880 = vmatprep.subr.mxu0 0.0
    %1881 = vmatpush1.msra.mxu0 0.0
    %1882 = vmatprep.subr.mxu0 0.0
    %1883 = vmatpush1.msra.mxu0 0.0
    %1884 = vmatprep.subr.mxu0 0.0
    %1885 = vmatpush1.msra.mxu0 0.0
    %1886 = vmatprep.subr.mxu0 0.0
    %1887 = vmatpush1.msra.mxu0 0.0
    %1888 = vmatprep.subr.mxu0 0.0
    %1889 = vmatpush1.msra.mxu0 0.0
    %1890 = vmatprep.subr.mxu0 0.0
    %1891 = vmatpush1.msra.mxu0 0.0
    %1892 = vmatprep.subr.mxu0 0.0
    %1893 = vmatpush1.msra.mxu0 0.0
    %1894 = vmatprep.subr.mxu0 0.0
    %1895 = vmatpush1.msra.mxu0 0.0
    %1896 = vmatprep.subr.mxu0 0.0
    %1897 = vmatpush1.msra.mxu0 0.0
    %1898 = vmatprep.subr.mxu0 0.0
    %1899 = vmatpush1.msra.mxu0 0.0
    %1900 = vmatprep.subr.mxu0 0.0
    %1901 = vmatpush1.msra.mxu0 0.0
    %1902 = vmatprep.subr.mxu0 0.0
    %1903 = vmatpush1.msra.mxu0 0.0
    %1904 = vmatprep.subr.mxu0 0.0
    %1905 = vmatpush1.msra.mxu0 0.0
    %1906 = vmatprep.subr.mxu0 0.0
    %1907 = vmatpush1.msra.mxu0 0.0
    %1908 = vmatprep.subr.mxu0 0.0
    %1909 = vmatpush1.msra.mxu0 0.0
    %1910 = vmatprep.subr.mxu0 0.0
    %1911 = vmatpush1.msra.mxu0 0.0
    %1912 = vmatprep.subr.mxu0 0.0
    %1913 = vmatpush1.msra.mxu0 0.0
    %1914 = vmatprep.subr.mxu0 0.0
    %1915 = vmatpush1.msra.mxu0 0.0
    %1916 = vmatprep.subr.mxu0 0.0
    %1917 = vmatpush1.msra.mxu0 0.0
    %1918 = vmatprep.subr.mxu0 0.0
    %1919 = vmatpush1.msra.mxu0 0.0
    %1920 = vmatprep.subr.mxu0 0.0
    %1921 = vmatpush1.msra.mxu0 0.0
    %1922 = vmatprep.subr.mxu0 0.0
    %1923 = vmatpush1.msra.mxu0 0.0
    %1924 = vmatprep.mubr.f32.mxu0 0.0
    %1925 = vmatmul.mubr.f32.gmra.mrb[0].mxu0 %v1858
    %v1926 = vpop.f32.mrb[0].mxu0
    %v1927 = vadd.f32 %v1855, %v1926
    %v1928 = vpop.f32.mrb[0].mxu0
    %1929 = vdwg.mxu0
    %v1930 = vmul.f32 %v1927, 0.909
    %v1931 = vxor.u32 %v1927, 2147483648
    %v1932 = vmul.f32 %v1931, 1.442695
    %v1933 = vpow.pop %v1932
    %v1934 = vadd.f32 %v1933, 1.0
    %v1935 = vrcp.pop %v1934
    %v1936 = vmul.f32 1.0, %v1935
    %v1937 = vmul.f32 %v1930, %v1936
    %v1939 = vsel %vm341, %v1937, 0
    %1941 = vmatprep.subr.mxu0 0.0
    %1942 = vmatpush1.msra.mxu0 %v598
    %1943 = vmatprep.subr.mxu0 0.0
    %1944 = vmatpush1.msra.mxu0 %v599
    %1945 = vmatprep.subr.mxu0 0.0
    %1946 = vmatpush1.msra.mxu0 %v600
    %1947 = vmatprep.subr.mxu0 0.0
    %1948 = vmatpush1.msra.mxu0 %v601
    %1949 = vmatprep.subr.mxu0 0.0
    %1950 = vmatpush1.msra.mxu0 0.0
    %1951 = vmatprep.subr.mxu0 0.0
    %1952 = vmatpush1.msra.mxu0 0.0
    %1953 = vmatprep.subr.mxu0 0.0
    %1954 = vmatpush1.msra.mxu0 0.0
    %1955 = vmatprep.subr.mxu0 0.0
    %1956 = vmatpush1.msra.mxu0 0.0
    %1957 = vmatprep.subr.mxu0 0.0
    %1958 = vmatpush1.msra.mxu0 0.0
    %1959 = vmatprep.subr.mxu0 0.0
    %1960 = vmatpush1.msra.mxu0 0.0
    %1961 = vmatprep.subr.mxu0 0.0
    %1962 = vmatpush1.msra.mxu0 0.0
    %1963 = vmatprep.subr.mxu0 0.0
    %1964 = vmatpush1.msra.mxu0 0.0
    %1965 = vmatprep.subr.mxu0 0.0
    %1966 = vmatpush1.msra.mxu0 0.0
    %1967 = vmatprep.subr.mxu0 0.0
    %1968 = vmatpush1.msra.mxu0 0.0
    %1969 = vmatprep.subr.mxu0 0.0
    %1970 = vmatpush1.msra.mxu0 0.0
    %1971 = vmatprep.subr.mxu0 0.0
    %1972 = vmatpush1.msra.mxu0 0.0
    %1973 = vmatprep.subr.mxu0 0.0
    %1974 = vmatpush1.msra.mxu0 0.0
    %1975 = vmatprep.subr.mxu0 0.0
    %1976 = vmatpush1.msra.mxu0 0.0
    %1977 = vmatprep.subr.mxu0 0.0
    %1978 = vmatpush1.msra.mxu0 0.0
    %1979 = vmatprep.subr.mxu0 0.0
    %1980 = vmatpush1.msra.mxu0 0.0
    %1981 = vmatprep.subr.mxu0 0.0
    %1982 = vmatpush1.msra.mxu0 0.0
    %1983 = vmatprep.subr.mxu0 0.0
    %1984 = vmatpush1.msra.mxu0 0.0
    %1985 = vmatprep.subr.mxu0 0.0
    %1986 = vmatpush1.msra.mxu0 0.0
    %1987 = vmatprep.subr.mxu0 0.0
    %1988 = vmatpush1.msra.mxu0 0.0
    %1989 = vmatprep.subr.mxu0 0.0
    %1990 = vmatpush1.msra.mxu0 0.0
    %1991 = vmatprep.subr.mxu0 0.0
    %1992 = vmatpush1.msra.mxu0 0.0
    %1993 = vmatprep.subr.mxu0 0.0
    %1994 = vmatpush1.msra.mxu0 0.0
    %1995 = vmatprep.subr.mxu0 0.0
    %1996 = vmatpush1.msra.mxu0 0.0
    %1997 = vmatprep.subr.mxu0 0.0
    %1998 = vmatpush1.msra.mxu0 0.0
    %1999 = vmatprep.subr.mxu0 0.0
    %2000 = vmatpush1.msra.mxu0 0.0
    %2001 = vmatprep.subr.mxu0 0.0
    %2002 = vmatpush1.msra.mxu0 0.0
    %2003 = vmatprep.subr.mxu0 0.0
    %2004 = vmatpush1.msra.mxu0 0.0
    %2005 = vmatprep.mubr.f32.mxu0 0.0
    %2006 = vmatmul.mubr.f32.gmra.mrb[0].mxu0 %v1939
    %v2007 = vpop.f32.mrb[0].mxu0
    %v2008 = vadd.f32 %v607, %v2007
    %v2009 = vpop.f32.mrb[0].mxu0
    %2010 = vdwg.mxu0
    %v2011 = vmul.f32 %v2008, 0.909
    %v2012 = vxor.u32 %v2008, 2147483648
    %v2013 = vmul.f32 %v2012, 1.442695
    %v2014 = vpow.pop %v2013
    %v2015 = vadd.f32 %v2014, 1.0
    %v2016 = vrcp.pop %v2015
    %v2017 = vmul.f32 1.0, %v2016
    %v2018 = vmul.f32 %v2011, %v2017
    %v2020 = vsel %vm341, %v2018, 0
    %2022 = vmatprep.subr.mxu0 0.0
    %2023 = vmatpush1.msra.mxu0 %v690
    %2024 = vmatprep.subr.mxu0 0.0
    %2025 = vmatpush1.msra.mxu0 %v691
    %2026 = vmatprep.subr.mxu0 0.0
    %2027 = vmatpush1.msra.mxu0 %v692
    %2028 = vmatprep.subr.mxu0 0.0
    %2029 = vmatpush1.msra.mxu0 %v693
    %2030 = vmatprep.subr.mxu0 0.0
    %2031 = vmatpush1.msra.mxu0 0.0
    %2032 = vmatprep.subr.mxu0 0.0
    %2033 = vmatpush1.msra.mxu0 0.0
    %2034 = vmatprep.subr.mxu0 0.0
    %2035 = vmatpush1.msra.mxu0 0.0
    %2036 = vmatprep.subr.mxu0 0.0
    %2037 = vmatpush1.msra.mxu0 0.0
    %2038 = vmatprep.subr.mxu0 0.0
    %2039 = vmatpush1.msra.mxu0 0.0
    %2040 = vmatprep.subr.mxu0 0.0
    %2041 = vmatpush1.msra.mxu0 0.0
    %2042 = vmatprep.subr.mxu0 0.0
    %2043 = vmatpush1.msra.mxu0 0.0
    %2044 = vmatprep.subr.mxu0 0.0
    %2045 = vmatpush1.msra.mxu0 0.0
    %2046 = vmatprep.subr.mxu0 0.0
    %2047 = vmatpush1.msra.mxu0 0.0
    %2048 = vmatprep.subr.mxu0 0.0
    %2049 = vmatpush1.msra.mxu0 0.0
    %2050 = vmatprep.subr.mxu0 0.0
    %2051 = vmatpush1.msra.mxu0 0.0
    %2052 = vmatprep.subr.mxu0 0.0
    %2053 = vmatpush1.msra.mxu0 0.0
    %2054 = vmatprep.subr.mxu0 0.0
    %2055 = vmatpush1.msra.mxu0 0.0
    %2056 = vmatprep.subr.mxu0 0.0
    %2057 = vmatpush1.msra.mxu0 0.0
    %2058 = vmatprep.subr.mxu0 0.0
    %2059 = vmatpush1.msra.mxu0 0.0
    %2060 = vmatprep.subr.mxu0 0.0
    %2061 = vmatpush1.msra.mxu0 0.0
    %2062 = vmatprep.subr.mxu0 0.0
    %2063 = vmatpush1.msra.mxu0 0.0
    %2064 = vmatprep.subr.mxu0 0.0
    %2065 = vmatpush1.msra.mxu0 0.0
    %2066 = vmatprep.subr.mxu0 0.0
    %2067 = vmatpush1.msra.mxu0 0.0
    %2068 = vmatprep.subr.mxu0 0.0
    %2069 = vmatpush1.msra.mxu0 0.0
    %2070 = vmatprep.subr.mxu0 0.0
    %2071 = vmatpush1.msra.mxu0 0.0
    %2072 = vmatprep.subr.mxu0 0.0
    %2073 = vmatpush1.msra.mxu0 0.0
    %2074 = vmatprep.subr.mxu0 0.0
    %2075 = vmatpush1.msra.mxu0 0.0
    %2076 = vmatprep.subr.mxu0 0.0
    %2077 = vmatpush1.msra.mxu0 0.0
    %2078 = vmatprep.subr.mxu0 0.0
    %2079 = vmatpush1.msra.mxu0 0.0
    %2080 = vmatprep.subr.mxu0 0.0
    %2081 = vmatpush1.msra.mxu0 0.0
    %2082 = vmatprep.subr.mxu0 0.0
    %2083 = vmatpush1.msra.mxu0 0.0
    %2084 = vmatprep.subr.mxu0 0.0
    %2085 = vmatpush1.msra.mxu0 0.0
    %2086 = vmatprep.mubr.f32.mxu0 0.0
    %2087 = vmatmul.mubr.f32.gmra.mrb[0].mxu0 %v2020
    %v2088 = vpop.f32.mrb[0].mxu0
    %v2089 = vadd.f32 %v699, %v2088
    %v2090 = vpop.f32.mrb[0].mxu0
    %2091 = vdwg.mxu0
    %v2092 = vtanh.pop %v2089
    %s2093 = scalar_lea.vmem [#allocation2], 32
    %v2094 = vld [vmem:[%s2093] sm:$0xff]
    %v2095 = vmul.f32 %v2092, %v2094
    %v2097 = vsel %vm228, %v2095, 0
    %2099 = vmatprep.subr.mxu0 0.0
    %2100 = vmatpush1.msra.mxu0 %v78
    %2101 = vmatprep.subr.mxu0 0.0
    %2102 = vmatpush1.msra.mxu0 %v79
    %2103 = vmatprep.subr.mxu0 0.0
    %2104 = vmatpush1.msra.mxu0 %v80
    %2105 = vmatprep.subr.mxu0 0.0
    %2106 = vmatpush1.msra.mxu0 %v81
    %2107 = vmatprep.subr.mxu0 0.0
    %2108 = vmatpush1.msra.mxu0 %v82
    %2109 = vmatprep.subr.mxu0 0.0
    %2110 = vmatpush1.msra.mxu0 %v83
    %2111 = vmatprep.subr.mxu0 0.0
    %2112 = vmatpush1.msra.mxu0 %v84
    %2113 = vmatprep.subr.mxu0 0.0
    %2114 = vmatpush1.msra.mxu0 %v85
    %2115 = vmatprep.subr.mxu0 0.0
    %2116 = vmatpush1.msra.mxu0 0.0
    %2117 = vmatprep.subr.mxu0 0.0
    %2118 = vmatpush1.msra.mxu0 0.0
    %2119 = vmatprep.subr.mxu0 0.0
    %2120 = vmatpush1.msra.mxu0 0.0
    %2121 = vmatprep.subr.mxu0 0.0
    %2122 = vmatpush1.msra.mxu0 0.0
    %2123 = vmatprep.subr.mxu0 0.0
    %2124 = vmatpush1.msra.mxu0 0.0
    %2125 = vmatprep.subr.mxu0 0.0
    %2126 = vmatpush1.msra.mxu0 0.0
    %2127 = vmatprep.subr.mxu0 0.0
    %2128 = vmatpush1.msra.mxu0 0.0
    %2129 = vmatprep.subr.mxu0 0.0
    %2130 = vmatpush1.msra.mxu0 0.0
    %2131 = vmatprep.subr.mxu0 0.0
    %2132 = vmatpush1.msra.mxu0 0.0
    %2133 = vmatprep.subr.mxu0 0.0
    %2134 = vmatpush1.msra.mxu0 0.0
    %2135 = vmatprep.subr.mxu0 0.0
    %2136 = vmatpush1.msra.mxu0 0.0
    %2137 = vmatprep.subr.mxu0 0.0
    %2138 = vmatpush1.msra.mxu0 0.0
    %2139 = vmatprep.subr.mxu0 0.0
    %2140 = vmatpush1.msra.mxu0 0.0
    %2141 = vmatprep.subr.mxu0 0.0
    %2142 = vmatpush1.msra.mxu0 0.0
    %2143 = vmatprep.subr.mxu0 0.0
    %2144 = vmatpush1.msra.mxu0 0.0
    %2145 = vmatprep.subr.mxu0 0.0
    %2146 = vmatpush1.msra.mxu0 0.0
    %2147 = vmatprep.subr.mxu0 0.0
    %2148 = vmatpush1.msra.mxu0 0.0
    %2149 = vmatprep.subr.mxu0 0.0
    %2150 = vmatpush1.msra.mxu0 0.0
    %2151 = vmatprep.subr.mxu0 0.0
    %2152 = vmatpush1.msra.mxu0 0.0
    %2153 = vmatprep.subr.mxu0 0.0
    %2154 = vmatpush1.msra.mxu0 0.0
    %2155 = vmatprep.subr.mxu0 0.0
    %2156 = vmatpush1.msra.mxu0 0.0
    %2157 = vmatprep.subr.mxu0 0.0
    %2158 = vmatpush1.msra.mxu0 0.0
    %2159 = vmatprep.subr.mxu0 0.0
    %2160 = vmatpush1.msra.mxu0 0.0
    %2161 = vmatprep.subr.mxu0 0.0
    %2162 = vmatpush1.msra.mxu0 0.0
    %2163 = vmatprep.mubr.f32.mxu0 0.0
    %2164 = vmatmul.mubr.f32.gmra.mrb[0].mxu0 %v2097
    %v2165 = vpop.f32.mrb[0].mxu0
    %v2166 = vadd.f32 0.0, %v2165
    %v2167 = vpop.f32.mrb[0].mxu0
    %2168 = vdwg.mxu0
    %s2169 = smul.f32 %s1843, 0.5
    %v2170 = vadd.f32 %v1835, %v2166
    %v2171 = vstv %s2169
    %v2172 = vmul.f32 %v2171, %v2170
    %v2173 = vadd.f32 %v1842, %v2172
    %s2174 = sld [smem:[#allocation4 + $0x4]]
    %v2175 = vmul.f32 %v2173, 2.0
    %v2176 = vsub.f32 %v2175, %v1848
    %v2177 = vstv %s2174
    %v2178 = vmul.f32 %v2177, %v2166
    %v2179 = vadd.f32 %v2176, %v2178
    %s2180 = scalar_lea.vmem %s3, 5
    %v2181 = vld [vmem:[%s2180] sm:$0x1]
    %v2183 = vlaneseq
    %v2184 = vshrl.u32 %v2183, 7
    %v2185 = vsub.s32 0, %v2184
    %v2186 = vrot.slane %v2181, %v2185
    %v2189 = vsel %vm516, %v2179, 0
    %2191 = vmatprep.subr.mxu0 0.0
    %2192 = vmatpush1.msra.mxu0 %v507
    %2193 = vmatprep.subr.mxu0 0.0
    %2194 = vmatpush1.msra.mxu0 %v508
    %2195 = vmatprep.subr.mxu0 0.0
    %2196 = vmatpush1.msra.mxu0 0.0
    %2197 = vmatprep.subr.mxu0 0.0
    %2198 = vmatpush1.msra.mxu0 0.0
    %2199 = vmatprep.subr.mxu0 0.0
    %2200 = vmatpush1.msra.mxu0 0.0
    %2201 = vmatprep.subr.mxu0 0.0
    %2202 = vmatpush1.msra.mxu0 0.0
    %2203 = vmatprep.subr.mxu0 0.0
    %2204 = vmatpush1.msra.mxu0 0.0
    %2205 = vmatprep.subr.mxu0 0.0
    %2206 = vmatpush1.msra.mxu0 0.0
    %2207 = vmatprep.subr.mxu0 0.0
    %2208 = vmatpush1.msra.mxu0 0.0
    %2209 = vmatprep.subr.mxu0 0.0
    %2210 = vmatpush1.msra.mxu0 0.0
    %2211 = vmatprep.subr.mxu0 0.0
    %2212 = vmatpush1.msra.mxu0 0.0
    %2213 = vmatprep.subr.mxu0 0.0
    %2214 = vmatpush1.msra.mxu0 0.0
    %2215 = vmatprep.subr.mxu0 0.0
    %2216 = vmatpush1.msra.mxu0 0.0
    %2217 = vmatprep.subr.mxu0 0.0
    %2218 = vmatpush1.msra.mxu0 0.0
    %2219 = vmatprep.subr.mxu0 0.0
    %2220 = vmatpush1.msra.mxu0 0.0
    %2221 = vmatprep.subr.mxu0 0.0
    %2222 = vmatpush1.msra.mxu0 0.0
    %2223 = vmatprep.subr.mxu0 0.0
    %2224 = vmatpush1.msra.mxu0 0.0
    %2225 = vmatprep.subr.mxu0 0.0
    %2226 = vmatpush1.msra.mxu0 0.0
    %2227 = vmatprep.subr.mxu0 0.0
    %2228 = vmatpush1.msra.mxu0 0.0
    %2229 = vmatprep.subr.mxu0 0.0
    %2230 = vmatpush1.msra.mxu0 0.0
    %2231 = vmatprep.subr.mxu0 0.0
    %2232 = vmatpush1.msra.mxu0 0.0
    %2233 = vmatprep.subr.mxu0 0.0
    %2234 = vmatpush1.msra.mxu0 0.0
    %2235 = vmatprep.subr.mxu0 0.0
    %2236 = vmatpush1.msra.mxu0 0.0
    %2237 = vmatprep.subr.mxu0 0.0
    %2238 = vmatpush1.msra.mxu0 0.0
    %2239 = vmatprep.subr.mxu0 0.0
    %2240 = vmatpush1.msra.mxu0 0.0
    %2241 = vmatprep.subr.mxu0 0.0
    %2242 = vmatpush1.msra.mxu0 0.0
    %2243 = vmatprep.subr.mxu0 0.0
    %2244 = vmatpush1.msra.mxu0 0.0
    %2245 = vmatprep.subr.mxu0 0.0
    %2246 = vmatpush1.msra.mxu0 0.0
    %2247 = vmatprep.subr.mxu0 0.0
    %2248 = vmatpush1.msra.mxu0 0.0
    %2249 = vmatprep.subr.mxu0 0.0
    %2250 = vmatpush1.msra.mxu0 0.0
    %2251 = vmatprep.subr.mxu0 0.0
    %2252 = vmatpush1.msra.mxu0 0.0
    %2253 = vmatprep.subr.mxu0 0.0
    %2254 = vmatpush1.msra.mxu0 0.0
    %2255 = vmatprep.mubr.f32.mxu0 0.0
    %2256 = vmatmul.mubr.f32.gmra.mrb[0].mxu0 %v2189
    %v2257 = vpop.f32.mrb[0].mxu0
    %v2258 = vadd.f32 %v2186, %v2257
    %v2259 = vpop.f32.mrb[0].mxu0
    %2260 = vdwg.mxu0
    %v2261 = vmul.f32 %v2258, 0.909
    %v2262 = vxor.u32 %v2258, 2147483648
    %v2263 = vmul.f32 %v2262, 1.442695
    %v2264 = vpow.pop %v2263
    %v2265 = vadd.f32 %v2264, 1.0
    %v2266 = vrcp.pop %v2265
    %v2267 = vmul.f32 1.0, %v2266
    %v2268 = vmul.f32 %v2261, %v2267
    %v2270 = vsel %vm341, %v2268, 0
    %2272 = vmatprep.subr.mxu0 0.0
    %2273 = vmatpush1.msra.mxu0 %v598
    %2274 = vmatprep.subr.mxu0 0.0
    %2275 = vmatpush1.msra.mxu0 %v599
    %2276 = vmatprep.subr.mxu0 0.0
    %2277 = vmatpush1.msra.mxu0 %v600
    %2278 = vmatprep.subr.mxu0 0.0
    %2279 = vmatpush1.msra.mxu0 %v601
    %2280 = vmatprep.subr.mxu0 0.0
    %2281 = vmatpush1.msra.mxu0 0.0
    %2282 = vmatprep.subr.mxu0 0.0
    %2283 = vmatpush1.msra.mxu0 0.0
    %2284 = vmatprep.subr.mxu0 0.0
    %2285 = vmatpush1.msra.mxu0 0.0
    %2286 = vmatprep.subr.mxu0 0.0
    %2287 = vmatpush1.msra.mxu0 0.0
    %2288 = vmatprep.subr.mxu0 0.0
    %2289 = vmatpush1.msra.mxu0 0.0
    %2290 = vmatprep.subr.mxu0 0.0
    %2291 = vmatpush1.msra.mxu0 0.0
    %2292 = vmatprep.subr.mxu0 0.0
    %2293 = vmatpush1.msra.mxu0 0.0
    %2294 = vmatprep.subr.mxu0 0.0
    %2295 = vmatpush1.msra.mxu0 0.0
    %2296 = vmatprep.subr.mxu0 0.0
    %2297 = vmatpush1.msra.mxu0 0.0
    %2298 = vmatprep.subr.mxu0 0.0
    %2299 = vmatpush1.msra.mxu0 0.0
    %2300 = vmatprep.subr.mxu0 0.0
    %2301 = vmatpush1.msra.mxu0 0.0
    %2302 = vmatprep.subr.mxu0 0.0
    %2303 = vmatpush1.msra.mxu0 0.0
    %2304 = vmatprep.subr.mxu0 0.0
    %2305 = vmatpush1.msra.mxu0 0.0
    %2306 = vmatprep.subr.mxu0 0.0
    %2307 = vmatpush1.msra.mxu0 0.0
    %2308 = vmatprep.subr.mxu0 0.0
    %2309 = vmatpush1.msra.mxu0 0.0
    %2310 = vmatprep.subr.mxu0 0.0
    %2311 = vmatpush1.msra.mxu0 0.0
    %2312 = vmatprep.subr.mxu0 0.0
    %2313 = vmatpush1.msra.mxu0 0.0
    %2314 = vmatprep.subr.mxu0 0.0
    %2315 = vmatpush1.msra.mxu0 0.0
    %2316 = vmatprep.subr.mxu0 0.0
    %2317 = vmatpush1.msra.mxu0 0.0
    %2318 = vmatprep.subr.mxu0 0.0
    %2319 = vmatpush1.msra.mxu0 0.0
    %2320 = vmatprep.subr.mxu0 0.0
    %2321 = vmatpush1.msra.mxu0 0.0
    %2322 = vmatprep.subr.mxu0 0.0
    %2323 = vmatpush1.msra.mxu0 0.0
    %2324 = vmatprep.subr.mxu0 0.0
    %2325 = vmatpush1.msra.mxu0 0.0
    %2326 = vmatprep.subr.mxu0 0.0
    %2327 = vmatpush1.msra.mxu0 0.0
    %2328 = vmatprep.subr.mxu0 0.0
    %2329 = vmatpush1.msra.mxu0 0.0
    %2330 = vmatprep.subr.mxu0 0.0
    %2331 = vmatpush1.msra.mxu0 0.0
    %2332 = vmatprep.subr.mxu0 0.0
    %2333 = vmatpush1.msra.mxu0 0.0
    %2334 = vmatprep.subr.mxu0 0.0
    %2335 = vmatpush1.msra.mxu0 0.0
    %2336 = vmatprep.mubr.f32.mxu0 0.0
    %2337 = vmatmul.mubr.f32.gmra.mrb[0].mxu0 %v2270
    %v2338 = vpop.f32.mrb[0].mxu0
    %v2339 = vadd.f32 %v607, %v2338
    %v2340 = vpop.f32.mrb[0].mxu0
    %2341 = vdwg.mxu0
    %v2342 = vmul.f32 %v2339, 0.909
    %v2343 = vxor.u32 %v2339, 2147483648
    %v2344 = vmul.f32 %v2343, 1.442695
    %v2345 = vpow.pop %v2344
    %v2346 = vadd.f32 %v2345, 1.0
    %v2347 = vrcp.pop %v2346
    %v2348 = vmul.f32 1.0, %v2347
    %v2349 = vmul.f32 %v2342, %v2348
    %v2351 = vsel %vm341, %v2349, 0
    %2353 = vmatprep.subr.mxu0 0.0
    %2354 = vmatpush1.msra.mxu0 %v690
    %2355 = vmatprep.subr.mxu0 0.0
    %2356 = vmatpush1.msra.mxu0 %v691
    %2357 = vmatprep.subr.mxu0 0.0
    %2358 = vmatpush1.msra.mxu0 %v692
    %2359 = vmatprep.subr.mxu0 0.0
    %2360 = vmatpush1.msra.mxu0 %v693
    %2361 = vmatprep.subr.mxu0 0.0
    %2362 = vmatpush1.msra.mxu0 0.0
    %2363 = vmatprep.subr.mxu0 0.0
    %2364 = vmatpush1.msra.mxu0 0.0
    %2365 = vmatprep.subr.mxu0 0.0
    %2366 = vmatpush1.msra.mxu0 0.0
    %2367 = vmatprep.subr.mxu0 0.0
    %2368 = vmatpush1.msra.mxu0 0.0
    %2369 = vmatprep.subr.mxu0 0.0
    %2370 = vmatpush1.msra.mxu0 0.0
    %2371 = vmatprep.subr.mxu0 0.0
    %2372 = vmatpush1.msra.mxu0 0.0
    %2373 = vmatprep.subr.mxu0 0.0
    %2374 = vmatpush1.msra.mxu0 0.0
    %2375 = vmatprep.subr.mxu0 0.0
    %2376 = vmatpush1.msra.mxu0 0.0
    %2377 = vmatprep.subr.mxu0 0.0
    %2378 = vmatpush1.msra.mxu0 0.0
    %2379 = vmatprep.subr.mxu0 0.0
    %2380 = vmatpush1.msra.mxu0 0.0
    %2381 = vmatprep.subr.mxu0 0.0
    %2382 = vmatpush1.msra.mxu0 0.0
    %2383 = vmatprep.subr.mxu0 0.0
    %2384 = vmatpush1.msra.mxu0 0.0
    %2385 = vmatprep.subr.mxu0 0.0
    %2386 = vmatpush1.msra.mxu0 0.0
    %2387 = vmatprep.subr.mxu0 0.0
    %2388 = vmatpush1.msra.mxu0 0.0
    %2389 = vmatprep.subr.mxu0 0.0
    %2390 = vmatpush1.msra.mxu0 0.0
    %2391 = vmatprep.subr.mxu0 0.0
    %2392 = vmatpush1.msra.mxu0 0.0
    %2393 = vmatprep.subr.mxu0 0.0
    %2394 = vmatpush1.msra.mxu0 0.0
    %2395 = vmatprep.subr.mxu0 0.0
    %2396 = vmatpush1.msra.mxu0 0.0
    %2397 = vmatprep.subr.mxu0 0.0
    %2398 = vmatpush1.msra.mxu0 0.0
    %2399 = vmatprep.subr.mxu0 0.0
    %2400 = vmatpush1.msra.mxu0 0.0
    %2401 = vmatprep.subr.mxu0 0.0
    %2402 = vmatpush1.msra.mxu0 0.0
    %2403 = vmatprep.subr.mxu0 0.0
    %2404 = vmatpush1.msra.mxu0 0.0
    %2405 = vmatprep.subr.mxu0 0.0
    %2406 = vmatpush1.msra.mxu0 0.0
    %2407 = vmatprep.subr.mxu0 0.0
    %2408 = vmatpush1.msra.mxu0 0.0
    %2409 = vmatprep.subr.mxu0 0.0
    %2410 = vmatpush1.msra.mxu0 0.0
    %2411 = vmatprep.subr.mxu0 0.0
    %2412 = vmatpush1.msra.mxu0 0.0
    %2413 = vmatprep.subr.mxu0 0.0
    %2414 = vmatpush1.msra.mxu0 0.0
    %2415 = vmatprep.subr.mxu0 0.0
    %2416 = vmatpush1.msra.mxu0 0.0
    %2417 = vmatprep.mubr.f32.mxu0 0.0
    %2418 = vmatmul.mubr.f32.gmra.mrb[0].mxu0 %v2351
    %v2419 = vpop.f32.mrb[0].mxu0
    %v2420 = vadd.f32 %v699, %v2419
    %v2421 = vpop.f32.mrb[0].mxu0
    %2422 = vdwg.mxu0
    %v2423 = vtanh.pop %v2420
    %s2424 = scalar_lea.vmem [#allocation2], 40
    %v2425 = vld [vmem:[%s2424] sm:$0xff]
    %v2426 = vmul.f32 %v2423, %v2425
    %v2428 = vsel %vm228, %v2426, 0
    %2430 = vmatprep.subr.mxu0 0.0
    %2431 = vmatpush1.msra.mxu0 %v78
    %2432 = vmatprep.subr.mxu0 0.0
    %2433 = vmatpush1.msra.mxu0 %v79
    %2434 = vmatprep.subr.mxu0 0.0
    %2435 = vmatpush1.msra.mxu0 %v80
    %2436 = vmatprep.subr.mxu0 0.0
    %2437 = vmatpush1.msra.mxu0 %v81
    %2438 = vmatprep.subr.mxu0 0.0
    %2439 = vmatpush1.msra.mxu0 %v82
    %2440 = vmatprep.subr.mxu0 0.0
    %2441 = vmatpush1.msra.mxu0 %v83
    %2442 = vmatprep.subr.mxu0 0.0
    %2443 = vmatpush1.msra.mxu0 %v84
    %2444 = vmatprep.subr.mxu0 0.0
    %2445 = vmatpush1.msra.mxu0 %v85
    %2446 = vmatprep.subr.mxu0 0.0
    %2447 = vmatpush1.msra.mxu0 0.0
    %2448 = vmatprep.subr.mxu0 0.0
    %2449 = vmatpush1.msra.mxu0 0.0
    %2450 = vmatprep.subr.mxu0 0.0
    %2451 = vmatpush1.msra.mxu0 0.0
    %2452 = vmatprep.subr.mxu0 0.0
    %2453 = vmatpush1.msra.mxu0 0.0
    %2454 = vmatprep.subr.mxu0 0.0
    %2455 = vmatpush1.msra.mxu0 0.0
    %2456 = vmatprep.subr.mxu0 0.0
    %2457 = vmatpush1.msra.mxu0 0.0
    %2458 = vmatprep.subr.mxu0 0.0
    %2459 = vmatpush1.msra.mxu0 0.0
    %2460 = vmatprep.subr.mxu0 0.0
    %2461 = vmatpush1.msra.mxu0 0.0
    %2462 = vmatprep.subr.mxu0 0.0
    %2463 = vmatpush1.msra.mxu0 0.0
    %2464 = vmatprep.subr.mxu0 0.0
    %2465 = vmatpush1.msra.mxu0 0.0
    %2466 = vmatprep.subr.mxu0 0.0
    %2467 = vmatpush1.msra.mxu0 0.0
    %2468 = vmatprep.subr.mxu0 0.0
    %2469 = vmatpush1.msra.mxu0 0.0
    %2470 = vmatprep.subr.mxu0 0.0
    %2471 = vmatpush1.msra.mxu0 0.0
    %2472 = vmatprep.subr.mxu0 0.0
    %2473 = vmatpush1.msra.mxu0 0.0
    %2474 = vmatprep.subr.mxu0 0.0
    %2475 = vmatpush1.msra.mxu0 0.0
    %2476 = vmatprep.subr.mxu0 0.0
    %2477 = vmatpush1.msra.mxu0 0.0
    %2478 = vmatprep.subr.mxu0 0.0
    %2479 = vmatpush1.msra.mxu0 0.0
    %2480 = vmatprep.subr.mxu0 0.0
    %2481 = vmatpush1.msra.mxu0 0.0
    %2482 = vmatprep.subr.mxu0 0.0
    %2483 = vmatpush1.msra.mxu0 0.0
    %2484 = vmatprep.subr.mxu0 0.0
    %2485 = vmatpush1.msra.mxu0 0.0
    %2486 = vmatprep.subr.mxu0 0.0
    %2487 = vmatpush1.msra.mxu0 0.0
    %2488 = vmatprep.subr.mxu0 0.0
    %2489 = vmatpush1.msra.mxu0 0.0
    %2490 = vmatprep.subr.mxu0 0.0
    %2491 = vmatpush1.msra.mxu0 0.0
    %2492 = vmatprep.subr.mxu0 0.0
    %2493 = vmatpush1.msra.mxu0 0.0
    %2494 = vmatprep.mubr.f32.mxu0 0.0
    %2495 = vmatmul.mubr.f32.gmra.mrb[0].mxu0 %v2428
    %v2496 = vpop.f32.mrb[0].mxu0
    %v2497 = vadd.f32 0.0, %v2496
    %v2498 = vpop.f32.mrb[0].mxu0
    %2499 = vdwg.mxu0
    %s2500 = smul.f32 %s2174, 0.5
    %v2501 = vadd.f32 %v2166, %v2497
    %v2502 = vstv %s2500
    %v2503 = vmul.f32 %v2502, %v2501
    %v2504 = vadd.f32 %v2173, %v2503
    %s2505 = sld [smem:[#allocation4 + $0x5]]
    %v2506 = vmul.f32 %v2504, 2.0
    %v2507 = vsub.f32 %v2506, %v2179
    %v2508 = vstv %s2505
    %v2509 = vmul.f32 %v2508, %v2497
    %v2510 = vadd.f32 %v2507, %v2509
    %s2511 = scalar_lea.vmem %s3, 6
    %v2512 = vld [vmem:[%s2511] sm:$0x1]
    %v2514 = vlaneseq
    %v2515 = vshrl.u32 %v2514, 7
    %v2516 = vsub.s32 0, %v2515
    %v2517 = vrot.slane %v2512, %v2516
    %v2520 = vsel %vm516, %v2510, 0
    %2522 = vmatprep.subr.mxu0 0.0
    %2523 = vmatpush1.msra.mxu0 %v507
    %2524 = vmatprep.subr.mxu0 0.0
    %2525 = vmatpush1.msra.mxu0 %v508
    %2526 = vmatprep.subr.mxu0 0.0
    %2527 = vmatpush1.msra.mxu0 0.0
    %2528 = vmatprep.subr.mxu0 0.0
    %2529 = vmatpush1.msra.mxu0 0.0
    %2530 = vmatprep.subr.mxu0 0.0
    %2531 = vmatpush1.msra.mxu0 0.0
    %2532 = vmatprep.subr.mxu0 0.0
    %2533 = vmatpush1.msra.mxu0 0.0
    %2534 = vmatprep.subr.mxu0 0.0
    %2535 = vmatpush1.msra.mxu0 0.0
    %2536 = vmatprep.subr.mxu0 0.0
    %2537 = vmatpush1.msra.mxu0 0.0
    %2538 = vmatprep.subr.mxu0 0.0
    %2539 = vmatpush1.msra.mxu0 0.0
    %2540 = vmatprep.subr.mxu0 0.0
    %2541 = vmatpush1.msra.mxu0 0.0
    %2542 = vmatprep.subr.mxu0 0.0
    %2543 = vmatpush1.msra.mxu0 0.0
    %2544 = vmatprep.subr.mxu0 0.0
    %2545 = vmatpush1.msra.mxu0 0.0
    %2546 = vmatprep.subr.mxu0 0.0
    %2547 = vmatpush1.msra.mxu0 0.0
    %2548 = vmatprep.subr.mxu0 0.0
    %2549 = vmatpush1.msra.mxu0 0.0
    %2550 = vmatprep.subr.mxu0 0.0
    %2551 = vmatpush1.msra.mxu0 0.0
    %2552 = vmatprep.subr.mxu0 0.0
    %2553 = vmatpush1.msra.mxu0 0.0
    %2554 = vmatprep.subr.mxu0 0.0
    %2555 = vmatpush1.msra.mxu0 0.0
    %2556 = vmatprep.subr.mxu0 0.0
    %2557 = vmatpush1.msra.mxu0 0.0
    %2558 = vmatprep.subr.mxu0 0.0
    %2559 = vmatpush1.msra.mxu0 0.0
    %2560 = vmatprep.subr.mxu0 0.0
    %2561 = vmatpush1.msra.mxu0 0.0
    %2562 = vmatprep.subr.mxu0 0.0
    %2563 = vmatpush1.msra.mxu0 0.0
    %2564 = vmatprep.subr.mxu0 0.0
    %2565 = vmatpush1.msra.mxu0 0.0
    %2566 = vmatprep.subr.mxu0 0.0
    %2567 = vmatpush1.msra.mxu0 0.0
    %2568 = vmatprep.subr.mxu0 0.0
    %2569 = vmatpush1.msra.mxu0 0.0
    %2570 = vmatprep.subr.mxu0 0.0
    %2571 = vmatpush1.msra.mxu0 0.0
    %2572 = vmatprep.subr.mxu0 0.0
    %2573 = vmatpush1.msra.mxu0 0.0
    %2574 = vmatprep.subr.mxu0 0.0
    %2575 = vmatpush1.msra.mxu0 0.0
    %2576 = vmatprep.subr.mxu0 0.0
    %2577 = vmatpush1.msra.mxu0 0.0
    %2578 = vmatprep.subr.mxu0 0.0
    %2579 = vmatpush1.msra.mxu0 0.0
    %2580 = vmatprep.subr.mxu0 0.0
    %2581 = vmatpush1.msra.mxu0 0.0
    %2582 = vmatprep.subr.mxu0 0.0
    %2583 = vmatpush1.msra.mxu0 0.0
    %2584 = vmatprep.subr.mxu0 0.0
    %2585 = vmatpush1.msra.mxu0 0.0
    %2586 = vmatprep.mubr.f32.mxu0 0.0
    %2587 = vmatmul.mubr.f32.gmra.mrb[0].mxu0 %v2520
    %v2588 = vpop.f32.mrb[0].mxu0
    %v2589 = vadd.f32 %v2517, %v2588
    %v2590 = vpop.f32.mrb[0].mxu0
    %2591 = vdwg.mxu0
    %v2592 = vmul.f32 %v2589, 0.909
    %v2593 = vxor.u32 %v2589, 2147483648
    %v2594 = vmul.f32 %v2593, 1.442695
    %v2595 = vpow.pop %v2594
    %v2596 = vadd.f32 %v2595, 1.0
    %v2597 = vrcp.pop %v2596
    %v2598 = vmul.f32 1.0, %v2597
    %v2599 = vmul.f32 %v2592, %v2598
    %v2601 = vsel %vm341, %v2599, 0
    %2603 = vmatprep.subr.mxu0 0.0
    %2604 = vmatpush1.msra.mxu0 %v598
    %2605 = vmatprep.subr.mxu0 0.0
    %2606 = vmatpush1.msra.mxu0 %v599
    %2607 = vmatprep.subr.mxu0 0.0
    %2608 = vmatpush1.msra.mxu0 %v600
    %2609 = vmatprep.subr.mxu0 0.0
    %2610 = vmatpush1.msra.mxu0 %v601
    %2611 = vmatprep.subr.mxu0 0.0
    %2612 = vmatpush1.msra.mxu0 0.0
    %2613 = vmatprep.subr.mxu0 0.0
    %2614 = vmatpush1.msra.mxu0 0.0
    %2615 = vmatprep.subr.mxu0 0.0
    %2616 = vmatpush1.msra.mxu0 0.0
    %2617 = vmatprep.subr.mxu0 0.0
    %2618 = vmatpush1.msra.mxu0 0.0
    %2619 = vmatprep.subr.mxu0 0.0
    %2620 = vmatpush1.msra.mxu0 0.0
    %2621 = vmatprep.subr.mxu0 0.0
    %2622 = vmatpush1.msra.mxu0 0.0
    %2623 = vmatprep.subr.mxu0 0.0
    %2624 = vmatpush1.msra.mxu0 0.0
    %2625 = vmatprep.subr.mxu0 0.0
    %2626 = vmatpush1.msra.mxu0 0.0
    %2627 = vmatprep.subr.mxu0 0.0
    %2628 = vmatpush1.msra.mxu0 0.0
    %2629 = vmatprep.subr.mxu0 0.0
    %2630 = vmatpush1.msra.mxu0 0.0
    %2631 = vmatprep.subr.mxu0 0.0
    %2632 = vmatpush1.msra.mxu0 0.0
    %2633 = vmatprep.subr.mxu0 0.0
    %2634 = vmatpush1.msra.mxu0 0.0
    %2635 = vmatprep.subr.mxu0 0.0
    %2636 = vmatpush1.msra.mxu0 0.0
    %2637 = vmatprep.subr.mxu0 0.0
    %2638 = vmatpush1.msra.mxu0 0.0
    %2639 = vmatprep.subr.mxu0 0.0
    %2640 = vmatpush1.msra.mxu0 0.0
    %2641 = vmatprep.subr.mxu0 0.0
    %2642 = vmatpush1.msra.mxu0 0.0
    %2643 = vmatprep.subr.mxu0 0.0
    %2644 = vmatpush1.msra.mxu0 0.0
    %2645 = vmatprep.subr.mxu0 0.0
    %2646 = vmatpush1.msra.mxu0 0.0
    %2647 = vmatprep.subr.mxu0 0.0
    %2648 = vmatpush1.msra.mxu0 0.0
    %2649 = vmatprep.subr.mxu0 0.0
    %2650 = vmatpush1.msra.mxu0 0.0
    %2651 = vmatprep.subr.mxu0 0.0
    %2652 = vmatpush1.msra.mxu0 0.0
    %2653 = vmatprep.subr.mxu0 0.0
    %2654 = vmatpush1.msra.mxu0 0.0
    %2655 = vmatprep.subr.mxu0 0.0
    %2656 = vmatpush1.msra.mxu0 0.0
    %2657 = vmatprep.subr.mxu0 0.0
    %2658 = vmatpush1.msra.mxu0 0.0
    %2659 = vmatprep.subr.mxu0 0.0
    %2660 = vmatpush1.msra.mxu0 0.0
    %2661 = vmatprep.subr.mxu0 0.0
    %2662 = vmatpush1.msra.mxu0 0.0
    %2663 = vmatprep.subr.mxu0 0.0
    %2664 = vmatpush1.msra.mxu0 0.0
    %2665 = vmatprep.subr.mxu0 0.0
    %2666 = vmatpush1.msra.mxu0 0.0
    %2667 = vmatprep.mubr.f32.mxu0 0.0
    %2668 = vmatmul.mubr.f32.gmra.mrb[0].mxu0 %v2601
    %v2669 = vpop.f32.mrb[0].mxu0
    %v2670 = vadd.f32 %v607, %v2669
    %v2671 = vpop.f32.mrb[0].mxu0
    %2672 = vdwg.mxu0
    %v2673 = vmul.f32 %v2670, 0.909
    %v2674 = vxor.u32 %v2670, 2147483648
    %v2675 = vmul.f32 %v2674, 1.442695
    %v2676 = vpow.pop %v2675
    %v2677 = vadd.f32 %v2676, 1.0
    %v2678 = vrcp.pop %v2677
    %v2679 = vmul.f32 1.0, %v2678
    %v2680 = vmul.f32 %v2673, %v2679
    %v2682 = vsel %vm341, %v2680, 0
    %2684 = vmatprep.subr.mxu0 0.0
    %2685 = vmatpush1.msra.mxu0 %v690
    %2686 = vmatprep.subr.mxu0 0.0
    %2687 = vmatpush1.msra.mxu0 %v691
    %2688 = vmatprep.subr.mxu0 0.0
    %2689 = vmatpush1.msra.mxu0 %v692
    %2690 = vmatprep.subr.mxu0 0.0
    %2691 = vmatpush1.msra.mxu0 %v693
    %2692 = vmatprep.subr.mxu0 0.0
    %2693 = vmatpush1.msra.mxu0 0.0
    %2694 = vmatprep.subr.mxu0 0.0
    %2695 = vmatpush1.msra.mxu0 0.0
    %2696 = vmatprep.subr.mxu0 0.0
    %2697 = vmatpush1.msra.mxu0 0.0
    %2698 = vmatprep.subr.mxu0 0.0
    %2699 = vmatpush1.msra.mxu0 0.0
    %2700 = vmatprep.subr.mxu0 0.0
    %2701 = vmatpush1.msra.mxu0 0.0
    %2702 = vmatprep.subr.mxu0 0.0
    %2703 = vmatpush1.msra.mxu0 0.0
    %2704 = vmatprep.subr.mxu0 0.0
    %2705 = vmatpush1.msra.mxu0 0.0
    %2706 = vmatprep.subr.mxu0 0.0
    %2707 = vmatpush1.msra.mxu0 0.0
    %2708 = vmatprep.subr.mxu0 0.0
    %2709 = vmatpush1.msra.mxu0 0.0
    %2710 = vmatprep.subr.mxu0 0.0
    %2711 = vmatpush1.msra.mxu0 0.0
    %2712 = vmatprep.subr.mxu0 0.0
    %2713 = vmatpush1.msra.mxu0 0.0
    %2714 = vmatprep.subr.mxu0 0.0
    %2715 = vmatpush1.msra.mxu0 0.0
    %2716 = vmatprep.subr.mxu0 0.0
    %2717 = vmatpush1.msra.mxu0 0.0
    %2718 = vmatprep.subr.mxu0 0.0
    %2719 = vmatpush1.msra.mxu0 0.0
    %2720 = vmatprep.subr.mxu0 0.0
    %2721 = vmatpush1.msra.mxu0 0.0
    %2722 = vmatprep.subr.mxu0 0.0
    %2723 = vmatpush1.msra.mxu0 0.0
    %2724 = vmatprep.subr.mxu0 0.0
    %2725 = vmatpush1.msra.mxu0 0.0
    %2726 = vmatprep.subr.mxu0 0.0
    %2727 = vmatpush1.msra.mxu0 0.0
    %2728 = vmatprep.subr.mxu0 0.0
    %2729 = vmatpush1.msra.mxu0 0.0
    %2730 = vmatprep.subr.mxu0 0.0
    %2731 = vmatpush1.msra.mxu0 0.0
    %2732 = vmatprep.subr.mxu0 0.0
    %2733 = vmatpush1.msra.mxu0 0.0
    %2734 = vmatprep.subr.mxu0 0.0
    %2735 = vmatpush1.msra.mxu0 0.0
    %2736 = vmatprep.subr.mxu0 0.0
    %2737 = vmatpush1.msra.mxu0 0.0
    %2738 = vmatprep.subr.mxu0 0.0
    %2739 = vmatpush1.msra.mxu0 0.0
    %2740 = vmatprep.subr.mxu0 0.0
    %2741 = vmatpush1.msra.mxu0 0.0
    %2742 = vmatprep.subr.mxu0 0.0
    %2743 = vmatpush1.msra.mxu0 0.0
    %2744 = vmatprep.subr.mxu0 0.0
    %2745 = vmatpush1.msra.mxu0 0.0
    %2746 = vmatprep.subr.mxu0 0.0
    %2747 = vmatpush1.msra.mxu0 0.0
    %2748 = vmatprep.mubr.f32.mxu0 0.0
    %2749 = vmatmul.mubr.f32.gmra.mrb[0].mxu0 %v2682
    %v2750 = vpop.f32.mrb[0].mxu0
    %v2751 = vadd.f32 %v699, %v2750
    %v2752 = vpop.f32.mrb[0].mxu0
    %2753 = vdwg.mxu0
    %v2754 = vtanh.pop %v2751
    %s2755 = scalar_lea.vmem [#allocation2], 48
    %v2756 = vld [vmem:[%s2755] sm:$0xff]
    %v2757 = vmul.f32 %v2754, %v2756
    %v2759 = vsel %vm228, %v2757, 0
    %2761 = vmatprep.subr.mxu0 0.0
    %2762 = vmatpush1.msra.mxu0 %v78
    %2763 = vmatprep.subr.mxu0 0.0
    %2764 = vmatpush1.msra.mxu0 %v79
    %2765 = vmatprep.subr.mxu0 0.0
    %2766 = vmatpush1.msra.mxu0 %v80
    %2767 = vmatprep.subr.mxu0 0.0
    %2768 = vmatpush1.msra.mxu0 %v81
    %2769 = vmatprep.subr.mxu0 0.0
    %2770 = vmatpush1.msra.mxu0 %v82
    %2771 = vmatprep.subr.mxu0 0.0
    %2772 = vmatpush1.msra.mxu0 %v83
    %2773 = vmatprep.subr.mxu0 0.0
    %2774 = vmatpush1.msra.mxu0 %v84
    %2775 = vmatprep.subr.mxu0 0.0
    %2776 = vmatpush1.msra.mxu0 %v85
    %2777 = vmatprep.subr.mxu0 0.0
    %2778 = vmatpush1.msra.mxu0 0.0
    %2779 = vmatprep.subr.mxu0 0.0
    %2780 = vmatpush1.msra.mxu0 0.0
    %2781 = vmatprep.subr.mxu0 0.0
    %2782 = vmatpush1.msra.mxu0 0.0
    %2783 = vmatprep.subr.mxu0 0.0
    %2784 = vmatpush1.msra.mxu0 0.0
    %2785 = vmatprep.subr.mxu0 0.0
    %2786 = vmatpush1.msra.mxu0 0.0
    %2787 = vmatprep.subr.mxu0 0.0
    %2788 = vmatpush1.msra.mxu0 0.0
    %2789 = vmatprep.subr.mxu0 0.0
    %2790 = vmatpush1.msra.mxu0 0.0
    %2791 = vmatprep.subr.mxu0 0.0
    %2792 = vmatpush1.msra.mxu0 0.0
    %2793 = vmatprep.subr.mxu0 0.0
    %2794 = vmatpush1.msra.mxu0 0.0
    %2795 = vmatprep.subr.mxu0 0.0
    %2796 = vmatpush1.msra.mxu0 0.0
    %2797 = vmatprep.subr.mxu0 0.0
    %2798 = vmatpush1.msra.mxu0 0.0
    %2799 = vmatprep.subr.mxu0 0.0
    %2800 = vmatpush1.msra.mxu0 0.0
    %2801 = vmatprep.subr.mxu0 0.0
    %2802 = vmatpush1.msra.mxu0 0.0
    %2803 = vmatprep.subr.mxu0 0.0
    %2804 = vmatpush1.msra.mxu0 0.0
    %2805 = vmatprep.subr.mxu0 0.0
    %2806 = vmatpush1.msra.mxu0 0.0
    %2807 = vmatprep.subr.mxu0 0.0
    %2808 = vmatpush1.msra.mxu0 0.0
    %2809 = vmatprep.subr.mxu0 0.0
    %2810 = vmatpush1.msra.mxu0 0.0
    %2811 = vmatprep.subr.mxu0 0.0
    %2812 = vmatpush1.msra.mxu0 0.0
    %2813 = vmatprep.subr.mxu0 0.0
    %2814 = vmatpush1.msra.mxu0 0.0
    %2815 = vmatprep.subr.mxu0 0.0
    %2816 = vmatpush1.msra.mxu0 0.0
    %2817 = vmatprep.subr.mxu0 0.0
    %2818 = vmatpush1.msra.mxu0 0.0
    %2819 = vmatprep.subr.mxu0 0.0
    %2820 = vmatpush1.msra.mxu0 0.0
    %2821 = vmatprep.subr.mxu0 0.0
    %2822 = vmatpush1.msra.mxu0 0.0
    %2823 = vmatprep.subr.mxu0 0.0
    %2824 = vmatpush1.msra.mxu0 0.0
    %2825 = vmatprep.mubr.f32.mxu0 0.0
    %2826 = vmatmul.mubr.f32.gmra.mrb[0].mxu0 %v2759
    %v2827 = vpop.f32.mrb[0].mxu0
    %v2828 = vadd.f32 0.0, %v2827
    %v2829 = vpop.f32.mrb[0].mxu0
    %2830 = vdwg.mxu0
    %s2831 = smul.f32 %s2505, 0.5
    %v2832 = vadd.f32 %v2497, %v2828
    %v2833 = vstv %s2831
    %v2834 = vmul.f32 %v2833, %v2832
    %v2835 = vadd.f32 %v2504, %v2834
    %s2836 = sld [smem:[#allocation4 + $0x6]]
    %v2837 = vmul.f32 %v2835, 2.0
    %v2838 = vsub.f32 %v2837, %v2510
    %v2839 = vstv %s2836
    %v2840 = vmul.f32 %v2839, %v2828
    %v2841 = vadd.f32 %v2838, %v2840
    %s2842 = scalar_lea.vmem %s3, 7
    %v2843 = vld [vmem:[%s2842] sm:$0x1]
    %v2845 = vlaneseq
    %v2846 = vshrl.u32 %v2845, 7
    %v2847 = vsub.s32 0, %v2846
    %v2848 = vrot.slane %v2843, %v2847
    %v2851 = vsel %vm516, %v2841, 0
    %2853 = vmatprep.subr.mxu0 0.0
    %2854 = vmatpush1.msra.mxu0 %v507
    %2855 = vmatprep.subr.mxu0 0.0
    %2856 = vmatpush1.msra.mxu0 %v508
    %2857 = vmatprep.subr.mxu0 0.0
    %2858 = vmatpush1.msra.mxu0 0.0
    %2859 = vmatprep.subr.mxu0 0.0
    %2860 = vmatpush1.msra.mxu0 0.0
    %2861 = vmatprep.subr.mxu0 0.0
    %2862 = vmatpush1.msra.mxu0 0.0
    %2863 = vmatprep.subr.mxu0 0.0
    %2864 = vmatpush1.msra.mxu0 0.0
    %2865 = vmatprep.subr.mxu0 0.0
    %2866 = vmatpush1.msra.mxu0 0.0
    %2867 = vmatprep.subr.mxu0 0.0
    %2868 = vmatpush1.msra.mxu0 0.0
    %2869 = vmatprep.subr.mxu0 0.0
    %2870 = vmatpush1.msra.mxu0 0.0
    %2871 = vmatprep.subr.mxu0 0.0
    %2872 = vmatpush1.msra.mxu0 0.0
    %2873 = vmatprep.subr.mxu0 0.0
    %2874 = vmatpush1.msra.mxu0 0.0
    %2875 = vmatprep.subr.mxu0 0.0
    %2876 = vmatpush1.msra.mxu0 0.0
    %2877 = vmatprep.subr.mxu0 0.0
    %2878 = vmatpush1.msra.mxu0 0.0
    %2879 = vmatprep.subr.mxu0 0.0
    %2880 = vmatpush1.msra.mxu0 0.0
    %2881 = vmatprep.subr.mxu0 0.0
    %2882 = vmatpush1.msra.mxu0 0.0
    %2883 = vmatprep.subr.mxu0 0.0
    %2884 = vmatpush1.msra.mxu0 0.0
    %2885 = vmatprep.subr.mxu0 0.0
    %2886 = vmatpush1.msra.mxu0 0.0
    %2887 = vmatprep.subr.mxu0 0.0
    %2888 = vmatpush1.msra.mxu0 0.0
    %2889 = vmatprep.subr.mxu0 0.0
    %2890 = vmatpush1.msra.mxu0 0.0
    %2891 = vmatprep.subr.mxu0 0.0
    %2892 = vmatpush1.msra.mxu0 0.0
    %2893 = vmatprep.subr.mxu0 0.0
    %2894 = vmatpush1.msra.mxu0 0.0
    %2895 = vmatprep.subr.mxu0 0.0
    %2896 = vmatpush1.msra.mxu0 0.0
    %2897 = vmatprep.subr.mxu0 0.0
    %2898 = vmatpush1.msra.mxu0 0.0
    %2899 = vmatprep.subr.mxu0 0.0
    %2900 = vmatpush1.msra.mxu0 0.0
    %2901 = vmatprep.subr.mxu0 0.0
    %2902 = vmatpush1.msra.mxu0 0.0
    %2903 = vmatprep.subr.mxu0 0.0
    %2904 = vmatpush1.msra.mxu0 0.0
    %2905 = vmatprep.subr.mxu0 0.0
    %2906 = vmatpush1.msra.mxu0 0.0
    %2907 = vmatprep.subr.mxu0 0.0
    %2908 = vmatpush1.msra.mxu0 0.0
    %2909 = vmatprep.subr.mxu0 0.0
    %2910 = vmatpush1.msra.mxu0 0.0
    %2911 = vmatprep.subr.mxu0 0.0
    %2912 = vmatpush1.msra.mxu0 0.0
    %2913 = vmatprep.subr.mxu0 0.0
    %2914 = vmatpush1.msra.mxu0 0.0
    %2915 = vmatprep.subr.mxu0 0.0
    %2916 = vmatpush1.msra.mxu0 0.0
    %2917 = vmatprep.mubr.f32.mxu0 0.0
    %2918 = vmatmul.mubr.f32.gmra.mrb[0].mxu0 %v2851
    %v2919 = vpop.f32.mrb[0].mxu0
    %v2920 = vadd.f32 %v2848, %v2919
    %v2921 = vpop.f32.mrb[0].mxu0
    %2922 = vdwg.mxu0
    %v2923 = vmul.f32 %v2920, 0.909
    %v2924 = vxor.u32 %v2920, 2147483648
    %v2925 = vmul.f32 %v2924, 1.442695
    %v2926 = vpow.pop %v2925
    %v2927 = vadd.f32 %v2926, 1.0
    %v2928 = vrcp.pop %v2927
    %v2929 = vmul.f32 1.0, %v2928
    %v2930 = vmul.f32 %v2923, %v2929
    %v2932 = vsel %vm341, %v2930, 0
    %2934 = vmatprep.subr.mxu0 0.0
    %2935 = vmatpush1.msra.mxu0 %v598
    %2936 = vmatprep.subr.mxu0 0.0
    %2937 = vmatpush1.msra.mxu0 %v599
    %2938 = vmatprep.subr.mxu0 0.0
    %2939 = vmatpush1.msra.mxu0 %v600
    %2940 = vmatprep.subr.mxu0 0.0
    %2941 = vmatpush1.msra.mxu0 %v601
    %2942 = vmatprep.subr.mxu0 0.0
    %2943 = vmatpush1.msra.mxu0 0.0
    %2944 = vmatprep.subr.mxu0 0.0
    %2945 = vmatpush1.msra.mxu0 0.0
    %2946 = vmatprep.subr.mxu0 0.0
    %2947 = vmatpush1.msra.mxu0 0.0
    %2948 = vmatprep.subr.mxu0 0.0
    %2949 = vmatpush1.msra.mxu0 0.0
    %2950 = vmatprep.subr.mxu0 0.0
    %2951 = vmatpush1.msra.mxu0 0.0
    %2952 = vmatprep.subr.mxu0 0.0
    %2953 = vmatpush1.msra.mxu0 0.0
    %2954 = vmatprep.subr.mxu0 0.0
    %2955 = vmatpush1.msra.mxu0 0.0
    %2956 = vmatprep.subr.mxu0 0.0
    %2957 = vmatpush1.msra.mxu0 0.0
    %2958 = vmatprep.subr.mxu0 0.0
    %2959 = vmatpush1.msra.mxu0 0.0
    %2960 = vmatprep.subr.mxu0 0.0
    %2961 = vmatpush1.msra.mxu0 0.0
    %2962 = vmatprep.subr.mxu0 0.0
    %2963 = vmatpush1.msra.mxu0 0.0
    %2964 = vmatprep.subr.mxu0 0.0
    %2965 = vmatpush1.msra.mxu0 0.0
    %2966 = vmatprep.subr.mxu0 0.0
    %2967 = vmatpush1.msra.mxu0 0.0
    %2968 = vmatprep.subr.mxu0 0.0
    %2969 = vmatpush1.msra.mxu0 0.0
    %2970 = vmatprep.subr.mxu0 0.0
    %2971 = vmatpush1.msra.mxu0 0.0
    %2972 = vmatprep.subr.mxu0 0.0
    %2973 = vmatpush1.msra.mxu0 0.0
    %2974 = vmatprep.subr.mxu0 0.0
    %2975 = vmatpush1.msra.mxu0 0.0
    %2976 = vmatprep.subr.mxu0 0.0
    %2977 = vmatpush1.msra.mxu0 0.0
    %2978 = vmatprep.subr.mxu0 0.0
    %2979 = vmatpush1.msra.mxu0 0.0
    %2980 = vmatprep.subr.mxu0 0.0
    %2981 = vmatpush1.msra.mxu0 0.0
    %2982 = vmatprep.subr.mxu0 0.0
    %2983 = vmatpush1.msra.mxu0 0.0
    %2984 = vmatprep.subr.mxu0 0.0
    %2985 = vmatpush1.msra.mxu0 0.0
    %2986 = vmatprep.subr.mxu0 0.0
    %2987 = vmatpush1.msra.mxu0 0.0
    %2988 = vmatprep.subr.mxu0 0.0
    %2989 = vmatpush1.msra.mxu0 0.0
    %2990 = vmatprep.subr.mxu0 0.0
    %2991 = vmatpush1.msra.mxu0 0.0
    %2992 = vmatprep.subr.mxu0 0.0
    %2993 = vmatpush1.msra.mxu0 0.0
    %2994 = vmatprep.subr.mxu0 0.0
    %2995 = vmatpush1.msra.mxu0 0.0
    %2996 = vmatprep.subr.mxu0 0.0
    %2997 = vmatpush1.msra.mxu0 0.0
    %2998 = vmatprep.mubr.f32.mxu0 0.0
    %2999 = vmatmul.mubr.f32.gmra.mrb[0].mxu0 %v2932
    %v3000 = vpop.f32.mrb[0].mxu0
    %v3001 = vadd.f32 %v607, %v3000
    %v3002 = vpop.f32.mrb[0].mxu0
    %3003 = vdwg.mxu0
    %v3004 = vmul.f32 %v3001, 0.909
    %v3005 = vxor.u32 %v3001, 2147483648
    %v3006 = vmul.f32 %v3005, 1.442695
    %v3007 = vpow.pop %v3006
    %v3008 = vadd.f32 %v3007, 1.0
    %v3009 = vrcp.pop %v3008
    %v3010 = vmul.f32 1.0, %v3009
    %v3011 = vmul.f32 %v3004, %v3010
    %v3013 = vsel %vm341, %v3011, 0
    %3015 = vmatprep.subr.mxu0 0.0
    %3016 = vmatpush1.msra.mxu0 %v690
    %3017 = vmatprep.subr.mxu0 0.0
    %3018 = vmatpush1.msra.mxu0 %v691
    %3019 = vmatprep.subr.mxu0 0.0
    %3020 = vmatpush1.msra.mxu0 %v692
    %3021 = vmatprep.subr.mxu0 0.0
    %3022 = vmatpush1.msra.mxu0 %v693
    %3023 = vmatprep.subr.mxu0 0.0
    %3024 = vmatpush1.msra.mxu0 0.0
    %3025 = vmatprep.subr.mxu0 0.0
    %3026 = vmatpush1.msra.mxu0 0.0
    %3027 = vmatprep.subr.mxu0 0.0
    %3028 = vmatpush1.msra.mxu0 0.0
    %3029 = vmatprep.subr.mxu0 0.0
    %3030 = vmatpush1.msra.mxu0 0.0
    %3031 = vmatprep.subr.mxu0 0.0
    %3032 = vmatpush1.msra.mxu0 0.0
    %3033 = vmatprep.subr.mxu0 0.0
    %3034 = vmatpush1.msra.mxu0 0.0
    %3035 = vmatprep.subr.mxu0 0.0
    %3036 = vmatpush1.msra.mxu0 0.0
    %3037 = vmatprep.subr.mxu0 0.0
    %3038 = vmatpush1.msra.mxu0 0.0
    %3039 = vmatprep.subr.mxu0 0.0
    %3040 = vmatpush1.msra.mxu0 0.0
    %3041 = vmatprep.subr.mxu0 0.0
    %3042 = vmatpush1.msra.mxu0 0.0
    %3043 = vmatprep.subr.mxu0 0.0
    %3044 = vmatpush1.msra.mxu0 0.0
    %3045 = vmatprep.subr.mxu0 0.0
    %3046 = vmatpush1.msra.mxu0 0.0
    %3047 = vmatprep.subr.mxu0 0.0
    %3048 = vmatpush1.msra.mxu0 0.0
    %3049 = vmatprep.subr.mxu0 0.0
    %3050 = vmatpush1.msra.mxu0 0.0
    %3051 = vmatprep.subr.mxu0 0.0
    %3052 = vmatpush1.msra.mxu0 0.0
    %3053 = vmatprep.subr.mxu0 0.0
    %3054 = vmatpush1.msra.mxu0 0.0
    %3055 = vmatprep.subr.mxu0 0.0
    %3056 = vmatpush1.msra.mxu0 0.0
    %3057 = vmatprep.subr.mxu0 0.0
    %3058 = vmatpush1.msra.mxu0 0.0
    %3059 = vmatprep.subr.mxu0 0.0
    %3060 = vmatpush1.msra.mxu0 0.0
    %3061 = vmatprep.subr.mxu0 0.0
    %3062 = vmatpush1.msra.mxu0 0.0
    %3063 = vmatprep.subr.mxu0 0.0
    %3064 = vmatpush1.msra.mxu0 0.0
    %3065 = vmatprep.subr.mxu0 0.0
    %3066 = vmatpush1.msra.mxu0 0.0
    %3067 = vmatprep.subr.mxu0 0.0
    %3068 = vmatpush1.msra.mxu0 0.0
    %3069 = vmatprep.subr.mxu0 0.0
    %3070 = vmatpush1.msra.mxu0 0.0
    %3071 = vmatprep.subr.mxu0 0.0
    %3072 = vmatpush1.msra.mxu0 0.0
    %3073 = vmatprep.subr.mxu0 0.0
    %3074 = vmatpush1.msra.mxu0 0.0
    %3075 = vmatprep.subr.mxu0 0.0
    %3076 = vmatpush1.msra.mxu0 0.0
    %3077 = vmatprep.subr.mxu0 0.0
    %3078 = vmatpush1.msra.mxu0 0.0
    %3079 = vmatprep.mubr.f32.mxu0 0.0
    %3080 = vmatmul.mubr.f32.gmra.mrb[0].mxu0 %v3013
    %v3081 = vpop.f32.mrb[0].mxu0
    %v3082 = vadd.f32 %v699, %v3081
    %v3083 = vpop.f32.mrb[0].mxu0
    %3084 = vdwg.mxu0
    %v3085 = vtanh.pop %v3082
    %s3086 = scalar_lea.vmem [#allocation2], 56
    %v3087 = vld [vmem:[%s3086] sm:$0xff]
    %v3088 = vmul.f32 %v3085, %v3087
    %v3090 = vsel %vm228, %v3088, 0
    %3092 = vmatprep.subr.mxu0 0.0
    %3093 = vmatpush1.msra.mxu0 %v78
    %3094 = vmatprep.subr.mxu0 0.0
    %3095 = vmatpush1.msra.mxu0 %v79
    %3096 = vmatprep.subr.mxu0 0.0
    %3097 = vmatpush1.msra.mxu0 %v80
    %3098 = vmatprep.subr.mxu0 0.0
    %3099 = vmatpush1.msra.mxu0 %v81
    %3100 = vmatprep.subr.mxu0 0.0
    %3101 = vmatpush1.msra.mxu0 %v82
    %3102 = vmatprep.subr.mxu0 0.0
    %3103 = vmatpush1.msra.mxu0 %v83
    %3104 = vmatprep.subr.mxu0 0.0
    %3105 = vmatpush1.msra.mxu0 %v84
    %3106 = vmatprep.subr.mxu0 0.0
    %3107 = vmatpush1.msra.mxu0 %v85
    %3108 = vmatprep.subr.mxu0 0.0
    %3109 = vmatpush1.msra.mxu0 0.0
    %3110 = vmatprep.subr.mxu0 0.0
    %3111 = vmatpush1.msra.mxu0 0.0
    %3112 = vmatprep.subr.mxu0 0.0
    %3113 = vmatpush1.msra.mxu0 0.0
    %3114 = vmatprep.subr.mxu0 0.0
    %3115 = vmatpush1.msra.mxu0 0.0
    %3116 = vmatprep.subr.mxu0 0.0
    %3117 = vmatpush1.msra.mxu0 0.0
    %3118 = vmatprep.subr.mxu0 0.0
    %3119 = vmatpush1.msra.mxu0 0.0
    %3120 = vmatprep.subr.mxu0 0.0
    %3121 = vmatpush1.msra.mxu0 0.0
    %3122 = vmatprep.subr.mxu0 0.0
    %3123 = vmatpush1.msra.mxu0 0.0
    %3124 = vmatprep.subr.mxu0 0.0
    %3125 = vmatpush1.msra.mxu0 0.0
    %3126 = vmatprep.subr.mxu0 0.0
    %3127 = vmatpush1.msra.mxu0 0.0
    %3128 = vmatprep.subr.mxu0 0.0
    %3129 = vmatpush1.msra.mxu0 0.0
    %3130 = vmatprep.subr.mxu0 0.0
    %3131 = vmatpush1.msra.mxu0 0.0
    %3132 = vmatprep.subr.mxu0 0.0
    %3133 = vmatpush1.msra.mxu0 0.0
    %3134 = vmatprep.subr.mxu0 0.0
    %3135 = vmatpush1.msra.mxu0 0.0
    %3136 = vmatprep.subr.mxu0 0.0
    %3137 = vmatpush1.msra.mxu0 0.0
    %3138 = vmatprep.subr.mxu0 0.0
    %3139 = vmatpush1.msra.mxu0 0.0
    %3140 = vmatprep.subr.mxu0 0.0
    %3141 = vmatpush1.msra.mxu0 0.0
    %3142 = vmatprep.subr.mxu0 0.0
    %3143 = vmatpush1.msra.mxu0 0.0
    %3144 = vmatprep.subr.mxu0 0.0
    %3145 = vmatpush1.msra.mxu0 0.0
    %3146 = vmatprep.subr.mxu0 0.0
    %3147 = vmatpush1.msra.mxu0 0.0
    %3148 = vmatprep.subr.mxu0 0.0
    %3149 = vmatpush1.msra.mxu0 0.0
    %3150 = vmatprep.subr.mxu0 0.0
    %3151 = vmatpush1.msra.mxu0 0.0
    %3152 = vmatprep.subr.mxu0 0.0
    %3153 = vmatpush1.msra.mxu0 0.0
    %3154 = vmatprep.subr.mxu0 0.0
    %3155 = vmatpush1.msra.mxu0 0.0
    %3156 = vmatprep.mubr.f32.mxu0 0.0
    %3157 = vmatmul.mubr.f32.gmra.mrb[0].mxu0 %v3090
    %v3158 = vpop.f32.mrb[0].mxu0
    %v3159 = vadd.f32 0.0, %v3158
    %v3160 = vpop.f32.mrb[0].mxu0
    %3161 = vdwg.mxu0
    %s3162 = smul.f32 %s2836, 0.5
    %v3163 = vadd.f32 %v2828, %v3159
    %v3164 = vstv %s3162
    %v3165 = vmul.f32 %v3164, %v3163
    %v3166 = vadd.f32 %v2835, %v3165
    %v3167 = vld [vmem:[%s17] sm:$0x1]
    %v3169 = vlaneseq
    %v3170 = vshrl.u32 %v3169, 7
    %v3171 = vsub.s32 0, %v3170
    %v3172 = vrot.slane %v3167, %v3171
    %v3174 = vmul.f32 %v3166, %v3172
    %v3175 = vsel %vm516, %v3174, 0.0
    %3176 = vadd.xlane.f32.xlu0 %v3175
    %v3177 = vpop.xlane.xlu0 %3176
    %v3178 = vld [vmem:[#allocation3] sm:$0x1]
    %v3180 = vlaneseq
    %v3181 = vshrl.u32 %v3180, 7
    %v3182 = vsub.s32 0, %v3181
    %v3183 = vrot.slane %v3178, %v3182
    %v3185 = vadd.f32 %v3177, %v3183
    %vm3186 = vcmask 7168
    %3187 = vst.msk [vmem:[%s19] sm:$0xff] %vm3186, %v3185
    // Predicated region
    $region82: #{tpu_custom_call.1} parent=1 // pred_check
      _
    $region83: #{tpu_custom_call.1} parent=1 // pred_check_branch
      %3189 = sbr.rel (0) target = $region85
    $region84: #{tpu_custom_call.1} parent=1 // pred_region
      _
    $region85: #{tpu_custom_call.1} parent=1 // pred_fallthru
      _
    // Predicated region
    $region86: #{tpu_custom_call.1} parent=1 // pred_check
      _
    $region87: #{tpu_custom_call.1} parent=1 // pred_check_branch
      %3191 = sbr.rel (0) target = $region89
    $region88: #{tpu_custom_call.1} parent=1 // pred_region
      _
    $region89: #{tpu_custom_call.1} parent=1 // pred_fallthru
      _
    %3192 = vsyncpa [#allocation5], 1

</llo_original>
